<compile_context>
chip_gen: v7x
topology: tpu7x:2x2x1
jax: 0.10.0
libtpu: 0.0.40
codegen_flags: <defaults>
</compile_context>

<pallas_src>
import functools

import jax
import jax.numpy as jnp
from jax.experimental import pallas as pl
from jax.experimental.pallas import tpu as pltpu


def _maxpool_kernel(x_ref, o_ref, *, kh, kw, sh, sw, ho, wo, pad, h, w):
    # x_ref: (H, W, 1, R, L)   -- batch on (sublane, lane); H/W are leading axes.
    # o_ref: (Ho, Wo, 1, R, L)
    r, l = x_ref.shape[3], x_ref.shape[4]
    zero = jnp.zeros((r, l), dtype=x_ref.dtype)   # hoisted; only used on border windows

    for oh in range(ho):
        h0 = oh * sh - pad
        for ow in range(wo):
            w0 = ow * sw - pad
            acc = None
            touches_pad = False
            for dh in range(kh):
                hi = h0 + dh
                if hi < 0 or hi >= h:
                    touches_pad = True
                    continue
                for dw in range(kw):
                    wi = w0 + dw
                    if wi < 0 or wi >= w:
                        touches_pad = True
                        continue
                    v = x_ref[hi, wi, 0, :, :]            # (R, L) full-tile load from VMEM
                    acc = v if acc is None else jnp.maximum(acc, v)
            if acc is None:
                acc = zero                                # window entirely inside padding
            elif touches_pad:
                acc = jnp.maximum(acc, zero)              # zero-pad semantics (as F.pad)
            o_ref[oh, ow, 0, :, :] = acc                  # lane-dense store


def _pick_lane_width(b):
    """Lane width L for the flattened batch axis; avoid padding B when possible."""
    lane = 128
    if b <= lane:
        return b
    if b % lane == 0:
        return lane
    # Try a divisor of B near a lane multiple so no batch-axis padding pass is needed.
    for d in range(2 * lane, lane // 2 - 1, -1):
        if b % d == 0:
            return d
    return lane  # fall back: pad B up to a multiple of 128 (< 128 extra planes)


def _pick_groups_per_block(m, plane_elems, lane_w, itemsize,
                           budget_bytes=4 << 20, min_steps=8):
    """Largest divisor R of m whose (tile-padded) input block fits the per-buffer budget,
    preferring >= min_steps grid steps (double-buffer overlap / v7x megacore)."""
    sub_mult = 8 * max(1, 4 // itemsize)          # f32: 8, bf16: 16, int8: 32 sublane pack
    lane_pad = -(-lane_w // 128) * 128

    def block_bytes(r):
        return plane_elems * (-(-r // sub_mult) * sub_mult) * lane_pad * itemsize

    divisors = [d for d in range(1, m + 1) if m % d == 0]
    fit = [d for d in divisors if block_bytes(d) <= budget_bytes] or [1]
    pref = [d for d in fit if m // d >= min(min_steps, m)]
    return max(pref) if pref else max(fit)


def svi_maxpool2d_forward(x, kernel_size, stride=None, padding=0, dilation=1):
    """
    x: (N, S, C, H, W) -> (N, S, C, Ho, Wo), matching SVIMaxPool2D.forward.
    Padding uses ZEROS (same as F.pad in the reference module), not -inf.
    """
    if dilation != 1:
        raise NotImplementedError("dilation != 1 is not supported")
    kh, kw = kernel_size
    sh, sw = kernel_size if stride is None else stride

    N, S, C, H, W = x.shape
    Ho = (H + 2 * padding - kh) // sh + 1
    Wo = (W + 2 * padding - kw) // sw + 1
    B = N * S * C
    itemsize = jnp.dtype(x.dtype).itemsize

    # ---- relayout: batch goes on (sublane, lane); H/W become leading axes ----
    L = _pick_lane_width(B)
    Bp = -(-B // L) * L
    M = Bp // L                                          # number of L-wide batch groups
    R = _pick_groups_per_block(M, H * W, L, itemsize)    # groups per grid step
    G = M // R                                           # grid size (exact: R divides M)

    xb = jnp.transpose(x.reshape(B, H, W), (1, 2, 0))    # (H, W, B): single relayout pass
    if Bp > B:
        xb = jnp.pad(xb, ((0, 0), (0, 0), (0, Bp - B)))
    xg = xb.reshape(H, W, G, R, L)

    kernel = functools.partial(_maxpool_kernel, kh=kh, kw=kw, sh=sh, sw=sw,
                               ho=Ho, wo=Wo, pad=padding, h=H, w=W)

    out = pl.pallas_call(
        kernel,
        out_shape=jax.ShapeDtypeStruct((Ho, Wo, G, R, L), x.dtype),
        grid_spec=pltpu.PrefetchScalarGridSpec(
            num_scalar_prefetch=0,
            grid=(G,),
            in_specs=[pl.BlockSpec((H, W, 1, R, L), lambda g: (0, 0, g, 0, 0))],
            out_specs=pl.BlockSpec((Ho, Wo, 1, R, L), lambda g: (0, 0, g, 0, 0)),
        ),
        compiler_params=pltpu.CompilerParams(
            dimension_semantics=("parallel",)),
    )(xg)

    out = out.reshape(Ho, Wo, Bp)[:, :, :B]              # drop batch pad (if any)
    return jnp.transpose(out, (2, 0, 1)).reshape(N, S, C, Ho, Wo)


def _reference(x, kernel_size, stride, padding):
    """Pure-JAX replica of SVIMaxPool2D.forward (zero padding + unfold + max + max)."""
    kh, kw = kernel_size
    sh, sw = stride
    xp = jnp.pad(x, ((0, 0), (0, 0), (0, 0),
                     (padding, padding), (padding, padding)))
    Hp, Wp = xp.shape[3], xp.shape[4]
    Ho = (Hp - kh) // sh + 1
    Wo = (Wp - kw) // sw + 1
    out = None
    for dh in range(kh):
        for dw in range(kw):
            sl = xp[:, :, :, dh:dh + (Ho - 1) * sh + 1:sh,
                             dw:dw + (Wo - 1) * sw + 1:sw]
            out = sl if out is None else jnp.maximum(out, sl)
    return out


if __name__ == "__main__":
    key = jax.random.PRNGKey(0)

    # [examples, samples, channels, H, W]
    N, S, C, H, W = 2, 3, 4, 16, 16
    x = jax.random.normal(key, (N, S, C, H, W), dtype=jnp.float32)

    # Config 1: default pooling (stride = kernel, no padding).
    out1 = jax.block_until_ready(svi_maxpool2d_forward(x, (2, 2)))
    ref1 = _reference(x, (2, 2), (2, 2), 0)
    assert out1.shape == ref1.shape == (N, S, C, 8, 8)
    assert jnp.array_equal(out1, ref1), "mismatch vs reference (config 1)"

    # Config 2: overlapping windows with zero padding.
    out2 = jax.block_until_ready(
        svi_maxpool2d_forward(x, (3, 3), stride=(2, 2), padding=1))
    ref2 = _reference(x, (3, 3), (2, 2), 1)
    assert out2.shape == ref2.shape == (N, S, C, 8, 8)
    assert jnp.array_equal(out2, ref2), "mismatch vs reference (config 2)"

    # Config 3: larger flattened batch so the lane-dense (L=128) multi-step path runs.
    N3, S3, C3 = 2, 8, 16                                 # B = 256 -> 2 grid steps
    x3 = jax.random.normal(jax.random.PRNGKey(0), (N3, S3, C3, H, W), dtype=jnp.float32)
    out3 = jax.block_until_ready(
        svi_maxpool2d_forward(x3, (3, 3), stride=(2, 2), padding=1))
    ref3 = _reference(x3, (3, 3), (2, 2), 1)
    assert out3.shape == ref3.shape == (N3, S3, C3, 8, 8)
    assert jnp.array_equal(out3, ref3), "mismatch vs reference (config 3)"

    print("KERNEL_OK")
</pallas_src>

<mosaic_0001>
module attributes {stable_mosaic.version = 11 : i64} {
  func.func @_maxpool_kernel(%arg0: i32, %arg1: memref<16x16x1x1x24xf32, #tpu.memory_space<vmem>>, %arg2: memref<8x8x1x1x24xf32, #tpu.memory_space<vmem>>) attributes {dimension_semantics = [#tpu.dimension_semantics<parallel>], iteration_bounds = array<i64: 1>, scalar_prefetch = 0 : i64, scratch_operands = 0 : i64, tpu.core_type = #tpu.core_type<tc>, window_params = [{transform_indices = @transform_0, window_bounds = array<i64: 16, 16, 1, 1, 24>}, {transform_indices = @transform_1, window_bounds = array<i64: 8, 8, 1, 1, 24>}]} {
    %c0 = arith.constant 0 : index
    %c0_0 = arith.constant 0 : index
    %c0_1 = arith.constant 0 : index
    %c0_2 = arith.constant 0 : index
    %c0_3 = arith.constant 0 : index
    %0 = vector.load %arg1[%c0, %c0_0, %c0_1, %c0_2, %c0_3] : memref<16x16x1x1x24xf32, #tpu.memory_space<vmem>>, vector<1x1x1x1x24xf32>
    %1 = vector.shape_cast %0 : vector<1x1x1x1x24xf32> to vector<1x24xf32>
    %c0_4 = arith.constant 0 : index
    %c1 = arith.constant 1 : index
    %c0_5 = arith.constant 0 : index
    %c0_6 = arith.constant 0 : index
    %c0_7 = arith.constant 0 : index
    %2 = vector.load %arg1[%c0_4, %c1, %c0_5, %c0_6, %c0_7] : memref<16x16x1x1x24xf32, #tpu.memory_space<vmem>>, vector<1x1x1x1x24xf32>
    %3 = vector.shape_cast %2 : vector<1x1x1x1x24xf32> to vector<1x24xf32>
    %4 = arith.maximumf %1, %3 : vector<1x24xf32>
    %c1_8 = arith.constant 1 : index
    %c0_9 = arith.constant 0 : index
    %c0_10 = arith.constant 0 : index
    %c0_11 = arith.constant 0 : index
    %c0_12 = arith.constant 0 : index
    %5 = vector.load %arg1[%c1_8, %c0_9, %c0_10, %c0_11, %c0_12] : memref<16x16x1x1x24xf32, #tpu.memory_space<vmem>>, vector<1x1x1x1x24xf32>
    %6 = vector.shape_cast %5 : vector<1x1x1x1x24xf32> to vector<1x24xf32>
    %7 = arith.maximumf %4, %6 : vector<1x24xf32>
    %c1_13 = arith.constant 1 : index
    %c1_14 = arith.constant 1 : index
    %c0_15 = arith.constant 0 : index
    %c0_16 = arith.constant 0 : index
    %c0_17 = arith.constant 0 : index
    %8 = vector.load %arg1[%c1_13, %c1_14, %c0_15, %c0_16, %c0_17] : memref<16x16x1x1x24xf32, #tpu.memory_space<vmem>>, vector<1x1x1x1x24xf32>
    %9 = vector.shape_cast %8 : vector<1x1x1x1x24xf32> to vector<1x24xf32>
    %10 = arith.maximumf %7, %9 : vector<1x24xf32>
    %c0_18 = arith.constant 0 : index
    %c0_19 = arith.constant 0 : index
    %c0_20 = arith.constant 0 : index
    %c0_21 = arith.constant 0 : index
    %c0_22 = arith.constant 0 : index
    %11 = vector.load %arg2[%c0_18, %c0_19, %c0_20, %c0_21, %c0_22] : memref<8x8x1x1x24xf32, #tpu.memory_space<vmem>>, vector<1x1x1x1x24xf32>
    %12 = vector.shape_cast %11 : vector<1x1x1x1x24xf32> to vector<1x24xf32>
    %13 = vector.shape_cast %10 : vector<1x24xf32> to vector<1x1x1x1x24xf32>
    tpu.vector_store %arg2[%c0_18, %c0_19, %c0_20, %c0_21, %c0_22], %13 {strides = array<i32>} : memref<8x8x1x1x24xf32, #tpu.memory_space<vmem>>, vector<1x1x1x1x24xf32>,
    %c0_23 = arith.constant 0 : index
    %c2 = arith.constant 2 : index
    %c0_24 = arith.constant 0 : index
    %c0_25 = arith.constant 0 : index
    %c0_26 = arith.constant 0 : index
    %14 = vector.load %arg1[%c0_23, %c2, %c0_24, %c0_25, %c0_26] : memref<16x16x1x1x24xf32, #tpu.memory_space<vmem>>, vector<1x1x1x1x24xf32>
    %15 = vector.shape_cast %14 : vector<1x1x1x1x24xf32> to vector<1x24xf32>
    %c0_27 = arith.constant 0 : index
    %c3 = arith.constant 3 : index
    %c0_28 = arith.constant 0 : index
    %c0_29 = arith.constant 0 : index
    %c0_30 = arith.constant 0 : index
    %16 = vector.load %arg1[%c0_27, %c3, %c0_28, %c0_29, %c0_30] : memref<16x16x1x1x24xf32, #tpu.memory_space<vmem>>, vector<1x1x1x1x24xf32>
    %17 = vector.shape_cast %16 : vector<1x1x1x1x24xf32> to vector<1x24xf32>
    %18 = arith.maximumf %15, %17 : vector<1x24xf32>
    %c1_31 = arith.constant 1 : index
    %c2_32 = arith.constant 2 : index
    %c0_33 = arith.constant 0 : index
    %c0_34 = arith.constant 0 : index
    %c0_35 = arith.constant 0 : index
    %19 = vector.load %arg1[%c1_31, %c2_32, %c0_33, %c0_34, %c0_35] : memref<16x16x1x1x24xf32, #tpu.memory_space<vmem>>, vector<1x1x1x1x24xf32>
    %20 = vector.shape_cast %19 : vector<1x1x1x1x24xf32> to vector<1x24xf32>
    %21 = arith.maximumf %18, %20 : vector<1x24xf32>
    %c1_36 = arith.constant 1 : index
    %c3_37 = arith.constant 3 : index
    %c0_38 = arith.constant 0 : index
    %c0_39 = arith.constant 0 : index
    %c0_40 = arith.constant 0 : index
    %22 = vector.load %arg1[%c1_36, %c3_37, %c0_38, %c0_39, %c0_40] : memref<16x16x1x1x24xf32, #tpu.memory_space<vmem>>, vector<1x1x1x1x24xf32>
    %23 = vector.shape_cast %22 : vector<1x1x1x1x24xf32> to vector<1x24xf32>
    %24 = arith.maximumf %21, %23 : vector<1x24xf32>
    %c0_41 = arith.constant 0 : index
    %c1_42 = arith.constant 1 : index
    %c0_43 = arith.constant 0 : index
    %c0_44 = arith.constant 0 : index
    %c0_45 = arith.constant 0 : index
    %25 = vector.load %arg2[%c0_41, %c1_42, %c0_43, %c0_44, %c0_45] : memref<8x8x1x1x24xf32, #tpu.memory_space<vmem>>, vector<1x1x1x1x24xf32>
    %26 = vector.shape_cast %25 : vector<1x1x1x1x24xf32> to vector<1x24xf32>
    %27 = vector.shape_cast %24 : vector<1x24xf32> to vector<1x1x1x1x24xf32>
    tpu.vector_store %arg2[%c0_41, %c1_42, %c0_43, %c0_44, %c0_45], %27 {strides = array<i32>} : memref<8x8x1x1x24xf32, #tpu.memory_space<vmem>>, vector<1x1x1x1x24xf32>,
    %c0_46 = arith.constant 0 : index
    %c4 = arith.constant 4 : index
    %c0_47 = arith.constant 0 : index
    %c0_48 = arith.constant 0 : index
    %c0_49 = arith.constant 0 : index
    %28 = vector.load %arg1[%c0_46, %c4, %c0_47, %c0_48, %c0_49] : memref<16x16x1x1x24xf32, #tpu.memory_space<vmem>>, vector<1x1x1x1x24xf32>
    %29 = vector.shape_cast %28 : vector<1x1x1x1x24xf32> to vector<1x24xf32>
    %c0_50 = arith.constant 0 : index
    %c5 = arith.constant 5 : index
    %c0_51 = arith.constant 0 : index
    %c0_52 = arith.constant 0 : index
    %c0_53 = arith.constant 0 : index
    %30 = vector.load %arg1[%c0_50, %c5, %c0_51, %c0_52, %c0_53] : memref<16x16x1x1x24xf32, #tpu.memory_space<vmem>>, vector<1x1x1x1x24xf32>
    %31 = vector.shape_cast %30 : vector<1x1x1x1x24xf32> to vector<1x24xf32>
    %32 = arith.maximumf %29, %31 : vector<1x24xf32>
    %c1_54 = arith.constant 1 : index
    %c4_55 = arith.constant 4 : index
    %c0_56 = arith.constant 0 : index
    %c0_57 = arith.constant 0 : index
    %c0_58 = arith.constant 0 : index
    %33 = vector.load %arg1[%c1_54, %c4_55, %c0_56, %c0_57, %c0_58] : memref<16x16x1x1x24xf32, #tpu.memory_space<vmem>>, vector<1x1x1x1x24xf32>
    %34 = vector.shape_cast %33 : vector<1x1x1x1x24xf32> to vector<1x24xf32>
    %35 = arith.maximumf %32, %34 : vector<1x24xf32>
    %c1_59 = arith.constant 1 : index
    %c5_60 = arith.constant 5 : index
    %c0_61 = arith.constant 0 : index
    %c0_62 = arith.constant 0 : index
    %c0_63 = arith.constant 0 : index
    %36 = vector.load %arg1[%c1_59, %c5_60, %c0_61, %c0_62, %c0_63] : memref<16x16x1x1x24xf32, #tpu.memory_space<vmem>>, vector<1x1x1x1x24xf32>
    %37 = vector.shape_cast %36 : vector<1x1x1x1x24xf32> to vector<1x24xf32>
    %38 = arith.maximumf %35, %37 : vector<1x24xf32>
    %c0_64 = arith.constant 0 : index
    %c2_65 = arith.constant 2 : index
    %c0_66 = arith.constant 0 : index
    %c0_67 = arith.constant 0 : index
    %c0_68 = arith.constant 0 : index
    %39 = vector.load %arg2[%c0_64, %c2_65, %c0_66, %c0_67, %c0_68] : memref<8x8x1x1x24xf32, #tpu.memory_space<vmem>>, vector<1x1x1x1x24xf32>
    %40 = vector.shape_cast %39 : vector<1x1x1x1x24xf32> to vector<1x24xf32>
    %41 = vector.shape_cast %38 : vector<1x24xf32> to vector<1x1x1x1x24xf32>
    tpu.vector_store %arg2[%c0_64, %c2_65, %c0_66, %c0_67, %c0_68], %41 {strides = array<i32>} : memref<8x8x1x1x24xf32, #tpu.memory_space<vmem>>, vector<1x1x1x1x24xf32>,
    %c0_69 = arith.constant 0 : index
    %c6 = arith.constant 6 : index
    %c0_70 = arith.constant 0 : index
    %c0_71 = arith.constant 0 : index
    %c0_72 = arith.constant 0 : index
    %42 = vector.load %arg1[%c0_69, %c6, %c0_70, %c0_71, %c0_72] : memref<16x16x1x1x24xf32, #tpu.memory_space<vmem>>, vector<1x1x1x1x24xf32>
    %43 = vector.shape_cast %42 : vector<1x1x1x1x24xf32> to vector<1x24xf32>
    %c0_73 = arith.constant 0 : index
    %c7 = arith.constant 7 : index
    %c0_74 = arith.constant 0 : index
    %c0_75 = arith.constant 0 : index
    %c0_76 = arith.constant 0 : index
    %44 = vector.load %arg1[%c0_73, %c7, %c0_74, %c0_75, %c0_76] : memref<16x16x1x1x24xf32, #tpu.memory_space<vmem>>, vector<1x1x1x1x24xf32>
    %45 = vector.shape_cast %44 : vector<1x1x1x1x24xf32> to vector<1x24xf32>
    %46 = arith.maximumf %43, %45 : vector<1x24xf32>
    %c1_77 = arith.constant 1 : index
    %c6_78 = arith.constant 6 : index
    %c0_79 = arith.constant 0 : index
    %c0_80 = arith.constant 0 : index
    %c0_81 = arith.constant 0 : index
    %47 = vector.load %arg1[%c1_77, %c6_78, %c0_79, %c0_80, %c0_81] : memref<16x16x1x1x24xf32, #tpu.memory_space<vmem>>, vector<1x1x1x1x24xf32>
    %48 = vector.shape_cast %47 : vector<1x1x1x1x24xf32> to vector<1x24xf32>
    %49 = arith.maximumf %46, %48 : vector<1x24xf32>
    %c1_82 = arith.constant 1 : index
    %c7_83 = arith.constant 7 : index
    %c0_84 = arith.constant 0 : index
    %c0_85 = arith.constant 0 : index
    %c0_86 = arith.constant 0 : index
    %50 = vector.load %arg1[%c1_82, %c7_83, %c0_84, %c0_85, %c0_86] : memref<16x16x1x1x24xf32, #tpu.memory_space<vmem>>, vector<1x1x1x1x24xf32>
    %51 = vector.shape_cast %50 : vector<1x1x1x1x24xf32> to vector<1x24xf32>
    %52 = arith.maximumf %49, %51 : vector<1x24xf32>
    %c0_87 = arith.constant 0 : index
    %c3_88 = arith.constant 3 : index
    %c0_89 = arith.constant 0 : index
    %c0_90 = arith.constant 0 : index
    %c0_91 = arith.constant 0 : index
    %53 = vector.load %arg2[%c0_87, %c3_88, %c0_89, %c0_90, %c0_91] : memref<8x8x1x1x24xf32, #tpu.memory_space<vmem>>, vector<1x1x1x1x24xf32>
    %54 = vector.shape_cast %53 : vector<1x1x1x1x24xf32> to vector<1x24xf32>
    %55 = vector.shape_cast %52 : vector<1x24xf32> to vector<1x1x1x1x24xf32>
    tpu.vector_store %arg2[%c0_87, %c3_88, %c0_89, %c0_90, %c0_91], %55 {strides = array<i32>} : memref<8x8x1x1x24xf32, #tpu.memory_space<vmem>>, vector<1x1x1x1x24xf32>,
    %c0_92 = arith.constant 0 : index
    %c8 = arith.constant 8 : index
    %c0_93 = arith.constant 0 : index
    %c0_94 = arith.constant 0 : index
    %c0_95 = arith.constant 0 : index
    %56 = vector.load %arg1[%c0_92, %c8, %c0_93, %c0_94, %c0_95] : memref<16x16x1x1x24xf32, #tpu.memory_space<vmem>>, vector<1x1x1x1x24xf32>
    %57 = vector.shape_cast %56 : vector<1x1x1x1x24xf32> to vector<1x24xf32>
    %c0_96 = arith.constant 0 : index
    %c9 = arith.constant 9 : index
    %c0_97 = arith.constant 0 : index
    %c0_98 = arith.constant 0 : index
    %c0_99 = arith.constant 0 : index
    %58 = vector.load %arg1[%c0_96, %c9, %c0_97, %c0_98, %c0_99] : memref<16x16x1x1x24xf32, #tpu.memory_space<vmem>>, vector<1x1x1x1x24xf32>
    %59 = vector.shape_cast %58 : vector<1x1x1x1x24xf32> to vector<1x24xf32>
    %60 = arith.maximumf %57, %59 : vector<1x24xf32>
    %c1_100 = arith.constant 1 : index
    %c8_101 = arith.constant 8 : index
    %c0_102 = arith.constant 0 : index
    %c0_103 = arith.constant 0 : index
    %c0_104 = arith.constant 0 : index
    %61 = vector.load %arg1[%c1_100, %c8_101, %c0_102, %c0_103, %c0_104] : memref<16x16x1x1x24xf32, #tpu.memory_space<vmem>>, vector<1x1x1x1x24xf32>
    %62 = vector.shape_cast %61 : vector<1x1x1x1x24xf32> to vector<1x24xf32>
    %63 = arith.maximumf %60, %62 : vector<1x24xf32>
    %c1_105 = arith.constant 1 : index
    %c9_106 = arith.constant 9 : index
    %c0_107 = arith.constant 0 : index
    %c0_108 = arith.constant 0 : index
    %c0_109 = arith.constant 0 : index
    %64 = vector.load %arg1[%c1_105, %c9_106, %c0_107, %c0_108, %c0_109] : memref<16x16x1x1x24xf32, #tpu.memory_space<vmem>>, vector<1x1x1x1x24xf32>
    %65 = vector.shape_cast %64 : vector<1x1x1x1x24xf32> to vector<1x24xf32>
    %66 = arith.maximumf %63, %65 : vector<1x24xf32>
    %c0_110 = arith.constant 0 : index
    %c4_111 = arith.constant 4 : index
    %c0_112 = arith.constant 0 : index
    %c0_113 = arith.constant 0 : index
    %c0_114 = arith.constant 0 : index
    %67 = vector.load %arg2[%c0_110, %c4_111, %c0_112, %c0_113, %c0_114] : memref<8x8x1x1x24xf32, #tpu.memory_space<vmem>>, vector<1x1x1x1x24xf32>
    %68 = vector.shape_cast %67 : vector<1x1x1x1x24xf32> to vector<1x24xf32>
    %69 = vector.shape_cast %66 : vector<1x24xf32> to vector<1x1x1x1x24xf32>
    tpu.vector_store %arg2[%c0_110, %c4_111, %c0_112, %c0_113, %c0_114], %69 {strides = array<i32>} : memref<8x8x1x1x24xf32, #tpu.memory_space<vmem>>, vector<1x1x1x1x24xf32>,
    %c0_115 = arith.constant 0 : index
    %c10 = arith.constant 10 : index
    %c0_116 = arith.constant 0 : index
    %c0_117 = arith.constant 0 : index
    %c0_118 = arith.constant 0 : index
    %70 = vector.load %arg1[%c0_115, %c10, %c0_116, %c0_117, %c0_118] : memref<16x16x1x1x24xf32, #tpu.memory_space<vmem>>, vector<1x1x1x1x24xf32>
    %71 = vector.shape_cast %70 : vector<1x1x1x1x24xf32> to vector<1x24xf32>
    %c0_119 = arith.constant 0 : index
    %c11 = arith.constant 11 : index
    %c0_120 = arith.constant 0 : index
    %c0_121 = arith.constant 0 : index
    %c0_122 = arith.constant 0 : index
    %72 = vector.load %arg1[%c0_119, %c11, %c0_120, %c0_121, %c0_122] : memref<16x16x1x1x24xf32, #tpu.memory_space<vmem>>, vector<1x1x1x1x24xf32>
    %73 = vector.shape_cast %72 : vector<1x1x1x1x24xf32> to vector<1x24xf32>
    %74 = arith.maximumf %71, %73 : vector<1x24xf32>
    %c1_123 = arith.constant 1 : index
    %c10_124 = arith.constant 10 : index
    %c0_125 = arith.constant 0 : index
    %c0_126 = arith.constant 0 : index
    %c0_127 = arith.constant 0 : index
    %75 = vector.load %arg1[%c1_123, %c10_124, %c0_125, %c0_126, %c0_127] : memref<16x16x1x1x24xf32, #tpu.memory_space<vmem>>, vector<1x1x1x1x24xf32>
    %76 = vector.shape_cast %75 : vector<1x1x1x1x24xf32> to vector<1x24xf32>
    %77 = arith.maximumf %74, %76 : vector<1x24xf32>
    %c1_128 = arith.constant 1 : index
    %c11_129 = arith.constant 11 : index
    %c0_130 = arith.constant 0 : index
    %c0_131 = arith.constant 0 : index
    %c0_132 = arith.constant 0 : index
    %78 = vector.load %arg1[%c1_128, %c11_129, %c0_130, %c0_131, %c0_132] : memref<16x16x1x1x24xf32, #tpu.memory_space<vmem>>, vector<1x1x1x1x24xf32>
    %79 = vector.shape_cast %78 : vector<1x1x1x1x24xf32> to vector<1x24xf32>
    %80 = arith.maximumf %77, %79 : vector<1x24xf32>
    %c0_133 = arith.constant 0 : index
    %c5_134 = arith.constant 5 : index
    %c0_135 = arith.constant 0 : index
    %c0_136 = arith.constant 0 : index
    %c0_137 = arith.constant 0 : index
    %81 = vector.load %arg2[%c0_133, %c5_134, %c0_135, %c0_136, %c0_137] : memref<8x8x1x1x24xf32, #tpu.memory_space<vmem>>, vector<1x1x1x1x24xf32>
    %82 = vector.shape_cast %81 : vector<1x1x1x1x24xf32> to vector<1x24xf32>
    %83 = vector.shape_cast %80 : vector<1x24xf32> to vector<1x1x1x1x24xf32>
    tpu.vector_store %arg2[%c0_133, %c5_134, %c0_135, %c0_136, %c0_137], %83 {strides = array<i32>} : memref<8x8x1x1x24xf32, #tpu.memory_space<vmem>>, vector<1x1x1x1x24xf32>,
    %c0_138 = arith.constant 0 : index
    %c12 = arith.constant 12 : index
    %c0_139 = arith.constant 0 : index
    %c0_140 = arith.constant 0 : index
    %c0_141 = arith.constant 0 : index
    %84 = vector.load %arg1[%c0_138, %c12, %c0_139, %c0_140, %c0_141] : memref<16x16x1x1x24xf32, #tpu.memory_space<vmem>>, vector<1x1x1x1x24xf32>
    %85 = vector.shape_cast %84 : vector<1x1x1x1x24xf32> to vector<1x24xf32>
    %c0_142 = arith.constant 0 : index
    %c13 = arith.constant 13 : index
    %c0_143 = arith.constant 0 : index
    %c0_144 = arith.constant 0 : index
    %c0_145 = arith.constant 0 : index
    %86 = vector.load %arg1[%c0_142, %c13, %c0_143, %c0_144, %c0_145] : memref<16x16x1x1x24xf32, #tpu.memory_space<vmem>>, vector<1x1x1x1x24xf32>
    %87 = vector.shape_cast %86 : vector<1x1x1x1x24xf32> to vector<1x24xf32>
    %88 = arith.maximumf %85, %87 : vector<1x24xf32>
    %c1_146 = arith.constant 1 : index
    %c12_147 = arith.constant 12 : index
    %c0_148 = arith.constant 0 : index
    %c0_149 = arith.constant 0 : index
    %c0_150 = arith.constant 0 : index
    %89 = vector.load %arg1[%c1_146, %c12_147, %c0_148, %c0_149, %c0_150] : memref<16x16x1x1x24xf32, #tpu.memory_space<vmem>>, vector<1x1x1x1x24xf32>
    %90 = vector.shape_cast %89 : vector<1x1x1x1x24xf32> to vector<1x24xf32>
    %91 = arith.maximumf %88, %90 : vector<1x24xf32>
    %c1_151 = arith.constant 1 : index
    %c13_152 = arith.constant 13 : index
    %c0_153 = arith.constant 0 : index
    %c0_154 = arith.constant 0 : index
    %c0_155 = arith.constant 0 : index
    %92 = vector.load %arg1[%c1_151, %c13_152, %c0_153, %c0_154, %c0_155] : memref<16x16x1x1x24xf32, #tpu.memory_space<vmem>>, vector<1x1x1x1x24xf32>
    %93 = vector.shape_cast %92 : vector<1x1x1x1x24xf32> to vector<1x24xf32>
    %94 = arith.maximumf %91, %93 : vector<1x24xf32>
    %c0_156 = arith.constant 0 : index
    %c6_157 = arith.constant 6 : index
    %c0_158 = arith.constant 0 : index
    %c0_159 = arith.constant 0 : index
    %c0_160 = arith.constant 0 : index
    %95 = vector.load %arg2[%c0_156, %c6_157, %c0_158, %c0_159, %c0_160] : memref<8x8x1x1x24xf32, #tpu.memory_space<vmem>>, vector<1x1x1x1x24xf32>
    %96 = vector.shape_cast %95 : vector<1x1x1x1x24xf32> to vector<1x24xf32>
    %97 = vector.shape_cast %94 : vector<1x24xf32> to vector<1x1x1x1x24xf32>
    tpu.vector_store %arg2[%c0_156, %c6_157, %c0_158, %c0_159, %c0_160], %97 {strides = array<i32>} : memref<8x8x1x1x24xf32, #tpu.memory_space<vmem>>, vector<1x1x1x1x24xf32>,
    %c0_161 = arith.constant 0 : index
    %c14 = arith.constant 14 : index
    %c0_162 = arith.constant 0 : index
    %c0_163 = arith.constant 0 : index
    %c0_164 = arith.constant 0 : index
    %98 = vector.load %arg1[%c0_161, %c14, %c0_162, %c0_163, %c0_164] : memref<16x16x1x1x24xf32, #tpu.memory_space<vmem>>, vector<1x1x1x1x24xf32>
    %99 = vector.shape_cast %98 : vector<1x1x1x1x24xf32> to vector<1x24xf32>
    %c0_165 = arith.constant 0 : index
    %c15 = arith.constant 15 : index
    %c0_166 = arith.constant 0 : index
    %c0_167 = arith.constant 0 : index
    %c0_168 = arith.constant 0 : index
    %100 = vector.load %arg1[%c0_165, %c15, %c0_166, %c0_167, %c0_168] : memref<16x16x1x1x24xf32, #tpu.memory_space<vmem>>, vector<1x1x1x1x24xf32>
    %101 = vector.shape_cast %100 : vector<1x1x1x1x24xf32> to vector<1x24xf32>
    %102 = arith.maximumf %99, %101 : vector<1x24xf32>
    %c1_169 = arith.constant 1 : index
    %c14_170 = arith.constant 14 : index
    %c0_171 = arith.constant 0 : index
    %c0_172 = arith.constant 0 : index
    %c0_173 = arith.constant 0 : index
    %103 = vector.load %arg1[%c1_169, %c14_170, %c0_171, %c0_172, %c0_173] : memref<16x16x1x1x24xf32, #tpu.memory_space<vmem>>, vector<1x1x1x1x24xf32>
    %104 = vector.shape_cast %103 : vector<1x1x1x1x24xf32> to vector<1x24xf32>
    %105 = arith.maximumf %102, %104 : vector<1x24xf32>
    %c1_174 = arith.constant 1 : index
    %c15_175 = arith.constant 15 : index
    %c0_176 = arith.constant 0 : index
    %c0_177 = arith.constant 0 : index
    %c0_178 = arith.constant 0 : index
    %106 = vector.load %arg1[%c1_174, %c15_175, %c0_176, %c0_177, %c0_178] : memref<16x16x1x1x24xf32, #tpu.memory_space<vmem>>, vector<1x1x1x1x24xf32>
    %107 = vector.shape_cast %106 : vector<1x1x1x1x24xf32> to vector<1x24xf32>
    %108 = arith.maximumf %105, %107 : vector<1x24xf32>
    %c0_179 = arith.constant 0 : index
    %c7_180 = arith.constant 7 : index
    %c0_181 = arith.constant 0 : index
    %c0_182 = arith.constant 0 : index
    %c0_183 = arith.constant 0 : index
    %109 = vector.load %arg2[%c0_179, %c7_180, %c0_181, %c0_182, %c0_183] : memref<8x8x1x1x24xf32, #tpu.memory_space<vmem>>, vector<1x1x1x1x24xf32>
    %110 = vector.shape_cast %109 : vector<1x1x1x1x24xf32> to vector<1x24xf32>
    %111 = vector.shape_cast %108 : vector<1x24xf32> to vector<1x1x1x1x24xf32>
    tpu.vector_store %arg2[%c0_179, %c7_180, %c0_181, %c0_182, %c0_183], %111 {strides = array<i32>} : memref<8x8x1x1x24xf32, #tpu.memory_space<vmem>>, vector<1x1x1x1x24xf32>,
    %c2_184 = arith.constant 2 : index
    %c0_185 = arith.constant 0 : index
    %c0_186 = arith.constant 0 : index
    %c0_187 = arith.constant 0 : index
    %c0_188 = arith.constant 0 : index
    %112 = vector.load %arg1[%c2_184, %c0_185, %c0_186, %c0_187, %c0_188] : memref<16x16x1x1x24xf32, #tpu.memory_space<vmem>>, vector<1x1x1x1x24xf32>
    %113 = vector.shape_cast %112 : vector<1x1x1x1x24xf32> to vector<1x24xf32>
    %c2_189 = arith.constant 2 : index
    %c1_190 = arith.constant 1 : index
    %c0_191 = arith.constant 0 : index
    %c0_192 = arith.constant 0 : index
    %c0_193 = arith.constant 0 : index
    %114 = vector.load %arg1[%c2_189, %c1_190, %c0_191, %c0_192, %c0_193] : memref<16x16x1x1x24xf32, #tpu.memory_space<vmem>>, vector<1x1x1x1x24xf32>
    %115 = vector.shape_cast %114 : vector<1x1x1x1x24xf32> to vector<1x24xf32>
    %116 = arith.maximumf %113, %115 : vector<1x24xf32>
    %c3_194 = arith.constant 3 : index
    %c0_195 = arith.constant 0 : index
    %c0_196 = arith.constant 0 : index
    %c0_197 = arith.constant 0 : index
    %c0_198 = arith.constant 0 : index
    %117 = vector.load %arg1[%c3_194, %c0_195, %c0_196, %c0_197, %c0_198] : memref<16x16x1x1x24xf32, #tpu.memory_space<vmem>>, vector<1x1x1x1x24xf32>
    %118 = vector.shape_cast %117 : vector<1x1x1x1x24xf32> to vector<1x24xf32>
    %119 = arith.maximumf %116, %118 : vector<1x24xf32>
    %c3_199 = arith.constant 3 : index
    %c1_200 = arith.constant 1 : index
    %c0_201 = arith.constant 0 : index
    %c0_202 = arith.constant 0 : index
    %c0_203 = arith.constant 0 : index
    %120 = vector.load %arg1[%c3_199, %c1_200, %c0_201, %c0_202, %c0_203] : memref<16x16x1x1x24xf32, #tpu.memory_space<vmem>>, vector<1x1x1x1x24xf32>
    %121 = vector.shape_cast %120 : vector<1x1x1x1x24xf32> to vector<1x24xf32>
    %122 = arith.maximumf %119, %121 : vector<1x24xf32>
    %c1_204 = arith.constant 1 : index
    %c0_205 = arith.constant 0 : index
    %c0_206 = arith.constant 0 : index
    %c0_207 = arith.constant 0 : index
    %c0_208 = arith.constant 0 : index
    %123 = vector.load %arg2[%c1_204, %c0_205, %c0_206, %c0_207, %c0_208] : memref<8x8x1x1x24xf32, #tpu.memory_space<vmem>>, vector<1x1x1x1x24xf32>
    %124 = vector.shape_cast %123 : vector<1x1x1x1x24xf32> to vector<1x24xf32>
    %125 = vector.shape_cast %122 : vector<1x24xf32> to vector<1x1x1x1x24xf32>
    tpu.vector_store %arg2[%c1_204, %c0_205, %c0_206, %c0_207, %c0_208], %125 {strides = array<i32>} : memref<8x8x1x1x24xf32, #tpu.memory_space<vmem>>, vector<1x1x1x1x24xf32>,
    %c2_209 = arith.constant 2 : index
    %c2_210 = arith.constant 2 : index
    %c0_211 = arith.constant 0 : index
    %c0_212 = arith.constant 0 : index
    %c0_213 = arith.constant 0 : index
    %126 = vector.load %arg1[%c2_209, %c2_210, %c0_211, %c0_212, %c0_213] : memref<16x16x1x1x24xf32, #tpu.memory_space<vmem>>, vector<1x1x1x1x24xf32>
    %127 = vector.shape_cast %126 : vector<1x1x1x1x24xf32> to vector<1x24xf32>
    %c2_214 = arith.constant 2 : index
    %c3_215 = arith.constant 3 : index
    %c0_216 = arith.constant 0 : index
    %c0_217 = arith.constant 0 : index
    %c0_218 = arith.constant 0 : index
    %128 = vector.load %arg1[%c2_214, %c3_215, %c0_216, %c0_217, %c0_218] : memref<16x16x1x1x24xf32, #tpu.memory_space<vmem>>, vector<1x1x1x1x24xf32>
    %129 = vector.shape_cast %128 : vector<1x1x1x1x24xf32> to vector<1x24xf32>
    %130 = arith.maximumf %127, %129 : vector<1x24xf32>
    %c3_219 = arith.constant 3 : index
    %c2_220 = arith.constant 2 : index
    %c0_221 = arith.constant 0 : index
    %c0_222 = arith.constant 0 : index
    %c0_223 = arith.constant 0 : index
    %131 = vector.load %arg1[%c3_219, %c2_220, %c0_221, %c0_222, %c0_223] : memref<16x16x1x1x24xf32, #tpu.memory_space<vmem>>, vector<1x1x1x1x24xf32>
    %132 = vector.shape_cast %131 : vector<1x1x1x1x24xf32> to vector<1x24xf32>
    %133 = arith.maximumf %130, %132 : vector<1x24xf32>
    %c3_224 = arith.constant 3 : index
    %c3_225 = arith.constant 3 : index
    %c0_226 = arith.constant 0 : index
    %c0_227 = arith.constant 0 : index
    %c0_228 = arith.constant 0 : index
    %134 = vector.load %arg1[%c3_224, %c3_225, %c0_226, %c0_227, %c0_228] : memref<16x16x1x1x24xf32, #tpu.memory_space<vmem>>, vector<1x1x1x1x24xf32>
    %135 = vector.shape_cast %134 : vector<1x1x1x1x24xf32> to vector<1x24xf32>
    %136 = arith.maximumf %133, %135 : vector<1x24xf32>
    %c1_229 = arith.constant 1 : index
    %c1_230 = arith.constant 1 : index
    %c0_231 = arith.constant 0 : index
    %c0_232 = arith.constant 0 : index
    %c0_233 = arith.constant 0 : index
    %137 = vector.load %arg2[%c1_229, %c1_230, %c0_231, %c0_232, %c0_233] : memref<8x8x1x1x24xf32, #tpu.memory_space<vmem>>, vector<1x1x1x1x24xf32>
    %138 = vector.shape_cast %137 : vector<1x1x1x1x24xf32> to vector<1x24xf32>
    %139 = vector.shape_cast %136 : vector<1x24xf32> to vector<1x1x1x1x24xf32>
    tpu.vector_store %arg2[%c1_229, %c1_230, %c0_231, %c0_232, %c0_233], %139 {strides = array<i32>} : memref<8x8x1x1x24xf32, #tpu.memory_space<vmem>>, vector<1x1x1x1x24xf32>,
    %c2_234 = arith.constant 2 : index
    %c4_235 = arith.constant 4 : index
    %c0_236 = arith.constant 0 : index
    %c0_237 = arith.constant 0 : index
    %c0_238 = arith.constant 0 : index
    %140 = vector.load %arg1[%c2_234, %c4_235, %c0_236, %c0_237, %c0_238] : memref<16x16x1x1x24xf32, #tpu.memory_space<vmem>>, vector<1x1x1x1x24xf32>
    %141 = vector.shape_cast %140 : vector<1x1x1x1x24xf32> to vector<1x24xf32>
    %c2_239 = arith.constant 2 : index
    %c5_240 = arith.constant 5 : index
    %c0_241 = arith.constant 0 : index
    %c0_242 = arith.constant 0 : index
    %c0_243 = arith.constant 0 : index
    %142 = vector.load %arg1[%c2_239, %c5_240, %c0_241, %c0_242, %c0_243] : memref<16x16x1x1x24xf32, #tpu.memory_space<vmem>>, vector<1x1x1x1x24xf32>
    %143 = vector.shape_cast %142 : vector<1x1x1x1x24xf32> to vector<1x24xf32>
    %144 = arith.maximumf %141, %143 : vector<1x24xf32>
    %c3_244 = arith.constant 3 : index
    %c4_245 = arith.constant 4 : index
    %c0_246 = arith.constant 0 : index
    %c0_247 = arith.constant 0 : index
    %c0_248 = arith.constant 0 : index
    %145 = vector.load %arg1[%c3_244, %c4_245, %c0_246, %c0_247, %c0_248] : memref<16x16x1x1x24xf32, #tpu.memory_space<vmem>>, vector<1x1x1x1x24xf32>
    %146 = vector.shape_cast %145 : vector<1x1x1x1x24xf32> to vector<1x24xf32>
    %147 = arith.maximumf %144, %146 : vector<1x24xf32>
    %c3_249 = arith.constant 3 : index
    %c5_250 = arith.constant 5 : index
    %c0_251 = arith.constant 0 : index
    %c0_252 = arith.constant 0 : index
    %c0_253 = arith.constant 0 : index
    %148 = vector.load %arg1[%c3_249, %c5_250, %c0_251, %c0_252, %c0_253] : memref<16x16x1x1x24xf32, #tpu.memory_space<vmem>>, vector<1x1x1x1x24xf32>
    %149 = vector.shape_cast %148 : vector<1x1x1x1x24xf32> to vector<1x24xf32>
    %150 = arith.maximumf %147, %149 : vector<1x24xf32>
    %c1_254 = arith.constant 1 : index
    %c2_255 = arith.constant 2 : index
    %c0_256 = arith.constant 0 : index
    %c0_257 = arith.constant 0 : index
    %c0_258 = arith.constant 0 : index
    %151 = vector.load %arg2[%c1_254, %c2_255, %c0_256, %c0_257, %c0_258] : memref<8x8x1x1x24xf32, #tpu.memory_space<vmem>>, vector<1x1x1x1x24xf32>
    %152 = vector.shape_cast %151 : vector<1x1x1x1x24xf32> to vector<1x24xf32>
    %153 = vector.shape_cast %150 : vector<1x24xf32> to vector<1x1x1x1x24xf32>
    tpu.vector_store %arg2[%c1_254, %c2_255, %c0_256, %c0_257, %c0_258], %153 {strides = array<i32>} : memref<8x8x1x1x24xf32, #tpu.memory_space<vmem>>, vector<1x1x1x1x24xf32>,
    %c2_259 = arith.constant 2 : index
    %c6_260 = arith.constant 6 : index
    %c0_261 = arith.constant 0 : index
    %c0_262 = arith.constant 0 : index
    %c0_263 = arith.constant 0 : index
    %154 = vector.load %arg1[%c2_259, %c6_260, %c0_261, %c0_262, %c0_263] : memref<16x16x1x1x24xf32, #tpu.memory_space<vmem>>, vector<1x1x1x1x24xf32>
    %155 = vector.shape_cast %154 : vector<1x1x1x1x24xf32> to vector<1x24xf32>
    %c2_264 = arith.constant 2 : index
    %c7_265 = arith.constant 7 : index
    %c0_266 = arith.constant 0 : index
    %c0_267 = arith.constant 0 : index
    %c0_268 = arith.constant 0 : index
    %156 = vector.load %arg1[%c2_264, %c7_265, %c0_266, %c0_267, %c0_268] : memref<16x16x1x1x24xf32, #tpu.memory_space<vmem>>, vector<1x1x1x1x24xf32>
    %157 = vector.shape_cast %156 : vector<1x1x1x1x24xf32> to vector<1x24xf32>
    %158 = arith.maximumf %155, %157 : vector<1x24xf32>
    %c3_269 = arith.constant 3 : index
    %c6_270 = arith.constant 6 : index
    %c0_271 = arith.constant 0 : index
    %c0_272 = arith.constant 0 : index
    %c0_273 = arith.constant 0 : index
    %159 = vector.load %arg1[%c3_269, %c6_270, %c0_271, %c0_272, %c0_273] : memref<16x16x1x1x24xf32, #tpu.memory_space<vmem>>, vector<1x1x1x1x24xf32>
    %160 = vector.shape_cast %159 : vector<1x1x1x1x24xf32> to vector<1x24xf32>
    %161 = arith.maximumf %158, %160 : vector<1x24xf32>
    %c3_274 = arith.constant 3 : index
    %c7_275 = arith.constant 7 : index
    %c0_276 = arith.constant 0 : index
    %c0_277 = arith.constant 0 : index
    %c0_278 = arith.constant 0 : index
    %162 = vector.load %arg1[%c3_274, %c7_275, %c0_276, %c0_277, %c0_278] : memref<16x16x1x1x24xf32, #tpu.memory_space<vmem>>, vector<1x1x1x1x24xf32>
    %163 = vector.shape_cast %162 : vector<1x1x1x1x24xf32> to vector<1x24xf32>
    %164 = arith.maximumf %161, %163 : vector<1x24xf32>
    %c1_279 = arith.constant 1 : index
    %c3_280 = arith.constant 3 : index
    %c0_281 = arith.constant 0 : index
    %c0_282 = arith.constant 0 : index
    %c0_283 = arith.constant 0 : index
    %165 = vector.load %arg2[%c1_279, %c3_280, %c0_281, %c0_282, %c0_283] : memref<8x8x1x1x24xf32, #tpu.memory_space<vmem>>, vector<1x1x1x1x24xf32>
    %166 = vector.shape_cast %165 : vector<1x1x1x1x24xf32> to vector<1x24xf32>
    %167 = vector.shape_cast %164 : vector<1x24xf32> to vector<1x1x1x1x24xf32>
    tpu.vector_store %arg2[%c1_279, %c3_280, %c0_281, %c0_282, %c0_283], %167 {strides = array<i32>} : memref<8x8x1x1x24xf32, #tpu.memory_space<vmem>>, vector<1x1x1x1x24xf32>,
    %c2_284 = arith.constant 2 : index
    %c8_285 = arith.constant 8 : index
    %c0_286 = arith.constant 0 : index
    %c0_287 = arith.constant 0 : index
    %c0_288 = arith.constant 0 : index
    %168 = vector.load %arg1[%c2_284, %c8_285, %c0_286, %c0_287, %c0_288] : memref<16x16x1x1x24xf32, #tpu.memory_space<vmem>>, vector<1x1x1x1x24xf32>
    %169 = vector.shape_cast %168 : vector<1x1x1x1x24xf32> to vector<1x24xf32>
    %c2_289 = arith.constant 2 : index
    %c9_290 = arith.constant 9 : index
    %c0_291 = arith.constant 0 : index
    %c0_292 = arith.constant 0 : index
    %c0_293 = arith.constant 0 : index
    %170 = vector.load %arg1[%c2_289, %c9_290, %c0_291, %c0_292, %c0_293] : memref<16x16x1x1x24xf32, #tpu.memory_space<vmem>>, vector<1x1x1x1x24xf32>
    %171 = vector.shape_cast %170 : vector<1x1x1x1x24xf32> to vector<1x24xf32>
    %172 = arith.maximumf %169, %171 : vector<1x24xf32>
    %c3_294 = arith.constant 3 : index
    %c8_295 = arith.constant 8 : index
    %c0_296 = arith.constant 0 : index
    %c0_297 = arith.constant 0 : index
    %c0_298 = arith.constant 0 : index
    %173 = vector.load %arg1[%c3_294, %c8_295, %c0_296, %c0_297, %c0_298] : memref<16x16x1x1x24xf32, #tpu.memory_space<vmem>>, vector<1x1x1x1x24xf32>
    %174 = vector.shape_cast %173 : vector<1x1x1x1x24xf32> to vector<1x24xf32>
    %175 = arith.maximumf %172, %174 : vector<1x24xf32>
    %c3_299 = arith.constant 3 : index
    %c9_300 = arith.constant 9 : index
    %c0_301 = arith.constant 0 : index
    %c0_302 = arith.constant 0 : index
    %c0_303 = arith.constant 0 : index
    %176 = vector.load %arg1[%c3_299, %c9_300, %c0_301, %c0_302, %c0_303] : memref<16x16x1x1x24xf32, #tpu.memory_space<vmem>>, vector<1x1x1x1x24xf32>
    %177 = vector.shape_cast %176 : vector<1x1x1x1x24xf32> to vector<1x24xf32>
    %178 = arith.maximumf %175, %177 : vector<1x24xf32>
    %c1_304 = arith.constant 1 : index
    %c4_305 = arith.constant 4 : index
    %c0_306 = arith.constant 0 : index
    %c0_307 = arith.constant 0 : index
    %c0_308 = arith.constant 0 : index
    %179 = vector.load %arg2[%c1_304, %c4_305, %c0_306, %c0_307, %c0_308] : memref<8x8x1x1x24xf32, #tpu.memory_space<vmem>>, vector<1x1x1x1x24xf32>
    %180 = vector.shape_cast %179 : vector<1x1x1x1x24xf32> to vector<1x24xf32>
    %181 = vector.shape_cast %178 : vector<1x24xf32> to vector<1x1x1x1x24xf32>
    tpu.vector_store %arg2[%c1_304, %c4_305, %c0_306, %c0_307, %c0_308], %181 {strides = array<i32>} : memref<8x8x1x1x24xf32, #tpu.memory_space<vmem>>, vector<1x1x1x1x24xf32>,
    %c2_309 = arith.constant 2 : index
    %c10_310 = arith.constant 10 : index
    %c0_311 = arith.constant 0 : index
    %c0_312 = arith.constant 0 : index
    %c0_313 = arith.constant 0 : index
    %182 = vector.load %arg1[%c2_309, %c10_310, %c0_311, %c0_312, %c0_313] : memref<16x16x1x1x24xf32, #tpu.memory_space<vmem>>, vector<1x1x1x1x24xf32>
    %183 = vector.shape_cast %182 : vector<1x1x1x1x24xf32> to vector<1x24xf32>
    %c2_314 = arith.constant 2 : index
    %c11_315 = arith.constant 11 : index
    %c0_316 = arith.constant 0 : index
    %c0_317 = arith.constant 0 : index
    %c0_318 = arith.constant 0 : index
    %184 = vector.load %arg1[%c2_314, %c11_315, %c0_316, %c0_317, %c0_318] : memref<16x16x1x1x24xf32, #tpu.memory_space<vmem>>, vector<1x1x1x1x24xf32>
    %185 = vector.shape_cast %184 : vector<1x1x1x1x24xf32> to vector<1x24xf32>
    %186 = arith.maximumf %183, %185 : vector<1x24xf32>
    %c3_319 = arith.constant 3 : index
    %c10_320 = arith.constant 10 : index
    %c0_321 = arith.constant 0 : index
    %c0_322 = arith.constant 0 : index
    %c0_323 = arith.constant 0 : index
    %187 = vector.load %arg1[%c3_319, %c10_320, %c0_321, %c0_322, %c0_323] : memref<16x16x1x1x24xf32, #tpu.memory_space<vmem>>, vector<1x1x1x1x24xf32>
    %188 = vector.shape_cast %187 : vector<1x1x1x1x24xf32> to vector<1x24xf32>
    %189 = arith.maximumf %186, %188 : vector<1x24xf32>
    %c3_324 = arith.constant 3 : index
    %c11_325 = arith.constant 11 : index
    %c0_326 = arith.constant 0 : index
    %c0_327 = arith.constant 0 : index
    %c0_328 = arith.constant 0 : index
    %190 = vector.load %arg1[%c3_324, %c11_325, %c0_326, %c0_327, %c0_328] : memref<16x16x1x1x24xf32, #tpu.memory_space<vmem>>, vector<1x1x1x1x24xf32>
    %191 = vector.shape_cast %190 : vector<1x1x1x1x24xf32> to vector<1x24xf32>
    %192 = arith.maximumf %189, %191 : vector<1x24xf32>
    %c1_329 = arith.constant 1 : index
    %c5_330 = arith.constant 5 : index
    %c0_331 = arith.constant 0 : index
    %c0_332 = arith.constant 0 : index
    %c0_333 = arith.constant 0 : index
    %193 = vector.load %arg2[%c1_329, %c5_330, %c0_331, %c0_332, %c0_333] : memref<8x8x1x1x24xf32, #tpu.memory_space<vmem>>, vector<1x1x1x1x24xf32>
    %194 = vector.shape_cast %193 : vector<1x1x1x1x24xf32> to vector<1x24xf32>
    %195 = vector.shape_cast %192 : vector<1x24xf32> to vector<1x1x1x1x24xf32>
    tpu.vector_store %arg2[%c1_329, %c5_330, %c0_331, %c0_332, %c0_333], %195 {strides = array<i32>} : memref<8x8x1x1x24xf32, #tpu.memory_space<vmem>>, vector<1x1x1x1x24xf32>,
    %c2_334 = arith.constant 2 : index
    %c12_335 = arith.constant 12 : index
    %c0_336 = arith.constant 0 : index
    %c0_337 = arith.constant 0 : index
    %c0_338 = arith.constant 0 : index
    %196 = vector.load %arg1[%c2_334, %c12_335, %c0_336, %c0_337, %c0_338] : memref<16x16x1x1x24xf32, #tpu.memory_space<vmem>>, vector<1x1x1x1x24xf32>
    %197 = vector.shape_cast %196 : vector<1x1x1x1x24xf32> to vector<1x24xf32>
    %c2_339 = arith.constant 2 : index
    %c13_340 = arith.constant 13 : index
    %c0_341 = arith.constant 0 : index
    %c0_342 = arith.constant 0 : index
    %c0_343 = arith.constant 0 : index
    %198 = vector.load %arg1[%c2_339, %c13_340, %c0_341, %c0_342, %c0_343] : memref<16x16x1x1x24xf32, #tpu.memory_space<vmem>>, vector<1x1x1x1x24xf32>
    %199 = vector.shape_cast %198 : vector<1x1x1x1x24xf32> to vector<1x24xf32>
    %200 = arith.maximumf %197, %199 : vector<1x24xf32>
    %c3_344 = arith.constant 3 : index
    %c12_345 = arith.constant 12 : index
    %c0_346 = arith.constant 0 : index
    %c0_347 = arith.constant 0 : index
    %c0_348 = arith.constant 0 : index
    %201 = vector.load %arg1[%c3_344, %c12_345, %c0_346, %c0_347, %c0_348] : memref<16x16x1x1x24xf32, #tpu.memory_space<vmem>>, vector<1x1x1x1x24xf32>
    %202 = vector.shape_cast %201 : vector<1x1x1x1x24xf32> to vector<1x24xf32>
    %203 = arith.maximumf %200, %202 : vector<1x24xf32>
    %c3_349 = arith.constant 3 : index
    %c13_350 = arith.constant 13 : index
    %c0_351 = arith.constant 0 : index
    %c0_352 = arith.constant 0 : index
    %c0_353 = arith.constant 0 : index
    %204 = vector.load %arg1[%c3_349, %c13_350, %c0_351, %c0_352, %c0_353] : memref<16x16x1x1x24xf32, #tpu.memory_space<vmem>>, vector<1x1x1x1x24xf32>
    %205 = vector.shape_cast %204 : vector<1x1x1x1x24xf32> to vector<1x24xf32>
    %206 = arith.maximumf %203, %205 : vector<1x24xf32>
    %c1_354 = arith.constant 1 : index
    %c6_355 = arith.constant 6 : index
    %c0_356 = arith.constant 0 : index
    %c0_357 = arith.constant 0 : index
    %c0_358 = arith.constant 0 : index
    %207 = vector.load %arg2[%c1_354, %c6_355, %c0_356, %c0_357, %c0_358] : memref<8x8x1x1x24xf32, #tpu.memory_space<vmem>>, vector<1x1x1x1x24xf32>
    %208 = vector.shape_cast %207 : vector<1x1x1x1x24xf32> to vector<1x24xf32>
    %209 = vector.shape_cast %206 : vector<1x24xf32> to vector<1x1x1x1x24xf32>
    tpu.vector_store %arg2[%c1_354, %c6_355, %c0_356, %c0_357, %c0_358], %209 {strides = array<i32>} : memref<8x8x1x1x24xf32, #tpu.memory_space<vmem>>, vector<1x1x1x1x24xf32>,
    %c2_359 = arith.constant 2 : index
    %c14_360 = arith.constant 14 : index
    %c0_361 = arith.constant 0 : index
    %c0_362 = arith.constant 0 : index
    %c0_363 = arith.constant 0 : index
    %210 = vector.load %arg1[%c2_359, %c14_360, %c0_361, %c0_362, %c0_363] : memref<16x16x1x1x24xf32, #tpu.memory_space<vmem>>, vector<1x1x1x1x24xf32>
    %211 = vector.shape_cast %210 : vector<1x1x1x1x24xf32> to vector<1x24xf32>
    %c2_364 = arith.constant 2 : index
    %c15_365 = arith.constant 15 : index
    %c0_366 = arith.constant 0 : index
    %c0_367 = arith.constant 0 : index
    %c0_368 = arith.constant 0 : index
    %212 = vector.load %arg1[%c2_364, %c15_365, %c0_366, %c0_367, %c0_368] : memref<16x16x1x1x24xf32, #tpu.memory_space<vmem>>, vector<1x1x1x1x24xf32>
    %213 = vector.shape_cast %212 : vector<1x1x1x1x24xf32> to vector<1x24xf32>
    %214 = arith.maximumf %211, %213 : vector<1x24xf32>
    %c3_369 = arith.constant 3 : index
    %c14_370 = arith.constant 14 : index
    %c0_371 = arith.constant 0 : index
    %c0_372 = arith.constant 0 : index
    %c0_373 = arith.constant 0 : index
    %215 = vector.load %arg1[%c3_369, %c14_370, %c0_371, %c0_372, %c0_373] : memref<16x16x1x1x24xf32, #tpu.memory_space<vmem>>, vector<1x1x1x1x24xf32>
    %216 = vector.shape_cast %215 : vector<1x1x1x1x24xf32> to vector<1x24xf32>
    %217 = arith.maximumf %214, %216 : vector<1x24xf32>
    %c3_374 = arith.constant 3 : index
    %c15_375 = arith.constant 15 : index
    %c0_376 = arith.constant 0 : index
    %c0_377 = arith.constant 0 : index
    %c0_378 = arith.constant 0 : index
    %218 = vector.load %arg1[%c3_374, %c15_375, %c0_376, %c0_377, %c0_378] : memref<16x16x1x1x24xf32, #tpu.memory_space<vmem>>, vector<1x1x1x1x24xf32>
    %219 = vector.shape_cast %218 : vector<1x1x1x1x24xf32> to vector<1x24xf32>
    %220 = arith.maximumf %217, %219 : vector<1x24xf32>
    %c1_379 = arith.constant 1 : index
    %c7_380 = arith.constant 7 : index
    %c0_381 = arith.constant 0 : index
    %c0_382 = arith.constant 0 : index
    %c0_383 = arith.constant 0 : index
    %221 = vector.load %arg2[%c1_379, %c7_380, %c0_381, %c0_382, %c0_383] : memref<8x8x1x1x24xf32, #tpu.memory_space<vmem>>, vector<1x1x1x1x24xf32>
    %222 = vector.shape_cast %221 : vector<1x1x1x1x24xf32> to vector<1x24xf32>
    %223 = vector.shape_cast %220 : vector<1x24xf32> to vector<1x1x1x1x24xf32>
    tpu.vector_store %arg2[%c1_379, %c7_380, %c0_381, %c0_382, %c0_383], %223 {strides = array<i32>} : memref<8x8x1x1x24xf32, #tpu.memory_space<vmem>>, vector<1x1x1x1x24xf32>,
    %c4_384 = arith.constant 4 : index
    %c0_385 = arith.constant 0 : index
    %c0_386 = arith.constant 0 : index
    %c0_387 = arith.constant 0 : index
    %c0_388 = arith.constant 0 : index
    %224 = vector.load %arg1[%c4_384, %c0_385, %c0_386, %c0_387, %c0_388] : memref<16x16x1x1x24xf32, #tpu.memory_space<vmem>>, vector<1x1x1x1x24xf32>
    %225 = vector.shape_cast %224 : vector<1x1x1x1x24xf32> to vector<1x24xf32>
    %c4_389 = arith.constant 4 : index
    %c1_390 = arith.constant 1 : index
    %c0_391 = arith.constant 0 : index
    %c0_392 = arith.constant 0 : index
    %c0_393 = arith.constant 0 : index
    %226 = vector.load %arg1[%c4_389, %c1_390, %c0_391, %c0_392, %c0_393] : memref<16x16x1x1x24xf32, #tpu.memory_space<vmem>>, vector<1x1x1x1x24xf32>
    %227 = vector.shape_cast %226 : vector<1x1x1x1x24xf32> to vector<1x24xf32>
    %228 = arith.maximumf %225, %227 : vector<1x24xf32>
    %c5_394 = arith.constant 5 : index
    %c0_395 = arith.constant 0 : index
    %c0_396 = arith.constant 0 : index
    %c0_397 = arith.constant 0 : index
    %c0_398 = arith.constant 0 : index
    %229 = vector.load %arg1[%c5_394, %c0_395, %c0_396, %c0_397, %c0_398] : memref<16x16x1x1x24xf32, #tpu.memory_space<vmem>>, vector<1x1x1x1x24xf32>
    %230 = vector.shape_cast %229 : vector<1x1x1x1x24xf32> to vector<1x24xf32>
    %231 = arith.maximumf %228, %230 : vector<1x24xf32>
    %c5_399 = arith.constant 5 : index
    %c1_400 = arith.constant 1 : index
    %c0_401 = arith.constant 0 : index
    %c0_402 = arith.constant 0 : index
    %c0_403 = arith.constant 0 : index
    %232 = vector.load %arg1[%c5_399, %c1_400, %c0_401, %c0_402, %c0_403] : memref<16x16x1x1x24xf32, #tpu.memory_space<vmem>>, vector<1x1x1x1x24xf32>
    %233 = vector.shape_cast %232 : vector<1x1x1x1x24xf32> to vector<1x24xf32>
    %234 = arith.maximumf %231, %233 : vector<1x24xf32>
    %c2_404 = arith.constant 2 : index
    %c0_405 = arith.constant 0 : index
    %c0_406 = arith.constant 0 : index
    %c0_407 = arith.constant 0 : index
    %c0_408 = arith.constant 0 : index
    %235 = vector.load %arg2[%c2_404, %c0_405, %c0_406, %c0_407, %c0_408] : memref<8x8x1x1x24xf32, #tpu.memory_space<vmem>>, vector<1x1x1x1x24xf32>
    %236 = vector.shape_cast %235 : vector<1x1x1x1x24xf32> to vector<1x24xf32>
    %237 = vector.shape_cast %234 : vector<1x24xf32> to vector<1x1x1x1x24xf32>
    tpu.vector_store %arg2[%c2_404, %c0_405, %c0_406, %c0_407, %c0_408], %237 {strides = array<i32>} : memref<8x8x1x1x24xf32, #tpu.memory_space<vmem>>, vector<1x1x1x1x24xf32>,
    %c4_409 = arith.constant 4 : index
    %c2_410 = arith.constant 2 : index
    %c0_411 = arith.constant 0 : index
    %c0_412 = arith.constant 0 : index
    %c0_413 = arith.constant 0 : index
    %238 = vector.load %arg1[%c4_409, %c2_410, %c0_411, %c0_412, %c0_413] : memref<16x16x1x1x24xf32, #tpu.memory_space<vmem>>, vector<1x1x1x1x24xf32>
    %239 = vector.shape_cast %238 : vector<1x1x1x1x24xf32> to vector<1x24xf32>
    %c4_414 = arith.constant 4 : index
    %c3_415 = arith.constant 3 : index
    %c0_416 = arith.constant 0 : index
    %c0_417 = arith.constant 0 : index
    %c0_418 = arith.constant 0 : index
    %240 = vector.load %arg1[%c4_414, %c3_415, %c0_416, %c0_417, %c0_418] : memref<16x16x1x1x24xf32, #tpu.memory_space<vmem>>, vector<1x1x1x1x24xf32>
    %241 = vector.shape_cast %240 : vector<1x1x1x1x24xf32> to vector<1x24xf32>
    %242 = arith.maximumf %239, %241 : vector<1x24xf32>
    %c5_419 = arith.constant 5 : index
    %c2_420 = arith.constant 2 : index
    %c0_421 = arith.constant 0 : index
    %c0_422 = arith.constant 0 : index
    %c0_423 = arith.constant 0 : index
    %243 = vector.load %arg1[%c5_419, %c2_420, %c0_421, %c0_422, %c0_423] : memref<16x16x1x1x24xf32, #tpu.memory_space<vmem>>, vector<1x1x1x1x24xf32>
    %244 = vector.shape_cast %243 : vector<1x1x1x1x24xf32> to vector<1x24xf32>
    %245 = arith.maximumf %242, %244 : vector<1x24xf32>
    %c5_424 = arith.constant 5 : index
    %c3_425 = arith.constant 3 : index
    %c0_426 = arith.constant 0 : index
    %c0_427 = arith.constant 0 : index
    %c0_428 = arith.constant 0 : index
    %246 = vector.load %arg1[%c5_424, %c3_425, %c0_426, %c0_427, %c0_428] : memref<16x16x1x1x24xf32, #tpu.memory_space<vmem>>, vector<1x1x1x1x24xf32>
    %247 = vector.shape_cast %246 : vector<1x1x1x1x24xf32> to vector<1x24xf32>
    %248 = arith.maximumf %245, %247 : vector<1x24xf32>
    %c2_429 = arith.constant 2 : index
    %c1_430 = arith.constant 1 : index
    %c0_431 = arith.constant 0 : index
    %c0_432 = arith.constant 0 : index
    %c0_433 = arith.constant 0 : index
    %249 = vector.load %arg2[%c2_429, %c1_430, %c0_431, %c0_432, %c0_433] : memref<8x8x1x1x24xf32, #tpu.memory_space<vmem>>, vector<1x1x1x1x24xf32>
    %250 = vector.shape_cast %249 : vector<1x1x1x1x24xf32> to vector<1x24xf32>
    %251 = vector.shape_cast %248 : vector<1x24xf32> to vector<1x1x1x1x24xf32>
    tpu.vector_store %arg2[%c2_429, %c1_430, %c0_431, %c0_432, %c0_433], %251 {strides = array<i32>} : memref<8x8x1x1x24xf32, #tpu.memory_space<vmem>>, vector<1x1x1x1x24xf32>,
    %c4_434 = arith.constant 4 : index
    %c4_435 = arith.constant 4 : index
    %c0_436 = arith.constant 0 : index
    %c0_437 = arith.constant 0 : index
    %c0_438 = arith.constant 0 : index
    %252 = vector.load %arg1[%c4_434, %c4_435, %c0_436, %c0_437, %c0_438] : memref<16x16x1x1x24xf32, #tpu.memory_space<vmem>>, vector<1x1x1x1x24xf32>
    %253 = vector.shape_cast %252 : vector<1x1x1x1x24xf32> to vector<1x24xf32>
    %c4_439 = arith.constant 4 : index
    %c5_440 = arith.constant 5 : index
    %c0_441 = arith.constant 0 : index
    %c0_442 = arith.constant 0 : index
    %c0_443 = arith.constant 0 : index
    %254 = vector.load %arg1[%c4_439, %c5_440, %c0_441, %c0_442, %c0_443] : memref<16x16x1x1x24xf32, #tpu.memory_space<vmem>>, vector<1x1x1x1x24xf32>
    %255 = vector.shape_cast %254 : vector<1x1x1x1x24xf32> to vector<1x24xf32>
    %256 = arith.maximumf %253, %255 : vector<1x24xf32>
    %c5_444 = arith.constant 5 : index
    %c4_445 = arith.constant 4 : index
    %c0_446 = arith.constant 0 : index
    %c0_447 = arith.constant 0 : index
    %c0_448 = arith.constant 0 : index
    %257 = vector.load %arg1[%c5_444, %c4_445, %c0_446, %c0_447, %c0_448] : memref<16x16x1x1x24xf32, #tpu.memory_space<vmem>>, vector<1x1x1x1x24xf32>
    %258 = vector.shape_cast %257 : vector<1x1x1x1x24xf32> to vector<1x24xf32>
    %259 = arith.maximumf %256, %258 : vector<1x24xf32>
    %c5_449 = arith.constant 5 : index
    %c5_450 = arith.constant 5 : index
    %c0_451 = arith.constant 0 : index
    %c0_452 = arith.constant 0 : index
    %c0_453 = arith.constant 0 : index
    %260 = vector.load %arg1[%c5_449, %c5_450, %c0_451, %c0_452, %c0_453] : memref<16x16x1x1x24xf32, #tpu.memory_space<vmem>>, vector<1x1x1x1x24xf32>
    %261 = vector.shape_cast %260 : vector<1x1x1x1x24xf32> to vector<1x24xf32>
    %262 = arith.maximumf %259, %261 : vector<1x24xf32>
    %c2_454 = arith.constant 2 : index
    %c2_455 = arith.constant 2 : index
    %c0_456 = arith.constant 0 : index
    %c0_457 = arith.constant 0 : index
    %c0_458 = arith.constant 0 : index
    %263 = vector.load %arg2[%c2_454, %c2_455, %c0_456, %c0_457, %c0_458] : memref<8x8x1x1x24xf32, #tpu.memory_space<vmem>>, vector<1x1x1x1x24xf32>
    %264 = vector.shape_cast %263 : vector<1x1x1x1x24xf32> to vector<1x24xf32>
    %265 = vector.shape_cast %262 : vector<1x24xf32> to vector<1x1x1x1x24xf32>
    tpu.vector_store %arg2[%c2_454, %c2_455, %c0_456, %c0_457, %c0_458], %265 {strides = array<i32>} : memref<8x8x1x1x24xf32, #tpu.memory_space<vmem>>, vector<1x1x1x1x24xf32>,
    %c4_459 = arith.constant 4 : index
    %c6_460 = arith.constant 6 : index
    %c0_461 = arith.constant 0 : index
    %c0_462 = arith.constant 0 : index
    %c0_463 = arith.constant 0 : index
    %266 = vector.load %arg1[%c4_459, %c6_460, %c0_461, %c0_462, %c0_463] : memref<16x16x1x1x24xf32, #tpu.memory_space<vmem>>, vector<1x1x1x1x24xf32>
    %267 = vector.shape_cast %266 : vector<1x1x1x1x24xf32> to vector<1x24xf32>
    %c4_464 = arith.constant 4 : index
    %c7_465 = arith.constant 7 : index
    %c0_466 = arith.constant 0 : index
    %c0_467 = arith.constant 0 : index
    %c0_468 = arith.constant 0 : index
    %268 = vector.load %arg1[%c4_464, %c7_465, %c0_466, %c0_467, %c0_468] : memref<16x16x1x1x24xf32, #tpu.memory_space<vmem>>, vector<1x1x1x1x24xf32>
    %269 = vector.shape_cast %268 : vector<1x1x1x1x24xf32> to vector<1x24xf32>
    %270 = arith.maximumf %267, %269 : vector<1x24xf32>
    %c5_469 = arith.constant 5 : index
    %c6_470 = arith.constant 6 : index
    %c0_471 = arith.constant 0 : index
    %c0_472 = arith.constant 0 : index
    %c0_473 = arith.constant 0 : index
    %271 = vector.load %arg1[%c5_469, %c6_470, %c0_471, %c0_472, %c0_473] : memref<16x16x1x1x24xf32, #tpu.memory_space<vmem>>, vector<1x1x1x1x24xf32>
    %272 = vector.shape_cast %271 : vector<1x1x1x1x24xf32> to vector<1x24xf32>
    %273 = arith.maximumf %270, %272 : vector<1x24xf32>
    %c5_474 = arith.constant 5 : index
    %c7_475 = arith.constant 7 : index
    %c0_476 = arith.constant 0 : index
    %c0_477 = arith.constant 0 : index
    %c0_478 = arith.constant 0 : index
    %274 = vector.load %arg1[%c5_474, %c7_475, %c0_476, %c0_477, %c0_478] : memref<16x16x1x1x24xf32, #tpu.memory_space<vmem>>, vector<1x1x1x1x24xf32>
    %275 = vector.shape_cast %274 : vector<1x1x1x1x24xf32> to vector<1x24xf32>
    %276 = arith.maximumf %273, %275 : vector<1x24xf32>
    %c2_479 = arith.constant 2 : index
    %c3_480 = arith.constant 3 : index
    %c0_481 = arith.constant 0 : index
    %c0_482 = arith.constant 0 : index
    %c0_483 = arith.constant 0 : index
    %277 = vector.load %arg2[%c2_479, %c3_480, %c0_481, %c0_482, %c0_483] : memref<8x8x1x1x24xf32, #tpu.memory_space<vmem>>, vector<1x1x1x1x24xf32>
    %278 = vector.shape_cast %277 : vector<1x1x1x1x24xf32> to vector<1x24xf32>
    %279 = vector.shape_cast %276 : vector<1x24xf32> to vector<1x1x1x1x24xf32>
    tpu.vector_store %arg2[%c2_479, %c3_480, %c0_481, %c0_482, %c0_483], %279 {strides = array<i32>} : memref<8x8x1x1x24xf32, #tpu.memory_space<vmem>>, vector<1x1x1x1x24xf32>,
    %c4_484 = arith.constant 4 : index
    %c8_485 = arith.constant 8 : index
    %c0_486 = arith.constant 0 : index
    %c0_487 = arith.constant 0 : index
    %c0_488 = arith.constant 0 : index
    %280 = vector.load %arg1[%c4_484, %c8_485, %c0_486, %c0_487, %c0_488] : memref<16x16x1x1x24xf32, #tpu.memory_space<vmem>>, vector<1x1x1x1x24xf32>
    %281 = vector.shape_cast %280 : vector<1x1x1x1x24xf32> to vector<1x24xf32>
    %c4_489 = arith.constant 4 : index
    %c9_490 = arith.constant 9 : index
    %c0_491 = arith.constant 0 : index
    %c0_492 = arith.constant 0 : index
    %c0_493 = arith.constant 0 : index
    %282 = vector.load %arg1[%c4_489, %c9_490, %c0_491, %c0_492, %c0_493] : memref<16x16x1x1x24xf32, #tpu.memory_space<vmem>>, vector<1x1x1x1x24xf32>
    %283 = vector.shape_cast %282 : vector<1x1x1x1x24xf32> to vector<1x24xf32>
    %284 = arith.maximumf %281, %283 : vector<1x24xf32>
    %c5_494 = arith.constant 5 : index
    %c8_495 = arith.constant 8 : index
    %c0_496 = arith.constant 0 : index
    %c0_497 = arith.constant 0 : index
    %c0_498 = arith.constant 0 : index
    %285 = vector.load %arg1[%c5_494, %c8_495, %c0_496, %c0_497, %c0_498] : memref<16x16x1x1x24xf32, #tpu.memory_space<vmem>>, vector<1x1x1x1x24xf32>
    %286 = vector.shape_cast %285 : vector<1x1x1x1x24xf32> to vector<1x24xf32>
    %287 = arith.maximumf %284, %286 : vector<1x24xf32>
    %c5_499 = arith.constant 5 : index
    %c9_500 = arith.constant 9 : index
    %c0_501 = arith.constant 0 : index
    %c0_502 = arith.constant 0 : index
    %c0_503 = arith.constant 0 : index
    %288 = vector.load %arg1[%c5_499, %c9_500, %c0_501, %c0_502, %c0_503] : memref<16x16x1x1x24xf32, #tpu.memory_space<vmem>>, vector<1x1x1x1x24xf32>
    %289 = vector.shape_cast %288 : vector<1x1x1x1x24xf32> to vector<1x24xf32>
    %290 = arith.maximumf %287, %289 : vector<1x24xf32>
    %c2_504 = arith.constant 2 : index
    %c4_505 = arith.constant 4 : index
    %c0_506 = arith.constant 0 : index
    %c0_507 = arith.constant 0 : index
    %c0_508 = arith.constant 0 : index
    %291 = vector.load %arg2[%c2_504, %c4_505, %c0_506, %c0_507, %c0_508] : memref<8x8x1x1x24xf32, #tpu.memory_space<vmem>>, vector<1x1x1x1x24xf32>
    %292 = vector.shape_cast %291 : vector<1x1x1x1x24xf32> to vector<1x24xf32>
    %293 = vector.shape_cast %290 : vector<1x24xf32> to vector<1x1x1x1x24xf32>
    tpu.vector_store %arg2[%c2_504, %c4_505, %c0_506, %c0_507, %c0_508], %293 {strides = array<i32>} : memref<8x8x1x1x24xf32, #tpu.memory_space<vmem>>, vector<1x1x1x1x24xf32>,
    %c4_509 = arith.constant 4 : index
    %c10_510 = arith.constant 10 : index
    %c0_511 = arith.constant 0 : index
    %c0_512 = arith.constant 0 : index
    %c0_513 = arith.constant 0 : index
    %294 = vector.load %arg1[%c4_509, %c10_510, %c0_511, %c0_512, %c0_513] : memref<16x16x1x1x24xf32, #tpu.memory_space<vmem>>, vector<1x1x1x1x24xf32>
    %295 = vector.shape_cast %294 : vector<1x1x1x1x24xf32> to vector<1x24xf32>
    %c4_514 = arith.constant 4 : index
    %c11_515 = arith.constant 11 : index
    %c0_516 = arith.constant 0 : index
    %c0_517 = arith.constant 0 : index
    %c0_518 = arith.constant 0 : index
    %296 = vector.load %arg1[%c4_514, %c11_515, %c0_516, %c0_517, %c0_518] : memref<16x16x1x1x24xf32, #tpu.memory_space<vmem>>, vector<1x1x1x1x24xf32>
    %297 = vector.shape_cast %296 : vector<1x1x1x1x24xf32> to vector<1x24xf32>
    %298 = arith.maximumf %295, %297 : vector<1x24xf32>
    %c5_519 = arith.constant 5 : index
    %c10_520 = arith.constant 10 : index
    %c0_521 = arith.constant 0 : index
    %c0_522 = arith.constant 0 : index
    %c0_523 = arith.constant 0 : index
    %299 = vector.load %arg1[%c5_519, %c10_520, %c0_521, %c0_522, %c0_523] : memref<16x16x1x1x24xf32, #tpu.memory_space<vmem>>, vector<1x1x1x1x24xf32>
    %300 = vector.shape_cast %299 : vector<1x1x1x1x24xf32> to vector<1x24xf32>
    %301 = arith.maximumf %298, %300 : vector<1x24xf32>
    %c5_524 = arith.constant 5 : index
    %c11_525 = arith.constant 11 : index
    %c0_526 = arith.constant 0 : index
    %c0_527 = arith.constant 0 : index
    %c0_528 = arith.constant 0 : index
    %302 = vector.load %arg1[%c5_524, %c11_525, %c0_526, %c0_527, %c0_528] : memref<16x16x1x1x24xf32, #tpu.memory_space<vmem>>, vector<1x1x1x1x24xf32>
    %303 = vector.shape_cast %302 : vector<1x1x1x1x24xf32> to vector<1x24xf32>
    %304 = arith.maximumf %301, %303 : vector<1x24xf32>
    %c2_529 = arith.constant 2 : index
    %c5_530 = arith.constant 5 : index
    %c0_531 = arith.constant 0 : index
    %c0_532 = arith.constant 0 : index
    %c0_533 = arith.constant 0 : index
    %305 = vector.load %arg2[%c2_529, %c5_530, %c0_531, %c0_532, %c0_533] : memref<8x8x1x1x24xf32, #tpu.memory_space<vmem>>, vector<1x1x1x1x24xf32>
    %306 = vector.shape_cast %305 : vector<1x1x1x1x24xf32> to vector<1x24xf32>
    %307 = vector.shape_cast %304 : vector<1x24xf32> to vector<1x1x1x1x24xf32>
    tpu.vector_store %arg2[%c2_529, %c5_530, %c0_531, %c0_532, %c0_533], %307 {strides = array<i32>} : memref<8x8x1x1x24xf32, #tpu.memory_space<vmem>>, vector<1x1x1x1x24xf32>,
    %c4_534 = arith.constant 4 : index
    %c12_535 = arith.constant 12 : index
    %c0_536 = arith.constant 0 : index
    %c0_537 = arith.constant 0 : index
    %c0_538 = arith.constant 0 : index
    %308 = vector.load %arg1[%c4_534, %c12_535, %c0_536, %c0_537, %c0_538] : memref<16x16x1x1x24xf32, #tpu.memory_space<vmem>>, vector<1x1x1x1x24xf32>
    %309 = vector.shape_cast %308 : vector<1x1x1x1x24xf32> to vector<1x24xf32>
    %c4_539 = arith.constant 4 : index
    %c13_540 = arith.constant 13 : index
    %c0_541 = arith.constant 0 : index
    %c0_542 = arith.constant 0 : index
    %c0_543 = arith.constant 0 : index
    %310 = vector.load %arg1[%c4_539, %c13_540, %c0_541, %c0_542, %c0_543] : memref<16x16x1x1x24xf32, #tpu.memory_space<vmem>>, vector<1x1x1x1x24xf32>
    %311 = vector.shape_cast %310 : vector<1x1x1x1x24xf32> to vector<1x24xf32>
    %312 = arith.maximumf %309, %311 : vector<1x24xf32>
    %c5_544 = arith.constant 5 : index
    %c12_545 = arith.constant 12 : index
    %c0_546 = arith.constant 0 : index
    %c0_547 = arith.constant 0 : index
    %c0_548 = arith.constant 0 : index
    %313 = vector.load %arg1[%c5_544, %c12_545, %c0_546, %c0_547, %c0_548] : memref<16x16x1x1x24xf32, #tpu.memory_space<vmem>>, vector<1x1x1x1x24xf32>
    %314 = vector.shape_cast %313 : vector<1x1x1x1x24xf32> to vector<1x24xf32>
    %315 = arith.maximumf %312, %314 : vector<1x24xf32>
    %c5_549 = arith.constant 5 : index
    %c13_550 = arith.constant 13 : index
    %c0_551 = arith.constant 0 : index
    %c0_552 = arith.constant 0 : index
    %c0_553 = arith.constant 0 : index
    %316 = vector.load %arg1[%c5_549, %c13_550, %c0_551, %c0_552, %c0_553] : memref<16x16x1x1x24xf32, #tpu.memory_space<vmem>>, vector<1x1x1x1x24xf32>
    %317 = vector.shape_cast %316 : vector<1x1x1x1x24xf32> to vector<1x24xf32>
    %318 = arith.maximumf %315, %317 : vector<1x24xf32>
    %c2_554 = arith.constant 2 : index
    %c6_555 = arith.constant 6 : index
    %c0_556 = arith.constant 0 : index
    %c0_557 = arith.constant 0 : index
    %c0_558 = arith.constant 0 : index
    %319 = vector.load %arg2[%c2_554, %c6_555, %c0_556, %c0_557, %c0_558] : memref<8x8x1x1x24xf32, #tpu.memory_space<vmem>>, vector<1x1x1x1x24xf32>
    %320 = vector.shape_cast %319 : vector<1x1x1x1x24xf32> to vector<1x24xf32>
    %321 = vector.shape_cast %318 : vector<1x24xf32> to vector<1x1x1x1x24xf32>
    tpu.vector_store %arg2[%c2_554, %c6_555, %c0_556, %c0_557, %c0_558], %321 {strides = array<i32>} : memref<8x8x1x1x24xf32, #tpu.memory_space<vmem>>, vector<1x1x1x1x24xf32>,
    %c4_559 = arith.constant 4 : index
    %c14_560 = arith.constant 14 : index
    %c0_561 = arith.constant 0 : index
    %c0_562 = arith.constant 0 : index
    %c0_563 = arith.constant 0 : index
    %322 = vector.load %arg1[%c4_559, %c14_560, %c0_561, %c0_562, %c0_563] : memref<16x16x1x1x24xf32, #tpu.memory_space<vmem>>, vector<1x1x1x1x24xf32>
    %323 = vector.shape_cast %322 : vector<1x1x1x1x24xf32> to vector<1x24xf32>
    %c4_564 = arith.constant 4 : index
    %c15_565 = arith.constant 15 : index
    %c0_566 = arith.constant 0 : index
    %c0_567 = arith.constant 0 : index
    %c0_568 = arith.constant 0 : index
    %324 = vector.load %arg1[%c4_564, %c15_565, %c0_566, %c0_567, %c0_568] : memref<16x16x1x1x24xf32, #tpu.memory_space<vmem>>, vector<1x1x1x1x24xf32>
    %325 = vector.shape_cast %324 : vector<1x1x1x1x24xf32> to vector<1x24xf32>
    %326 = arith.maximumf %323, %325 : vector<1x24xf32>
    %c5_569 = arith.constant 5 : index
    %c14_570 = arith.constant 14 : index
    %c0_571 = arith.constant 0 : index
    %c0_572 = arith.constant 0 : index
    %c0_573 = arith.constant 0 : index
    %327 = vector.load %arg1[%c5_569, %c14_570, %c0_571, %c0_572, %c0_573] : memref<16x16x1x1x24xf32, #tpu.memory_space<vmem>>, vector<1x1x1x1x24xf32>
    %328 = vector.shape_cast %327 : vector<1x1x1x1x24xf32> to vector<1x24xf32>
    %329 = arith.maximumf %326, %328 : vector<1x24xf32>
    %c5_574 = arith.constant 5 : index
    %c15_575 = arith.constant 15 : index
    %c0_576 = arith.constant 0 : index
    %c0_577 = arith.constant 0 : index
    %c0_578 = arith.constant 0 : index
    %330 = vector.load %arg1[%c5_574, %c15_575, %c0_576, %c0_577, %c0_578] : memref<16x16x1x1x24xf32, #tpu.memory_space<vmem>>, vector<1x1x1x1x24xf32>
    %331 = vector.shape_cast %330 : vector<1x1x1x1x24xf32> to vector<1x24xf32>
    %332 = arith.maximumf %329, %331 : vector<1x24xf32>
    %c2_579 = arith.constant 2 : index
    %c7_580 = arith.constant 7 : index
    %c0_581 = arith.constant 0 : index
    %c0_582 = arith.constant 0 : index
    %c0_583 = arith.constant 0 : index
    %333 = vector.load %arg2[%c2_579, %c7_580, %c0_581, %c0_582, %c0_583] : memref<8x8x1x1x24xf32, #tpu.memory_space<vmem>>, vector<1x1x1x1x24xf32>
    %334 = vector.shape_cast %333 : vector<1x1x1x1x24xf32> to vector<1x24xf32>
    %335 = vector.shape_cast %332 : vector<1x24xf32> to vector<1x1x1x1x24xf32>
    tpu.vector_store %arg2[%c2_579, %c7_580, %c0_581, %c0_582, %c0_583], %335 {strides = array<i32>} : memref<8x8x1x1x24xf32, #tpu.memory_space<vmem>>, vector<1x1x1x1x24xf32>,
    %c6_584 = arith.constant 6 : index
    %c0_585 = arith.constant 0 : index
    %c0_586 = arith.constant 0 : index
    %c0_587 = arith.constant 0 : index
    %c0_588 = arith.constant 0 : index
    %336 = vector.load %arg1[%c6_584, %c0_585, %c0_586, %c0_587, %c0_588] : memref<16x16x1x1x24xf32, #tpu.memory_space<vmem>>, vector<1x1x1x1x24xf32>
    %337 = vector.shape_cast %336 : vector<1x1x1x1x24xf32> to vector<1x24xf32>
    %c6_589 = arith.constant 6 : index
    %c1_590 = arith.constant 1 : index
    %c0_591 = arith.constant 0 : index
    %c0_592 = arith.constant 0 : index
    %c0_593 = arith.constant 0 : index
    %338 = vector.load %arg1[%c6_589, %c1_590, %c0_591, %c0_592, %c0_593] : memref<16x16x1x1x24xf32, #tpu.memory_space<vmem>>, vector<1x1x1x1x24xf32>
    %339 = vector.shape_cast %338 : vector<1x1x1x1x24xf32> to vector<1x24xf32>
    %340 = arith.maximumf %337, %339 : vector<1x24xf32>
    %c7_594 = arith.constant 7 : index
    %c0_595 = arith.constant 0 : index
    %c0_596 = arith.constant 0 : index
    %c0_597 = arith.constant 0 : index
    %c0_598 = arith.constant 0 : index
    %341 = vector.load %arg1[%c7_594, %c0_595, %c0_596, %c0_597, %c0_598] : memref<16x16x1x1x24xf32, #tpu.memory_space<vmem>>, vector<1x1x1x1x24xf32>
    %342 = vector.shape_cast %341 : vector<1x1x1x1x24xf32> to vector<1x24xf32>
    %343 = arith.maximumf %340, %342 : vector<1x24xf32>
    %c7_599 = arith.constant 7 : index
    %c1_600 = arith.constant 1 : index
    %c0_601 = arith.constant 0 : index
    %c0_602 = arith.constant 0 : index
    %c0_603 = arith.constant 0 : index
    %344 = vector.load %arg1[%c7_599, %c1_600, %c0_601, %c0_602, %c0_603] : memref<16x16x1x1x24xf32, #tpu.memory_space<vmem>>, vector<1x1x1x1x24xf32>
    %345 = vector.shape_cast %344 : vector<1x1x1x1x24xf32> to vector<1x24xf32>
    %346 = arith.maximumf %343, %345 : vector<1x24xf32>
    %c3_604 = arith.constant 3 : index
    %c0_605 = arith.constant 0 : index
    %c0_606 = arith.constant 0 : index
    %c0_607 = arith.constant 0 : index
    %c0_608 = arith.constant 0 : index
    %347 = vector.load %arg2[%c3_604, %c0_605, %c0_606, %c0_607, %c0_608] : memref<8x8x1x1x24xf32, #tpu.memory_space<vmem>>, vector<1x1x1x1x24xf32>
    %348 = vector.shape_cast %347 : vector<1x1x1x1x24xf32> to vector<1x24xf32>
    %349 = vector.shape_cast %346 : vector<1x24xf32> to vector<1x1x1x1x24xf32>
    tpu.vector_store %arg2[%c3_604, %c0_605, %c0_606, %c0_607, %c0_608], %349 {strides = array<i32>} : memref<8x8x1x1x24xf32, #tpu.memory_space<vmem>>, vector<1x1x1x1x24xf32>,
    %c6_609 = arith.constant 6 : index
    %c2_610 = arith.constant 2 : index
    %c0_611 = arith.constant 0 : index
    %c0_612 = arith.constant 0 : index
    %c0_613 = arith.constant 0 : index
    %350 = vector.load %arg1[%c6_609, %c2_610, %c0_611, %c0_612, %c0_613] : memref<16x16x1x1x24xf32, #tpu.memory_space<vmem>>, vector<1x1x1x1x24xf32>
    %351 = vector.shape_cast %350 : vector<1x1x1x1x24xf32> to vector<1x24xf32>
    %c6_614 = arith.constant 6 : index
    %c3_615 = arith.constant 3 : index
    %c0_616 = arith.constant 0 : index
    %c0_617 = arith.constant 0 : index
    %c0_618 = arith.constant 0 : index
    %352 = vector.load %arg1[%c6_614, %c3_615, %c0_616, %c0_617, %c0_618] : memref<16x16x1x1x24xf32, #tpu.memory_space<vmem>>, vector<1x1x1x1x24xf32>
    %353 = vector.shape_cast %352 : vector<1x1x1x1x24xf32> to vector<1x24xf32>
    %354 = arith.maximumf %351, %353 : vector<1x24xf32>
    %c7_619 = arith.constant 7 : index
    %c2_620 = arith.constant 2 : index
    %c0_621 = arith.constant 0 : index
    %c0_622 = arith.constant 0 : index
    %c0_623 = arith.constant 0 : index
    %355 = vector.load %arg1[%c7_619, %c2_620, %c0_621, %c0_622, %c0_623] : memref<16x16x1x1x24xf32, #tpu.memory_space<vmem>>, vector<1x1x1x1x24xf32>
    %356 = vector.shape_cast %355 : vector<1x1x1x1x24xf32> to vector<1x24xf32>
    %357 = arith.maximumf %354, %356 : vector<1x24xf32>
    %c7_624 = arith.constant 7 : index
    %c3_625 = arith.constant 3 : index
    %c0_626 = arith.constant 0 : index
    %c0_627 = arith.constant 0 : index
    %c0_628 = arith.constant 0 : index
    %358 = vector.load %arg1[%c7_624, %c3_625, %c0_626, %c0_627, %c0_628] : memref<16x16x1x1x24xf32, #tpu.memory_space<vmem>>, vector<1x1x1x1x24xf32>
    %359 = vector.shape_cast %358 : vector<1x1x1x1x24xf32> to vector<1x24xf32>
    %360 = arith.maximumf %357, %359 : vector<1x24xf32>
    %c3_629 = arith.constant 3 : index
    %c1_630 = arith.constant 1 : index
    %c0_631 = arith.constant 0 : index
    %c0_632 = arith.constant 0 : index
    %c0_633 = arith.constant 0 : index
    %361 = vector.load %arg2[%c3_629, %c1_630, %c0_631, %c0_632, %c0_633] : memref<8x8x1x1x24xf32, #tpu.memory_space<vmem>>, vector<1x1x1x1x24xf32>
    %362 = vector.shape_cast %361 : vector<1x1x1x1x24xf32> to vector<1x24xf32>
    %363 = vector.shape_cast %360 : vector<1x24xf32> to vector<1x1x1x1x24xf32>
    tpu.vector_store %arg2[%c3_629, %c1_630, %c0_631, %c0_632, %c0_633], %363 {strides = array<i32>} : memref<8x8x1x1x24xf32, #tpu.memory_space<vmem>>, vector<1x1x1x1x24xf32>,
    %c6_634 = arith.constant 6 : index
    %c4_635 = arith.constant 4 : index
    %c0_636 = arith.constant 0 : index
    %c0_637 = arith.constant 0 : index
    %c0_638 = arith.constant 0 : index
    %364 = vector.load %arg1[%c6_634, %c4_635, %c0_636, %c0_637, %c0_638] : memref<16x16x1x1x24xf32, #tpu.memory_space<vmem>>, vector<1x1x1x1x24xf32>
    %365 = vector.shape_cast %364 : vector<1x1x1x1x24xf32> to vector<1x24xf32>
    %c6_639 = arith.constant 6 : index
    %c5_640 = arith.constant 5 : index
    %c0_641 = arith.constant 0 : index
    %c0_642 = arith.constant 0 : index
    %c0_643 = arith.constant 0 : index
    %366 = vector.load %arg1[%c6_639, %c5_640, %c0_641, %c0_642, %c0_643] : memref<16x16x1x1x24xf32, #tpu.memory_space<vmem>>, vector<1x1x1x1x24xf32>
    %367 = vector.shape_cast %366 : vector<1x1x1x1x24xf32> to vector<1x24xf32>
    %368 = arith.maximumf %365, %367 : vector<1x24xf32>
    %c7_644 = arith.constant 7 : index
    %c4_645 = arith.constant 4 : index
    %c0_646 = arith.constant 0 : index
    %c0_647 = arith.constant 0 : index
    %c0_648 = arith.constant 0 : index
    %369 = vector.load %arg1[%c7_644, %c4_645, %c0_646, %c0_647, %c0_648] : memref<16x16x1x1x24xf32, #tpu.memory_space<vmem>>, vector<1x1x1x1x24xf32>
    %370 = vector.shape_cast %369 : vector<1x1x1x1x24xf32> to vector<1x24xf32>
    %371 = arith.maximumf %368, %370 : vector<1x24xf32>
    %c7_649 = arith.constant 7 : index
    %c5_650 = arith.constant 5 : index
    %c0_651 = arith.constant 0 : index
    %c0_652 = arith.constant 0 : index
    %c0_653 = arith.constant 0 : index
    %372 = vector.load %arg1[%c7_649, %c5_650, %c0_651, %c0_652, %c0_653] : memref<16x16x1x1x24xf32, #tpu.memory_space<vmem>>, vector<1x1x1x1x24xf32>
    %373 = vector.shape_cast %372 : vector<1x1x1x1x24xf32> to vector<1x24xf32>
    %374 = arith.maximumf %371, %373 : vector<1x24xf32>
    %c3_654 = arith.constant 3 : index
    %c2_655 = arith.constant 2 : index
    %c0_656 = arith.constant 0 : index
    %c0_657 = arith.constant 0 : index
    %c0_658 = arith.constant 0 : index
    %375 = vector.load %arg2[%c3_654, %c2_655, %c0_656, %c0_657, %c0_658] : memref<8x8x1x1x24xf32, #tpu.memory_space<vmem>>, vector<1x1x1x1x24xf32>
    %376 = vector.shape_cast %375 : vector<1x1x1x1x24xf32> to vector<1x24xf32>
    %377 = vector.shape_cast %374 : vector<1x24xf32> to vector<1x1x1x1x24xf32>
    tpu.vector_store %arg2[%c3_654, %c2_655, %c0_656, %c0_657, %c0_658], %377 {strides = array<i32>} : memref<8x8x1x1x24xf32, #tpu.memory_space<vmem>>, vector<1x1x1x1x24xf32>,
    %c6_659 = arith.constant 6 : index
    %c6_660 = arith.constant 6 : index
    %c0_661 = arith.constant 0 : index
    %c0_662 = arith.constant 0 : index
    %c0_663 = arith.constant 0 : index
    %378 = vector.load %arg1[%c6_659, %c6_660, %c0_661, %c0_662, %c0_663] : memref<16x16x1x1x24xf32, #tpu.memory_space<vmem>>, vector<1x1x1x1x24xf32>
    %379 = vector.shape_cast %378 : vector<1x1x1x1x24xf32> to vector<1x24xf32>
    %c6_664 = arith.constant 6 : index
    %c7_665 = arith.constant 7 : index
    %c0_666 = arith.constant 0 : index
    %c0_667 = arith.constant 0 : index
    %c0_668 = arith.constant 0 : index
    %380 = vector.load %arg1[%c6_664, %c7_665, %c0_666, %c0_667, %c0_668] : memref<16x16x1x1x24xf32, #tpu.memory_space<vmem>>, vector<1x1x1x1x24xf32>
    %381 = vector.shape_cast %380 : vector<1x1x1x1x24xf32> to vector<1x24xf32>
    %382 = arith.maximumf %379, %381 : vector<1x24xf32>
    %c7_669 = arith.constant 7 : index
    %c6_670 = arith.constant 6 : index
    %c0_671 = arith.constant 0 : index
    %c0_672 = arith.constant 0 : index
    %c0_673 = arith.constant 0 : index
    %383 = vector.load %arg1[%c7_669, %c6_670, %c0_671, %c0_672, %c0_673] : memref<16x16x1x1x24xf32, #tpu.memory_space<vmem>>, vector<1x1x1x1x24xf32>
    %384 = vector.shape_cast %383 : vector<1x1x1x1x24xf32> to vector<1x24xf32>
    %385 = arith.maximumf %382, %384 : vector<1x24xf32>
    %c7_674 = arith.constant 7 : index
    %c7_675 = arith.constant 7 : index
    %c0_676 = arith.constant 0 : index
    %c0_677 = arith.constant 0 : index
    %c0_678 = arith.constant 0 : index
    %386 = vector.load %arg1[%c7_674, %c7_675, %c0_676, %c0_677, %c0_678] : memref<16x16x1x1x24xf32, #tpu.memory_space<vmem>>, vector<1x1x1x1x24xf32>
    %387 = vector.shape_cast %386 : vector<1x1x1x1x24xf32> to vector<1x24xf32>
    %388 = arith.maximumf %385, %387 : vector<1x24xf32>
    %c3_679 = arith.constant 3 : index
    %c3_680 = arith.constant 3 : index
    %c0_681 = arith.constant 0 : index
    %c0_682 = arith.constant 0 : index
    %c0_683 = arith.constant 0 : index
    %389 = vector.load %arg2[%c3_679, %c3_680, %c0_681, %c0_682, %c0_683] : memref<8x8x1x1x24xf32, #tpu.memory_space<vmem>>, vector<1x1x1x1x24xf32>
    %390 = vector.shape_cast %389 : vector<1x1x1x1x24xf32> to vector<1x24xf32>
    %391 = vector.shape_cast %388 : vector<1x24xf32> to vector<1x1x1x1x24xf32>
    tpu.vector_store %arg2[%c3_679, %c3_680, %c0_681, %c0_682, %c0_683], %391 {strides = array<i32>} : memref<8x8x1x1x24xf32, #tpu.memory_space<vmem>>, vector<1x1x1x1x24xf32>,
    %c6_684 = arith.constant 6 : index
    %c8_685 = arith.constant 8 : index
    %c0_686 = arith.constant 0 : index
    %c0_687 = arith.constant 0 : index
    %c0_688 = arith.constant 0 : index
    %392 = vector.load %arg1[%c6_684, %c8_685, %c0_686, %c0_687, %c0_688] : memref<16x16x1x1x24xf32, #tpu.memory_space<vmem>>, vector<1x1x1x1x24xf32>
    %393 = vector.shape_cast %392 : vector<1x1x1x1x24xf32> to vector<1x24xf32>
    %c6_689 = arith.constant 6 : index
    %c9_690 = arith.constant 9 : index
    %c0_691 = arith.constant 0 : index
    %c0_692 = arith.constant 0 : index
    %c0_693 = arith.constant 0 : index
    %394 = vector.load %arg1[%c6_689, %c9_690, %c0_691, %c0_692, %c0_693] : memref<16x16x1x1x24xf32, #tpu.memory_space<vmem>>, vector<1x1x1x1x24xf32>
    %395 = vector.shape_cast %394 : vector<1x1x1x1x24xf32> to vector<1x24xf32>
    %396 = arith.maximumf %393, %395 : vector<1x24xf32>
    %c7_694 = arith.constant 7 : index
    %c8_695 = arith.constant 8 : index
    %c0_696 = arith.constant 0 : index
    %c0_697 = arith.constant 0 : index
    %c0_698 = arith.constant 0 : index
    %397 = vector.load %arg1[%c7_694, %c8_695, %c0_696, %c0_697, %c0_698] : memref<16x16x1x1x24xf32, #tpu.memory_space<vmem>>, vector<1x1x1x1x24xf32>
    %398 = vector.shape_cast %397 : vector<1x1x1x1x24xf32> to vector<1x24xf32>
    %399 = arith.maximumf %396, %398 : vector<1x24xf32>
    %c7_699 = arith.constant 7 : index
    %c9_700 = arith.constant 9 : index
    %c0_701 = arith.constant 0 : index
    %c0_702 = arith.constant 0 : index
    %c0_703 = arith.constant 0 : index
    %400 = vector.load %arg1[%c7_699, %c9_700, %c0_701, %c0_702, %c0_703] : memref<16x16x1x1x24xf32, #tpu.memory_space<vmem>>, vector<1x1x1x1x24xf32>
    %401 = vector.shape_cast %400 : vector<1x1x1x1x24xf32> to vector<1x24xf32>
    %402 = arith.maximumf %399, %401 : vector<1x24xf32>
    %c3_704 = arith.constant 3 : index
    %c4_705 = arith.constant 4 : index
    %c0_706 = arith.constant 0 : index
    %c0_707 = arith.constant 0 : index
    %c0_708 = arith.constant 0 : index
    %403 = vector.load %arg2[%c3_704, %c4_705, %c0_706, %c0_707, %c0_708] : memref<8x8x1x1x24xf32, #tpu.memory_space<vmem>>, vector<1x1x1x1x24xf32>
    %404 = vector.shape_cast %403 : vector<1x1x1x1x24xf32> to vector<1x24xf32>
    %405 = vector.shape_cast %402 : vector<1x24xf32> to vector<1x1x1x1x24xf32>
    tpu.vector_store %arg2[%c3_704, %c4_705, %c0_706, %c0_707, %c0_708], %405 {strides = array<i32>} : memref<8x8x1x1x24xf32, #tpu.memory_space<vmem>>, vector<1x1x1x1x24xf32>,
    %c6_709 = arith.constant 6 : index
    %c10_710 = arith.constant 10 : index
    %c0_711 = arith.constant 0 : index
    %c0_712 = arith.constant 0 : index
    %c0_713 = arith.constant 0 : index
    %406 = vector.load %arg1[%c6_709, %c10_710, %c0_711, %c0_712, %c0_713] : memref<16x16x1x1x24xf32, #tpu.memory_space<vmem>>, vector<1x1x1x1x24xf32>
    %407 = vector.shape_cast %406 : vector<1x1x1x1x24xf32> to vector<1x24xf32>
    %c6_714 = arith.constant 6 : index
    %c11_715 = arith.constant 11 : index
    %c0_716 = arith.constant 0 : index
    %c0_717 = arith.constant 0 : index
    %c0_718 = arith.constant 0 : index
    %408 = vector.load %arg1[%c6_714, %c11_715, %c0_716, %c0_717, %c0_718] : memref<16x16x1x1x24xf32, #tpu.memory_space<vmem>>, vector<1x1x1x1x24xf32>
    %409 = vector.shape_cast %408 : vector<1x1x1x1x24xf32> to vector<1x24xf32>
    %410 = arith.maximumf %407, %409 : vector<1x24xf32>
    %c7_719 = arith.constant 7 : index
    %c10_720 = arith.constant 10 : index
    %c0_721 = arith.constant 0 : index
    %c0_722 = arith.constant 0 : index
    %c0_723 = arith.constant 0 : index
    %411 = vector.load %arg1[%c7_719, %c10_720, %c0_721, %c0_722, %c0_723] : memref<16x16x1x1x24xf32, #tpu.memory_space<vmem>>, vector<1x1x1x1x24xf32>
    %412 = vector.shape_cast %411 : vector<1x1x1x1x24xf32> to vector<1x24xf32>
    %413 = arith.maximumf %410, %412 : vector<1x24xf32>
    %c7_724 = arith.constant 7 : index
    %c11_725 = arith.constant 11 : index
    %c0_726 = arith.constant 0 : index
    %c0_727 = arith.constant 0 : index
    %c0_728 = arith.constant 0 : index
    %414 = vector.load %arg1[%c7_724, %c11_725, %c0_726, %c0_727, %c0_728] : memref<16x16x1x1x24xf32, #tpu.memory_space<vmem>>, vector<1x1x1x1x24xf32>
    %415 = vector.shape_cast %414 : vector<1x1x1x1x24xf32> to vector<1x24xf32>
    %416 = arith.maximumf %413, %415 : vector<1x24xf32>
    %c3_729 = arith.constant 3 : index
    %c5_730 = arith.constant 5 : index
    %c0_731 = arith.constant 0 : index
    %c0_732 = arith.constant 0 : index
    %c0_733 = arith.constant 0 : index
    %417 = vector.load %arg2[%c3_729, %c5_730, %c0_731, %c0_732, %c0_733] : memref<8x8x1x1x24xf32, #tpu.memory_space<vmem>>, vector<1x1x1x1x24xf32>
    %418 = vector.shape_cast %417 : vector<1x1x1x1x24xf32> to vector<1x24xf32>
    %419 = vector.shape_cast %416 : vector<1x24xf32> to vector<1x1x1x1x24xf32>
    tpu.vector_store %arg2[%c3_729, %c5_730, %c0_731, %c0_732, %c0_733], %419 {strides = array<i32>} : memref<8x8x1x1x24xf32, #tpu.memory_space<vmem>>, vector<1x1x1x1x24xf32>,
    %c6_734 = arith.constant 6 : index
    %c12_735 = arith.constant 12 : index
    %c0_736 = arith.constant 0 : index
    %c0_737 = arith.constant 0 : index
    %c0_738 = arith.constant 0 : index
    %420 = vector.load %arg1[%c6_734, %c12_735, %c0_736, %c0_737, %c0_738] : memref<16x16x1x1x24xf32, #tpu.memory_space<vmem>>, vector<1x1x1x1x24xf32>
    %421 = vector.shape_cast %420 : vector<1x1x1x1x24xf32> to vector<1x24xf32>
    %c6_739 = arith.constant 6 : index
    %c13_740 = arith.constant 13 : index
    %c0_741 = arith.constant 0 : index
    %c0_742 = arith.constant 0 : index
    %c0_743 = arith.constant 0 : index
    %422 = vector.load %arg1[%c6_739, %c13_740, %c0_741, %c0_742, %c0_743] : memref<16x16x1x1x24xf32, #tpu.memory_space<vmem>>, vector<1x1x1x1x24xf32>
    %423 = vector.shape_cast %422 : vector<1x1x1x1x24xf32> to vector<1x24xf32>
    %424 = arith.maximumf %421, %423 : vector<1x24xf32>
    %c7_744 = arith.constant 7 : index
    %c12_745 = arith.constant 12 : index
    %c0_746 = arith.constant 0 : index
    %c0_747 = arith.constant 0 : index
    %c0_748 = arith.constant 0 : index
    %425 = vector.load %arg1[%c7_744, %c12_745, %c0_746, %c0_747, %c0_748] : memref<16x16x1x1x24xf32, #tpu.memory_space<vmem>>, vector<1x1x1x1x24xf32>
    %426 = vector.shape_cast %425 : vector<1x1x1x1x24xf32> to vector<1x24xf32>
    %427 = arith.maximumf %424, %426 : vector<1x24xf32>
    %c7_749 = arith.constant 7 : index
    %c13_750 = arith.constant 13 : index
    %c0_751 = arith.constant 0 : index
    %c0_752 = arith.constant 0 : index
    %c0_753 = arith.constant 0 : index
    %428 = vector.load %arg1[%c7_749, %c13_750, %c0_751, %c0_752, %c0_753] : memref<16x16x1x1x24xf32, #tpu.memory_space<vmem>>, vector<1x1x1x1x24xf32>
    %429 = vector.shape_cast %428 : vector<1x1x1x1x24xf32> to vector<1x24xf32>
    %430 = arith.maximumf %427, %429 : vector<1x24xf32>
    %c3_754 = arith.constant 3 : index
    %c6_755 = arith.constant 6 : index
    %c0_756 = arith.constant 0 : index
    %c0_757 = arith.constant 0 : index
    %c0_758 = arith.constant 0 : index
    %431 = vector.load %arg2[%c3_754, %c6_755, %c0_756, %c0_757, %c0_758] : memref<8x8x1x1x24xf32, #tpu.memory_space<vmem>>, vector<1x1x1x1x24xf32>
    %432 = vector.shape_cast %431 : vector<1x1x1x1x24xf32> to vector<1x24xf32>
    %433 = vector.shape_cast %430 : vector<1x24xf32> to vector<1x1x1x1x24xf32>
    tpu.vector_store %arg2[%c3_754, %c6_755, %c0_756, %c0_757, %c0_758], %433 {strides = array<i32>} : memref<8x8x1x1x24xf32, #tpu.memory_space<vmem>>, vector<1x1x1x1x24xf32>,
    %c6_759 = arith.constant 6 : index
    %c14_760 = arith.constant 14 : index
    %c0_761 = arith.constant 0 : index
    %c0_762 = arith.constant 0 : index
    %c0_763 = arith.constant 0 : index
    %434 = vector.load %arg1[%c6_759, %c14_760, %c0_761, %c0_762, %c0_763] : memref<16x16x1x1x24xf32, #tpu.memory_space<vmem>>, vector<1x1x1x1x24xf32>
    %435 = vector.shape_cast %434 : vector<1x1x1x1x24xf32> to vector<1x24xf32>
    %c6_764 = arith.constant 6 : index
    %c15_765 = arith.constant 15 : index
    %c0_766 = arith.constant 0 : index
    %c0_767 = arith.constant 0 : index
    %c0_768 = arith.constant 0 : index
    %436 = vector.load %arg1[%c6_764, %c15_765, %c0_766, %c0_767, %c0_768] : memref<16x16x1x1x24xf32, #tpu.memory_space<vmem>>, vector<1x1x1x1x24xf32>
    %437 = vector.shape_cast %436 : vector<1x1x1x1x24xf32> to vector<1x24xf32>
    %438 = arith.maximumf %435, %437 : vector<1x24xf32>
    %c7_769 = arith.constant 7 : index
    %c14_770 = arith.constant 14 : index
    %c0_771 = arith.constant 0 : index
    %c0_772 = arith.constant 0 : index
    %c0_773 = arith.constant 0 : index
    %439 = vector.load %arg1[%c7_769, %c14_770, %c0_771, %c0_772, %c0_773] : memref<16x16x1x1x24xf32, #tpu.memory_space<vmem>>, vector<1x1x1x1x24xf32>
    %440 = vector.shape_cast %439 : vector<1x1x1x1x24xf32> to vector<1x24xf32>
    %441 = arith.maximumf %438, %440 : vector<1x24xf32>
    %c7_774 = arith.constant 7 : index
    %c15_775 = arith.constant 15 : index
    %c0_776 = arith.constant 0 : index
    %c0_777 = arith.constant 0 : index
    %c0_778 = arith.constant 0 : index
    %442 = vector.load %arg1[%c7_774, %c15_775, %c0_776, %c0_777, %c0_778] : memref<16x16x1x1x24xf32, #tpu.memory_space<vmem>>, vector<1x1x1x1x24xf32>
    %443 = vector.shape_cast %442 : vector<1x1x1x1x24xf32> to vector<1x24xf32>
    %444 = arith.maximumf %441, %443 : vector<1x24xf32>
    %c3_779 = arith.constant 3 : index
    %c7_780 = arith.constant 7 : index
    %c0_781 = arith.constant 0 : index
    %c0_782 = arith.constant 0 : index
    %c0_783 = arith.constant 0 : index
    %445 = vector.load %arg2[%c3_779, %c7_780, %c0_781, %c0_782, %c0_783] : memref<8x8x1x1x24xf32, #tpu.memory_space<vmem>>, vector<1x1x1x1x24xf32>
    %446 = vector.shape_cast %445 : vector<1x1x1x1x24xf32> to vector<1x24xf32>
    %447 = vector.shape_cast %444 : vector<1x24xf32> to vector<1x1x1x1x24xf32>
    tpu.vector_store %arg2[%c3_779, %c7_780, %c0_781, %c0_782, %c0_783], %447 {strides = array<i32>} : memref<8x8x1x1x24xf32, #tpu.memory_space<vmem>>, vector<1x1x1x1x24xf32>,
    %c8_784 = arith.constant 8 : index
    %c0_785 = arith.constant 0 : index
    %c0_786 = arith.constant 0 : index
    %c0_787 = arith.constant 0 : index
    %c0_788 = arith.constant 0 : index
    %448 = vector.load %arg1[%c8_784, %c0_785, %c0_786, %c0_787, %c0_788] : memref<16x16x1x1x24xf32, #tpu.memory_space<vmem>>, vector<1x1x1x1x24xf32>
    %449 = vector.shape_cast %448 : vector<1x1x1x1x24xf32> to vector<1x24xf32>
    %c8_789 = arith.constant 8 : index
    %c1_790 = arith.constant 1 : index
    %c0_791 = arith.constant 0 : index
    %c0_792 = arith.constant 0 : index
    %c0_793 = arith.constant 0 : index
    %450 = vector.load %arg1[%c8_789, %c1_790, %c0_791, %c0_792, %c0_793] : memref<16x16x1x1x24xf32, #tpu.memory_space<vmem>>, vector<1x1x1x1x24xf32>
    %451 = vector.shape_cast %450 : vector<1x1x1x1x24xf32> to vector<1x24xf32>
    %452 = arith.maximumf %449, %451 : vector<1x24xf32>
    %c9_794 = arith.constant 9 : index
    %c0_795 = arith.constant 0 : index
    %c0_796 = arith.constant 0 : index
    %c0_797 = arith.constant 0 : index
    %c0_798 = arith.constant 0 : index
    %453 = vector.load %arg1[%c9_794, %c0_795, %c0_796, %c0_797, %c0_798] : memref<16x16x1x1x24xf32, #tpu.memory_space<vmem>>, vector<1x1x1x1x24xf32>
    %454 = vector.shape_cast %453 : vector<1x1x1x1x24xf32> to vector<1x24xf32>
    %455 = arith.maximumf %452, %454 : vector<1x24xf32>
    %c9_799 = arith.constant 9 : index
    %c1_800 = arith.constant 1 : index
    %c0_801 = arith.constant 0 : index
    %c0_802 = arith.constant 0 : index
    %c0_803 = arith.constant 0 : index
    %456 = vector.load %arg1[%c9_799, %c1_800, %c0_801, %c0_802, %c0_803] : memref<16x16x1x1x24xf32, #tpu.memory_space<vmem>>, vector<1x1x1x1x24xf32>
    %457 = vector.shape_cast %456 : vector<1x1x1x1x24xf32> to vector<1x24xf32>
    %458 = arith.maximumf %455, %457 : vector<1x24xf32>
    %c4_804 = arith.constant 4 : index
    %c0_805 = arith.constant 0 : index
    %c0_806 = arith.constant 0 : index
    %c0_807 = arith.constant 0 : index
    %c0_808 = arith.constant 0 : index
    %459 = vector.load %arg2[%c4_804, %c0_805, %c0_806, %c0_807, %c0_808] : memref<8x8x1x1x24xf32, #tpu.memory_space<vmem>>, vector<1x1x1x1x24xf32>
    %460 = vector.shape_cast %459 : vector<1x1x1x1x24xf32> to vector<1x24xf32>
    %461 = vector.shape_cast %458 : vector<1x24xf32> to vector<1x1x1x1x24xf32>
    tpu.vector_store %arg2[%c4_804, %c0_805, %c0_806, %c0_807, %c0_808], %461 {strides = array<i32>} : memref<8x8x1x1x24xf32, #tpu.memory_space<vmem>>, vector<1x1x1x1x24xf32>,
    %c8_809 = arith.constant 8 : index
    %c2_810 = arith.constant 2 : index
    %c0_811 = arith.constant 0 : index
    %c0_812 = arith.constant 0 : index
    %c0_813 = arith.constant 0 : index
    %462 = vector.load %arg1[%c8_809, %c2_810, %c0_811, %c0_812, %c0_813] : memref<16x16x1x1x24xf32, #tpu.memory_space<vmem>>, vector<1x1x1x1x24xf32>
    %463 = vector.shape_cast %462 : vector<1x1x1x1x24xf32> to vector<1x24xf32>
    %c8_814 = arith.constant 8 : index
    %c3_815 = arith.constant 3 : index
    %c0_816 = arith.constant 0 : index
    %c0_817 = arith.constant 0 : index
    %c0_818 = arith.constant 0 : index
    %464 = vector.load %arg1[%c8_814, %c3_815, %c0_816, %c0_817, %c0_818] : memref<16x16x1x1x24xf32, #tpu.memory_space<vmem>>, vector<1x1x1x1x24xf32>
    %465 = vector.shape_cast %464 : vector<1x1x1x1x24xf32> to vector<1x24xf32>
    %466 = arith.maximumf %463, %465 : vector<1x24xf32>
    %c9_819 = arith.constant 9 : index
    %c2_820 = arith.constant 2 : index
    %c0_821 = arith.constant 0 : index
    %c0_822 = arith.constant 0 : index
    %c0_823 = arith.constant 0 : index
    %467 = vector.load %arg1[%c9_819, %c2_820, %c0_821, %c0_822, %c0_823] : memref<16x16x1x1x24xf32, #tpu.memory_space<vmem>>, vector<1x1x1x1x24xf32>
    %468 = vector.shape_cast %467 : vector<1x1x1x1x24xf32> to vector<1x24xf32>
    %469 = arith.maximumf %466, %468 : vector<1x24xf32>
    %c9_824 = arith.constant 9 : index
    %c3_825 = arith.constant 3 : index
    %c0_826 = arith.constant 0 : index
    %c0_827 = arith.constant 0 : index
    %c0_828 = arith.constant 0 : index
    %470 = vector.load %arg1[%c9_824, %c3_825, %c0_826, %c0_827, %c0_828] : memref<16x16x1x1x24xf32, #tpu.memory_space<vmem>>, vector<1x1x1x1x24xf32>
    %471 = vector.shape_cast %470 : vector<1x1x1x1x24xf32> to vector<1x24xf32>
    %472 = arith.maximumf %469, %471 : vector<1x24xf32>
    %c4_829 = arith.constant 4 : index
    %c1_830 = arith.constant 1 : index
    %c0_831 = arith.constant 0 : index
    %c0_832 = arith.constant 0 : index
    %c0_833 = arith.constant 0 : index
    %473 = vector.load %arg2[%c4_829, %c1_830, %c0_831, %c0_832, %c0_833] : memref<8x8x1x1x24xf32, #tpu.memory_space<vmem>>, vector<1x1x1x1x24xf32>
    %474 = vector.shape_cast %473 : vector<1x1x1x1x24xf32> to vector<1x24xf32>
    %475 = vector.shape_cast %472 : vector<1x24xf32> to vector<1x1x1x1x24xf32>
    tpu.vector_store %arg2[%c4_829, %c1_830, %c0_831, %c0_832, %c0_833], %475 {strides = array<i32>} : memref<8x8x1x1x24xf32, #tpu.memory_space<vmem>>, vector<1x1x1x1x24xf32>,
    %c8_834 = arith.constant 8 : index
    %c4_835 = arith.constant 4 : index
    %c0_836 = arith.constant 0 : index
    %c0_837 = arith.constant 0 : index
    %c0_838 = arith.constant 0 : index
    %476 = vector.load %arg1[%c8_834, %c4_835, %c0_836, %c0_837, %c0_838] : memref<16x16x1x1x24xf32, #tpu.memory_space<vmem>>, vector<1x1x1x1x24xf32>
    %477 = vector.shape_cast %476 : vector<1x1x1x1x24xf32> to vector<1x24xf32>
    %c8_839 = arith.constant 8 : index
    %c5_840 = arith.constant 5 : index
    %c0_841 = arith.constant 0 : index
    %c0_842 = arith.constant 0 : index
    %c0_843 = arith.constant 0 : index
    %478 = vector.load %arg1[%c8_839, %c5_840, %c0_841, %c0_842, %c0_843] : memref<16x16x1x1x24xf32, #tpu.memory_space<vmem>>, vector<1x1x1x1x24xf32>
    %479 = vector.shape_cast %478 : vector<1x1x1x1x24xf32> to vector<1x24xf32>
    %480 = arith.maximumf %477, %479 : vector<1x24xf32>
    %c9_844 = arith.constant 9 : index
    %c4_845 = arith.constant 4 : index
    %c0_846 = arith.constant 0 : index
    %c0_847 = arith.constant 0 : index
    %c0_848 = arith.constant 0 : index
    %481 = vector.load %arg1[%c9_844, %c4_845, %c0_846, %c0_847, %c0_848] : memref<16x16x1x1x24xf32, #tpu.memory_space<vmem>>, vector<1x1x1x1x24xf32>
    %482 = vector.shape_cast %481 : vector<1x1x1x1x24xf32> to vector<1x24xf32>
    %483 = arith.maximumf %480, %482 : vector<1x24xf32>
    %c9_849 = arith.constant 9 : index
    %c5_850 = arith.constant 5 : index
    %c0_851 = arith.constant 0 : index
    %c0_852 = arith.constant 0 : index
    %c0_853 = arith.constant 0 : index
    %484 = vector.load %arg1[%c9_849, %c5_850, %c0_851, %c0_852, %c0_853] : memref<16x16x1x1x24xf32, #tpu.memory_space<vmem>>, vector<1x1x1x1x24xf32>
    %485 = vector.shape_cast %484 : vector<1x1x1x1x24xf32> to vector<1x24xf32>
    %486 = arith.maximumf %483, %485 : vector<1x24xf32>
    %c4_854 = arith.constant 4 : index
    %c2_855 = arith.constant 2 : index
    %c0_856 = arith.constant 0 : index
    %c0_857 = arith.constant 0 : index
    %c0_858 = arith.constant 0 : index
    %487 = vector.load %arg2[%c4_854, %c2_855, %c0_856, %c0_857, %c0_858] : memref<8x8x1x1x24xf32, #tpu.memory_space<vmem>>, vector<1x1x1x1x24xf32>
    %488 = vector.shape_cast %487 : vector<1x1x1x1x24xf32> to vector<1x24xf32>
    %489 = vector.shape_cast %486 : vector<1x24xf32> to vector<1x1x1x1x24xf32>
    tpu.vector_store %arg2[%c4_854, %c2_855, %c0_856, %c0_857, %c0_858], %489 {strides = array<i32>} : memref<8x8x1x1x24xf32, #tpu.memory_space<vmem>>, vector<1x1x1x1x24xf32>,
    %c8_859 = arith.constant 8 : index
    %c6_860 = arith.constant 6 : index
    %c0_861 = arith.constant 0 : index
    %c0_862 = arith.constant 0 : index
    %c0_863 = arith.constant 0 : index
    %490 = vector.load %arg1[%c8_859, %c6_860, %c0_861, %c0_862, %c0_863] : memref<16x16x1x1x24xf32, #tpu.memory_space<vmem>>, vector<1x1x1x1x24xf32>
    %491 = vector.shape_cast %490 : vector<1x1x1x1x24xf32> to vector<1x24xf32>
    %c8_864 = arith.constant 8 : index
    %c7_865 = arith.constant 7 : index
    %c0_866 = arith.constant 0 : index
    %c0_867 = arith.constant 0 : index
    %c0_868 = arith.constant 0 : index
    %492 = vector.load %arg1[%c8_864, %c7_865, %c0_866, %c0_867, %c0_868] : memref<16x16x1x1x24xf32, #tpu.memory_space<vmem>>, vector<1x1x1x1x24xf32>
    %493 = vector.shape_cast %492 : vector<1x1x1x1x24xf32> to vector<1x24xf32>
    %494 = arith.maximumf %491, %493 : vector<1x24xf32>
    %c9_869 = arith.constant 9 : index
    %c6_870 = arith.constant 6 : index
    %c0_871 = arith.constant 0 : index
    %c0_872 = arith.constant 0 : index
    %c0_873 = arith.constant 0 : index
    %495 = vector.load %arg1[%c9_869, %c6_870, %c0_871, %c0_872, %c0_873] : memref<16x16x1x1x24xf32, #tpu.memory_space<vmem>>, vector<1x1x1x1x24xf32>
    %496 = vector.shape_cast %495 : vector<1x1x1x1x24xf32> to vector<1x24xf32>
    %497 = arith.maximumf %494, %496 : vector<1x24xf32>
    %c9_874 = arith.constant 9 : index
    %c7_875 = arith.constant 7 : index
    %c0_876 = arith.constant 0 : index
    %c0_877 = arith.constant 0 : index
    %c0_878 = arith.constant 0 : index
    %498 = vector.load %arg1[%c9_874, %c7_875, %c0_876, %c0_877, %c0_878] : memref<16x16x1x1x24xf32, #tpu.memory_space<vmem>>, vector<1x1x1x1x24xf32>
    %499 = vector.shape_cast %498 : vector<1x1x1x1x24xf32> to vector<1x24xf32>
    %500 = arith.maximumf %497, %499 : vector<1x24xf32>
    %c4_879 = arith.constant 4 : index
    %c3_880 = arith.constant 3 : index
    %c0_881 = arith.constant 0 : index
    %c0_882 = arith.constant 0 : index
    %c0_883 = arith.constant 0 : index
    %501 = vector.load %arg2[%c4_879, %c3_880, %c0_881, %c0_882, %c0_883] : memref<8x8x1x1x24xf32, #tpu.memory_space<vmem>>, vector<1x1x1x1x24xf32>
    %502 = vector.shape_cast %501 : vector<1x1x1x1x24xf32> to vector<1x24xf32>
    %503 = vector.shape_cast %500 : vector<1x24xf32> to vector<1x1x1x1x24xf32>
    tpu.vector_store %arg2[%c4_879, %c3_880, %c0_881, %c0_882, %c0_883], %503 {strides = array<i32>} : memref<8x8x1x1x24xf32, #tpu.memory_space<vmem>>, vector<1x1x1x1x24xf32>,
    %c8_884 = arith.constant 8 : index
    %c8_885 = arith.constant 8 : index
    %c0_886 = arith.constant 0 : index
    %c0_887 = arith.constant 0 : index
    %c0_888 = arith.constant 0 : index
    %504 = vector.load %arg1[%c8_884, %c8_885, %c0_886, %c0_887, %c0_888] : memref<16x16x1x1x24xf32, #tpu.memory_space<vmem>>, vector<1x1x1x1x24xf32>
    %505 = vector.shape_cast %504 : vector<1x1x1x1x24xf32> to vector<1x24xf32>
    %c8_889 = arith.constant 8 : index
    %c9_890 = arith.constant 9 : index
    %c0_891 = arith.constant 0 : index
    %c0_892 = arith.constant 0 : index
    %c0_893 = arith.constant 0 : index
    %506 = vector.load %arg1[%c8_889, %c9_890, %c0_891, %c0_892, %c0_893] : memref<16x16x1x1x24xf32, #tpu.memory_space<vmem>>, vector<1x1x1x1x24xf32>
    %507 = vector.shape_cast %506 : vector<1x1x1x1x24xf32> to vector<1x24xf32>
    %508 = arith.maximumf %505, %507 : vector<1x24xf32>
    %c9_894 = arith.constant 9 : index
    %c8_895 = arith.constant 8 : index
    %c0_896 = arith.constant 0 : index
    %c0_897 = arith.constant 0 : index
    %c0_898 = arith.constant 0 : index
    %509 = vector.load %arg1[%c9_894, %c8_895, %c0_896, %c0_897, %c0_898] : memref<16x16x1x1x24xf32, #tpu.memory_space<vmem>>, vector<1x1x1x1x24xf32>
    %510 = vector.shape_cast %509 : vector<1x1x1x1x24xf32> to vector<1x24xf32>
    %511 = arith.maximumf %508, %510 : vector<1x24xf32>
    %c9_899 = arith.constant 9 : index
    %c9_900 = arith.constant 9 : index
    %c0_901 = arith.constant 0 : index
    %c0_902 = arith.constant 0 : index
    %c0_903 = arith.constant 0 : index
    %512 = vector.load %arg1[%c9_899, %c9_900, %c0_901, %c0_902, %c0_903] : memref<16x16x1x1x24xf32, #tpu.memory_space<vmem>>, vector<1x1x1x1x24xf32>
    %513 = vector.shape_cast %512 : vector<1x1x1x1x24xf32> to vector<1x24xf32>
    %514 = arith.maximumf %511, %513 : vector<1x24xf32>
    %c4_904 = arith.constant 4 : index
    %c4_905 = arith.constant 4 : index
    %c0_906 = arith.constant 0 : index
    %c0_907 = arith.constant 0 : index
    %c0_908 = arith.constant 0 : index
    %515 = vector.load %arg2[%c4_904, %c4_905, %c0_906, %c0_907, %c0_908] : memref<8x8x1x1x24xf32, #tpu.memory_space<vmem>>, vector<1x1x1x1x24xf32>
    %516 = vector.shape_cast %515 : vector<1x1x1x1x24xf32> to vector<1x24xf32>
    %517 = vector.shape_cast %514 : vector<1x24xf32> to vector<1x1x1x1x24xf32>
    tpu.vector_store %arg2[%c4_904, %c4_905, %c0_906, %c0_907, %c0_908], %517 {strides = array<i32>} : memref<8x8x1x1x24xf32, #tpu.memory_space<vmem>>, vector<1x1x1x1x24xf32>,
    %c8_909 = arith.constant 8 : index
    %c10_910 = arith.constant 10 : index
    %c0_911 = arith.constant 0 : index
    %c0_912 = arith.constant 0 : index
    %c0_913 = arith.constant 0 : index
    %518 = vector.load %arg1[%c8_909, %c10_910, %c0_911, %c0_912, %c0_913] : memref<16x16x1x1x24xf32, #tpu.memory_space<vmem>>, vector<1x1x1x1x24xf32>
    %519 = vector.shape_cast %518 : vector<1x1x1x1x24xf32> to vector<1x24xf32>
    %c8_914 = arith.constant 8 : index
    %c11_915 = arith.constant 11 : index
    %c0_916 = arith.constant 0 : index
    %c0_917 = arith.constant 0 : index
    %c0_918 = arith.constant 0 : index
    %520 = vector.load %arg1[%c8_914, %c11_915, %c0_916, %c0_917, %c0_918] : memref<16x16x1x1x24xf32, #tpu.memory_space<vmem>>, vector<1x1x1x1x24xf32>
    %521 = vector.shape_cast %520 : vector<1x1x1x1x24xf32> to vector<1x24xf32>
    %522 = arith.maximumf %519, %521 : vector<1x24xf32>
    %c9_919 = arith.constant 9 : index
    %c10_920 = arith.constant 10 : index
    %c0_921 = arith.constant 0 : index
    %c0_922 = arith.constant 0 : index
    %c0_923 = arith.constant 0 : index
    %523 = vector.load %arg1[%c9_919, %c10_920, %c0_921, %c0_922, %c0_923] : memref<16x16x1x1x24xf32, #tpu.memory_space<vmem>>, vector<1x1x1x1x24xf32>
    %524 = vector.shape_cast %523 : vector<1x1x1x1x24xf32> to vector<1x24xf32>
    %525 = arith.maximumf %522, %524 : vector<1x24xf32>
    %c9_924 = arith.constant 9 : index
    %c11_925 = arith.constant 11 : index
    %c0_926 = arith.constant 0 : index
    %c0_927 = arith.constant 0 : index
    %c0_928 = arith.constant 0 : index
    %526 = vector.load %arg1[%c9_924, %c11_925, %c0_926, %c0_927, %c0_928] : memref<16x16x1x1x24xf32, #tpu.memory_space<vmem>>, vector<1x1x1x1x24xf32>
    %527 = vector.shape_cast %526 : vector<1x1x1x1x24xf32> to vector<1x24xf32>
    %528 = arith.maximumf %525, %527 : vector<1x24xf32>
    %c4_929 = arith.constant 4 : index
    %c5_930 = arith.constant 5 : index
    %c0_931 = arith.constant 0 : index
    %c0_932 = arith.constant 0 : index
    %c0_933 = arith.constant 0 : index
    %529 = vector.load %arg2[%c4_929, %c5_930, %c0_931, %c0_932, %c0_933] : memref<8x8x1x1x24xf32, #tpu.memory_space<vmem>>, vector<1x1x1x1x24xf32>
    %530 = vector.shape_cast %529 : vector<1x1x1x1x24xf32> to vector<1x24xf32>
    %531 = vector.shape_cast %528 : vector<1x24xf32> to vector<1x1x1x1x24xf32>
    tpu.vector_store %arg2[%c4_929, %c5_930, %c0_931, %c0_932, %c0_933], %531 {strides = array<i32>} : memref<8x8x1x1x24xf32, #tpu.memory_space<vmem>>, vector<1x1x1x1x24xf32>,
    %c8_934 = arith.constant 8 : index
    %c12_935 = arith.constant 12 : index
    %c0_936 = arith.constant 0 : index
    %c0_937 = arith.constant 0 : index
    %c0_938 = arith.constant 0 : index
    %532 = vector.load %arg1[%c8_934, %c12_935, %c0_936, %c0_937, %c0_938] : memref<16x16x1x1x24xf32, #tpu.memory_space<vmem>>, vector<1x1x1x1x24xf32>
    %533 = vector.shape_cast %532 : vector<1x1x1x1x24xf32> to vector<1x24xf32>
    %c8_939 = arith.constant 8 : index
    %c13_940 = arith.constant 13 : index
    %c0_941 = arith.constant 0 : index
    %c0_942 = arith.constant 0 : index
    %c0_943 = arith.constant 0 : index
    %534 = vector.load %arg1[%c8_939, %c13_940, %c0_941, %c0_942, %c0_943] : memref<16x16x1x1x24xf32, #tpu.memory_space<vmem>>, vector<1x1x1x1x24xf32>
    %535 = vector.shape_cast %534 : vector<1x1x1x1x24xf32> to vector<1x24xf32>
    %536 = arith.maximumf %533, %535 : vector<1x24xf32>
    %c9_944 = arith.constant 9 : index
    %c12_945 = arith.constant 12 : index
    %c0_946 = arith.constant 0 : index
    %c0_947 = arith.constant 0 : index
    %c0_948 = arith.constant 0 : index
    %537 = vector.load %arg1[%c9_944, %c12_945, %c0_946, %c0_947, %c0_948] : memref<16x16x1x1x24xf32, #tpu.memory_space<vmem>>, vector<1x1x1x1x24xf32>
    %538 = vector.shape_cast %537 : vector<1x1x1x1x24xf32> to vector<1x24xf32>
    %539 = arith.maximumf %536, %538 : vector<1x24xf32>
    %c9_949 = arith.constant 9 : index
    %c13_950 = arith.constant 13 : index
    %c0_951 = arith.constant 0 : index
    %c0_952 = arith.constant 0 : index
    %c0_953 = arith.constant 0 : index
    %540 = vector.load %arg1[%c9_949, %c13_950, %c0_951, %c0_952, %c0_953] : memref<16x16x1x1x24xf32, #tpu.memory_space<vmem>>, vector<1x1x1x1x24xf32>
    %541 = vector.shape_cast %540 : vector<1x1x1x1x24xf32> to vector<1x24xf32>
    %542 = arith.maximumf %539, %541 : vector<1x24xf32>
    %c4_954 = arith.constant 4 : index
    %c6_955 = arith.constant 6 : index
    %c0_956 = arith.constant 0 : index
    %c0_957 = arith.constant 0 : index
    %c0_958 = arith.constant 0 : index
    %543 = vector.load %arg2[%c4_954, %c6_955, %c0_956, %c0_957, %c0_958] : memref<8x8x1x1x24xf32, #tpu.memory_space<vmem>>, vector<1x1x1x1x24xf32>
    %544 = vector.shape_cast %543 : vector<1x1x1x1x24xf32> to vector<1x24xf32>
    %545 = vector.shape_cast %542 : vector<1x24xf32> to vector<1x1x1x1x24xf32>
    tpu.vector_store %arg2[%c4_954, %c6_955, %c0_956, %c0_957, %c0_958], %545 {strides = array<i32>} : memref<8x8x1x1x24xf32, #tpu.memory_space<vmem>>, vector<1x1x1x1x24xf32>,
    %c8_959 = arith.constant 8 : index
    %c14_960 = arith.constant 14 : index
    %c0_961 = arith.constant 0 : index
    %c0_962 = arith.constant 0 : index
    %c0_963 = arith.constant 0 : index
    %546 = vector.load %arg1[%c8_959, %c14_960, %c0_961, %c0_962, %c0_963] : memref<16x16x1x1x24xf32, #tpu.memory_space<vmem>>, vector<1x1x1x1x24xf32>
    %547 = vector.shape_cast %546 : vector<1x1x1x1x24xf32> to vector<1x24xf32>
    %c8_964 = arith.constant 8 : index
    %c15_965 = arith.constant 15 : index
    %c0_966 = arith.constant 0 : index
    %c0_967 = arith.constant 0 : index
    %c0_968 = arith.constant 0 : index
    %548 = vector.load %arg1[%c8_964, %c15_965, %c0_966, %c0_967, %c0_968] : memref<16x16x1x1x24xf32, #tpu.memory_space<vmem>>, vector<1x1x1x1x24xf32>
    %549 = vector.shape_cast %548 : vector<1x1x1x1x24xf32> to vector<1x24xf32>
    %550 = arith.maximumf %547, %549 : vector<1x24xf32>
    %c9_969 = arith.constant 9 : index
    %c14_970 = arith.constant 14 : index
    %c0_971 = arith.constant 0 : index
    %c0_972 = arith.constant 0 : index
    %c0_973 = arith.constant 0 : index
    %551 = vector.load %arg1[%c9_969, %c14_970, %c0_971, %c0_972, %c0_973] : memref<16x16x1x1x24xf32, #tpu.memory_space<vmem>>, vector<1x1x1x1x24xf32>
    %552 = vector.shape_cast %551 : vector<1x1x1x1x24xf32> to vector<1x24xf32>
    %553 = arith.maximumf %550, %552 : vector<1x24xf32>
    %c9_974 = arith.constant 9 : index
    %c15_975 = arith.constant 15 : index
    %c0_976 = arith.constant 0 : index
    %c0_977 = arith.constant 0 : index
    %c0_978 = arith.constant 0 : index
    %554 = vector.load %arg1[%c9_974, %c15_975, %c0_976, %c0_977, %c0_978] : memref<16x16x1x1x24xf32, #tpu.memory_space<vmem>>, vector<1x1x1x1x24xf32>
    %555 = vector.shape_cast %554 : vector<1x1x1x1x24xf32> to vector<1x24xf32>
    %556 = arith.maximumf %553, %555 : vector<1x24xf32>
    %c4_979 = arith.constant 4 : index
    %c7_980 = arith.constant 7 : index
    %c0_981 = arith.constant 0 : index
    %c0_982 = arith.constant 0 : index
    %c0_983 = arith.constant 0 : index
    %557 = vector.load %arg2[%c4_979, %c7_980, %c0_981, %c0_982, %c0_983] : memref<8x8x1x1x24xf32, #tpu.memory_space<vmem>>, vector<1x1x1x1x24xf32>
    %558 = vector.shape_cast %557 : vector<1x1x1x1x24xf32> to vector<1x24xf32>
    %559 = vector.shape_cast %556 : vector<1x24xf32> to vector<1x1x1x1x24xf32>
    tpu.vector_store %arg2[%c4_979, %c7_980, %c0_981, %c0_982, %c0_983], %559 {strides = array<i32>} : memref<8x8x1x1x24xf32, #tpu.memory_space<vmem>>, vector<1x1x1x1x24xf32>,
    %c10_984 = arith.constant 10 : index
    %c0_985 = arith.constant 0 : index
    %c0_986 = arith.constant 0 : index
    %c0_987 = arith.constant 0 : index
    %c0_988 = arith.constant 0 : index
    %560 = vector.load %arg1[%c10_984, %c0_985, %c0_986, %c0_987, %c0_988] : memref<16x16x1x1x24xf32, #tpu.memory_space<vmem>>, vector<1x1x1x1x24xf32>
    %561 = vector.shape_cast %560 : vector<1x1x1x1x24xf32> to vector<1x24xf32>
    %c10_989 = arith.constant 10 : index
    %c1_990 = arith.constant 1 : index
    %c0_991 = arith.constant 0 : index
    %c0_992 = arith.constant 0 : index
    %c0_993 = arith.constant 0 : index
    %562 = vector.load %arg1[%c10_989, %c1_990, %c0_991, %c0_992, %c0_993] : memref<16x16x1x1x24xf32, #tpu.memory_space<vmem>>, vector<1x1x1x1x24xf32>
    %563 = vector.shape_cast %562 : vector<1x1x1x1x24xf32> to vector<1x24xf32>
    %564 = arith.maximumf %561, %563 : vector<1x24xf32>
    %c11_994 = arith.constant 11 : index
    %c0_995 = arith.constant 0 : index
    %c0_996 = arith.constant 0 : index
    %c0_997 = arith.constant 0 : index
    %c0_998 = arith.constant 0 : index
    %565 = vector.load %arg1[%c11_994, %c0_995, %c0_996, %c0_997, %c0_998] : memref<16x16x1x1x24xf32, #tpu.memory_space<vmem>>, vector<1x1x1x1x24xf32>
    %566 = vector.shape_cast %565 : vector<1x1x1x1x24xf32> to vector<1x24xf32>
    %567 = arith.maximumf %564, %566 : vector<1x24xf32>
    %c11_999 = arith.constant 11 : index
    %c1_1000 = arith.constant 1 : index
    %c0_1001 = arith.constant 0 : index
    %c0_1002 = arith.constant 0 : index
    %c0_1003 = arith.constant 0 : index
    %568 = vector.load %arg1[%c11_999, %c1_1000, %c0_1001, %c0_1002, %c0_1003] : memref<16x16x1x1x24xf32, #tpu.memory_space<vmem>>, vector<1x1x1x1x24xf32>
    %569 = vector.shape_cast %568 : vector<1x1x1x1x24xf32> to vector<1x24xf32>
    %570 = arith.maximumf %567, %569 : vector<1x24xf32>
    %c5_1004 = arith.constant 5 : index
    %c0_1005 = arith.constant 0 : index
    %c0_1006 = arith.constant 0 : index
    %c0_1007 = arith.constant 0 : index
    %c0_1008 = arith.constant 0 : index
    %571 = vector.load %arg2[%c5_1004, %c0_1005, %c0_1006, %c0_1007, %c0_1008] : memref<8x8x1x1x24xf32, #tpu.memory_space<vmem>>, vector<1x1x1x1x24xf32>
    %572 = vector.shape_cast %571 : vector<1x1x1x1x24xf32> to vector<1x24xf32>
    %573 = vector.shape_cast %570 : vector<1x24xf32> to vector<1x1x1x1x24xf32>
    tpu.vector_store %arg2[%c5_1004, %c0_1005, %c0_1006, %c0_1007, %c0_1008], %573 {strides = array<i32>} : memref<8x8x1x1x24xf32, #tpu.memory_space<vmem>>, vector<1x1x1x1x24xf32>,
    %c10_1009 = arith.constant 10 : index
    %c2_1010 = arith.constant 2 : index
    %c0_1011 = arith.constant 0 : index
    %c0_1012 = arith.constant 0 : index
    %c0_1013 = arith.constant 0 : index
    %574 = vector.load %arg1[%c10_1009, %c2_1010, %c0_1011, %c0_1012, %c0_1013] : memref<16x16x1x1x24xf32, #tpu.memory_space<vmem>>, vector<1x1x1x1x24xf32>
    %575 = vector.shape_cast %574 : vector<1x1x1x1x24xf32> to vector<1x24xf32>
    %c10_1014 = arith.constant 10 : index
    %c3_1015 = arith.constant 3 : index
    %c0_1016 = arith.constant 0 : index
    %c0_1017 = arith.constant 0 : index
    %c0_1018 = arith.constant 0 : index
    %576 = vector.load %arg1[%c10_1014, %c3_1015, %c0_1016, %c0_1017, %c0_1018] : memref<16x16x1x1x24xf32, #tpu.memory_space<vmem>>, vector<1x1x1x1x24xf32>
    %577 = vector.shape_cast %576 : vector<1x1x1x1x24xf32> to vector<1x24xf32>
    %578 = arith.maximumf %575, %577 : vector<1x24xf32>
    %c11_1019 = arith.constant 11 : index
    %c2_1020 = arith.constant 2 : index
    %c0_1021 = arith.constant 0 : index
    %c0_1022 = arith.constant 0 : index
    %c0_1023 = arith.constant 0 : index
    %579 = vector.load %arg1[%c11_1019, %c2_1020, %c0_1021, %c0_1022, %c0_1023] : memref<16x16x1x1x24xf32, #tpu.memory_space<vmem>>, vector<1x1x1x1x24xf32>
    %580 = vector.shape_cast %579 : vector<1x1x1x1x24xf32> to vector<1x24xf32>
    %581 = arith.maximumf %578, %580 : vector<1x24xf32>
    %c11_1024 = arith.constant 11 : index
    %c3_1025 = arith.constant 3 : index
    %c0_1026 = arith.constant 0 : index
    %c0_1027 = arith.constant 0 : index
    %c0_1028 = arith.constant 0 : index
    %582 = vector.load %arg1[%c11_1024, %c3_1025, %c0_1026, %c0_1027, %c0_1028] : memref<16x16x1x1x24xf32, #tpu.memory_space<vmem>>, vector<1x1x1x1x24xf32>
    %583 = vector.shape_cast %582 : vector<1x1x1x1x24xf32> to vector<1x24xf32>
    %584 = arith.maximumf %581, %583 : vector<1x24xf32>
    %c5_1029 = arith.constant 5 : index
    %c1_1030 = arith.constant 1 : index
    %c0_1031 = arith.constant 0 : index
    %c0_1032 = arith.constant 0 : index
    %c0_1033 = arith.constant 0 : index
    %585 = vector.load %arg2[%c5_1029, %c1_1030, %c0_1031, %c0_1032, %c0_1033] : memref<8x8x1x1x24xf32, #tpu.memory_space<vmem>>, vector<1x1x1x1x24xf32>
    %586 = vector.shape_cast %585 : vector<1x1x1x1x24xf32> to vector<1x24xf32>
    %587 = vector.shape_cast %584 : vector<1x24xf32> to vector<1x1x1x1x24xf32>
    tpu.vector_store %arg2[%c5_1029, %c1_1030, %c0_1031, %c0_1032, %c0_1033], %587 {strides = array<i32>} : memref<8x8x1x1x24xf32, #tpu.memory_space<vmem>>, vector<1x1x1x1x24xf32>,
    %c10_1034 = arith.constant 10 : index
    %c4_1035 = arith.constant 4 : index
    %c0_1036 = arith.constant 0 : index
    %c0_1037 = arith.constant 0 : index
    %c0_1038 = arith.constant 0 : index
    %588 = vector.load %arg1[%c10_1034, %c4_1035, %c0_1036, %c0_1037, %c0_1038] : memref<16x16x1x1x24xf32, #tpu.memory_space<vmem>>, vector<1x1x1x1x24xf32>
    %589 = vector.shape_cast %588 : vector<1x1x1x1x24xf32> to vector<1x24xf32>
    %c10_1039 = arith.constant 10 : index
    %c5_1040 = arith.constant 5 : index
    %c0_1041 = arith.constant 0 : index
    %c0_1042 = arith.constant 0 : index
    %c0_1043 = arith.constant 0 : index
    %590 = vector.load %arg1[%c10_1039, %c5_1040, %c0_1041, %c0_1042, %c0_1043] : memref<16x16x1x1x24xf32, #tpu.memory_space<vmem>>, vector<1x1x1x1x24xf32>
    %591 = vector.shape_cast %590 : vector<1x1x1x1x24xf32> to vector<1x24xf32>
    %592 = arith.maximumf %589, %591 : vector<1x24xf32>
    %c11_1044 = arith.constant 11 : index
    %c4_1045 = arith.constant 4 : index
    %c0_1046 = arith.constant 0 : index
    %c0_1047 = arith.constant 0 : index
    %c0_1048 = arith.constant 0 : index
    %593 = vector.load %arg1[%c11_1044, %c4_1045, %c0_1046, %c0_1047, %c0_1048] : memref<16x16x1x1x24xf32, #tpu.memory_space<vmem>>, vector<1x1x1x1x24xf32>
    %594 = vector.shape_cast %593 : vector<1x1x1x1x24xf32> to vector<1x24xf32>
    %595 = arith.maximumf %592, %594 : vector<1x24xf32>
    %c11_1049 = arith.constant 11 : index
    %c5_1050 = arith.constant 5 : index
    %c0_1051 = arith.constant 0 : index
    %c0_1052 = arith.constant 0 : index
    %c0_1053 = arith.constant 0 : index
    %596 = vector.load %arg1[%c11_1049, %c5_1050, %c0_1051, %c0_1052, %c0_1053] : memref<16x16x1x1x24xf32, #tpu.memory_space<vmem>>, vector<1x1x1x1x24xf32>
    %597 = vector.shape_cast %596 : vector<1x1x1x1x24xf32> to vector<1x24xf32>
    %598 = arith.maximumf %595, %597 : vector<1x24xf32>
    %c5_1054 = arith.constant 5 : index
    %c2_1055 = arith.constant 2 : index
    %c0_1056 = arith.constant 0 : index
    %c0_1057 = arith.constant 0 : index
    %c0_1058 = arith.constant 0 : index
    %599 = vector.load %arg2[%c5_1054, %c2_1055, %c0_1056, %c0_1057, %c0_1058] : memref<8x8x1x1x24xf32, #tpu.memory_space<vmem>>, vector<1x1x1x1x24xf32>
    %600 = vector.shape_cast %599 : vector<1x1x1x1x24xf32> to vector<1x24xf32>
    %601 = vector.shape_cast %598 : vector<1x24xf32> to vector<1x1x1x1x24xf32>
    tpu.vector_store %arg2[%c5_1054, %c2_1055, %c0_1056, %c0_1057, %c0_1058], %601 {strides = array<i32>} : memref<8x8x1x1x24xf32, #tpu.memory_space<vmem>>, vector<1x1x1x1x24xf32>,
    %c10_1059 = arith.constant 10 : index
    %c6_1060 = arith.constant 6 : index
    %c0_1061 = arith.constant 0 : index
    %c0_1062 = arith.constant 0 : index
    %c0_1063 = arith.constant 0 : index
    %602 = vector.load %arg1[%c10_1059, %c6_1060, %c0_1061, %c0_1062, %c0_1063] : memref<16x16x1x1x24xf32, #tpu.memory_space<vmem>>, vector<1x1x1x1x24xf32>
    %603 = vector.shape_cast %602 : vector<1x1x1x1x24xf32> to vector<1x24xf32>
    %c10_1064 = arith.constant 10 : index
    %c7_1065 = arith.constant 7 : index
    %c0_1066 = arith.constant 0 : index
    %c0_1067 = arith.constant 0 : index
    %c0_1068 = arith.constant 0 : index
    %604 = vector.load %arg1[%c10_1064, %c7_1065, %c0_1066, %c0_1067, %c0_1068] : memref<16x16x1x1x24xf32, #tpu.memory_space<vmem>>, vector<1x1x1x1x24xf32>
    %605 = vector.shape_cast %604 : vector<1x1x1x1x24xf32> to vector<1x24xf32>
    %606 = arith.maximumf %603, %605 : vector<1x24xf32>
    %c11_1069 = arith.constant 11 : index
    %c6_1070 = arith.constant 6 : index
    %c0_1071 = arith.constant 0 : index
    %c0_1072 = arith.constant 0 : index
    %c0_1073 = arith.constant 0 : index
    %607 = vector.load %arg1[%c11_1069, %c6_1070, %c0_1071, %c0_1072, %c0_1073] : memref<16x16x1x1x24xf32, #tpu.memory_space<vmem>>, vector<1x1x1x1x24xf32>
    %608 = vector.shape_cast %607 : vector<1x1x1x1x24xf32> to vector<1x24xf32>
    %609 = arith.maximumf %606, %608 : vector<1x24xf32>
    %c11_1074 = arith.constant 11 : index
    %c7_1075 = arith.constant 7 : index
    %c0_1076 = arith.constant 0 : index
    %c0_1077 = arith.constant 0 : index
    %c0_1078 = arith.constant 0 : index
    %610 = vector.load %arg1[%c11_1074, %c7_1075, %c0_1076, %c0_1077, %c0_1078] : memref<16x16x1x1x24xf32, #tpu.memory_space<vmem>>, vector<1x1x1x1x24xf32>
    %611 = vector.shape_cast %610 : vector<1x1x1x1x24xf32> to vector<1x24xf32>
    %612 = arith.maximumf %609, %611 : vector<1x24xf32>
    %c5_1079 = arith.constant 5 : index
    %c3_1080 = arith.constant 3 : index
    %c0_1081 = arith.constant 0 : index
    %c0_1082 = arith.constant 0 : index
    %c0_1083 = arith.constant 0 : index
    %613 = vector.load %arg2[%c5_1079, %c3_1080, %c0_1081, %c0_1082, %c0_1083] : memref<8x8x1x1x24xf32, #tpu.memory_space<vmem>>, vector<1x1x1x1x24xf32>
    %614 = vector.shape_cast %613 : vector<1x1x1x1x24xf32> to vector<1x24xf32>
    %615 = vector.shape_cast %612 : vector<1x24xf32> to vector<1x1x1x1x24xf32>
    tpu.vector_store %arg2[%c5_1079, %c3_1080, %c0_1081, %c0_1082, %c0_1083], %615 {strides = array<i32>} : memref<8x8x1x1x24xf32, #tpu.memory_space<vmem>>, vector<1x1x1x1x24xf32>,
    %c10_1084 = arith.constant 10 : index
    %c8_1085 = arith.constant 8 : index
    %c0_1086 = arith.constant 0 : index
    %c0_1087 = arith.constant 0 : index
    %c0_1088 = arith.constant 0 : index
    %616 = vector.load %arg1[%c10_1084, %c8_1085, %c0_1086, %c0_1087, %c0_1088] : memref<16x16x1x1x24xf32, #tpu.memory_space<vmem>>, vector<1x1x1x1x24xf32>
    %617 = vector.shape_cast %616 : vector<1x1x1x1x24xf32> to vector<1x24xf32>
    %c10_1089 = arith.constant 10 : index
    %c9_1090 = arith.constant 9 : index
    %c0_1091 = arith.constant 0 : index
    %c0_1092 = arith.constant 0 : index
    %c0_1093 = arith.constant 0 : index
    %618 = vector.load %arg1[%c10_1089, %c9_1090, %c0_1091, %c0_1092, %c0_1093] : memref<16x16x1x1x24xf32, #tpu.memory_space<vmem>>, vector<1x1x1x1x24xf32>
    %619 = vector.shape_cast %618 : vector<1x1x1x1x24xf32> to vector<1x24xf32>
    %620 = arith.maximumf %617, %619 : vector<1x24xf32>
    %c11_1094 = arith.constant 11 : index
    %c8_1095 = arith.constant 8 : index
    %c0_1096 = arith.constant 0 : index
    %c0_1097 = arith.constant 0 : index
    %c0_1098 = arith.constant 0 : index
    %621 = vector.load %arg1[%c11_1094, %c8_1095, %c0_1096, %c0_1097, %c0_1098] : memref<16x16x1x1x24xf32, #tpu.memory_space<vmem>>, vector<1x1x1x1x24xf32>
    %622 = vector.shape_cast %621 : vector<1x1x1x1x24xf32> to vector<1x24xf32>
    %623 = arith.maximumf %620, %622 : vector<1x24xf32>
    %c11_1099 = arith.constant 11 : index
    %c9_1100 = arith.constant 9 : index
    %c0_1101 = arith.constant 0 : index
    %c0_1102 = arith.constant 0 : index
    %c0_1103 = arith.constant 0 : index
    %624 = vector.load %arg1[%c11_1099, %c9_1100, %c0_1101, %c0_1102, %c0_1103] : memref<16x16x1x1x24xf32, #tpu.memory_space<vmem>>, vector<1x1x1x1x24xf32>
    %625 = vector.shape_cast %624 : vector<1x1x1x1x24xf32> to vector<1x24xf32>
    %626 = arith.maximumf %623, %625 : vector<1x24xf32>
    %c5_1104 = arith.constant 5 : index
    %c4_1105 = arith.constant 4 : index
    %c0_1106 = arith.constant 0 : index
    %c0_1107 = arith.constant 0 : index
    %c0_1108 = arith.constant 0 : index
    %627 = vector.load %arg2[%c5_1104, %c4_1105, %c0_1106, %c0_1107, %c0_1108] : memref<8x8x1x1x24xf32, #tpu.memory_space<vmem>>, vector<1x1x1x1x24xf32>
    %628 = vector.shape_cast %627 : vector<1x1x1x1x24xf32> to vector<1x24xf32>
    %629 = vector.shape_cast %626 : vector<1x24xf32> to vector<1x1x1x1x24xf32>
    tpu.vector_store %arg2[%c5_1104, %c4_1105, %c0_1106, %c0_1107, %c0_1108], %629 {strides = array<i32>} : memref<8x8x1x1x24xf32, #tpu.memory_space<vmem>>, vector<1x1x1x1x24xf32>,
    %c10_1109 = arith.constant 10 : index
    %c10_1110 = arith.constant 10 : index
    %c0_1111 = arith.constant 0 : index
    %c0_1112 = arith.constant 0 : index
    %c0_1113 = arith.constant 0 : index
    %630 = vector.load %arg1[%c10_1109, %c10_1110, %c0_1111, %c0_1112, %c0_1113] : memref<16x16x1x1x24xf32, #tpu.memory_space<vmem>>, vector<1x1x1x1x24xf32>
    %631 = vector.shape_cast %630 : vector<1x1x1x1x24xf32> to vector<1x24xf32>
    %c10_1114 = arith.constant 10 : index
    %c11_1115 = arith.constant 11 : index
    %c0_1116 = arith.constant 0 : index
    %c0_1117 = arith.constant 0 : index
    %c0_1118 = arith.constant 0 : index
    %632 = vector.load %arg1[%c10_1114, %c11_1115, %c0_1116, %c0_1117, %c0_1118] : memref<16x16x1x1x24xf32, #tpu.memory_space<vmem>>, vector<1x1x1x1x24xf32>
    %633 = vector.shape_cast %632 : vector<1x1x1x1x24xf32> to vector<1x24xf32>
    %634 = arith.maximumf %631, %633 : vector<1x24xf32>
    %c11_1119 = arith.constant 11 : index
    %c10_1120 = arith.constant 10 : index
    %c0_1121 = arith.constant 0 : index
    %c0_1122 = arith.constant 0 : index
    %c0_1123 = arith.constant 0 : index
    %635 = vector.load %arg1[%c11_1119, %c10_1120, %c0_1121, %c0_1122, %c0_1123] : memref<16x16x1x1x24xf32, #tpu.memory_space<vmem>>, vector<1x1x1x1x24xf32>
    %636 = vector.shape_cast %635 : vector<1x1x1x1x24xf32> to vector<1x24xf32>
    %637 = arith.maximumf %634, %636 : vector<1x24xf32>
    %c11_1124 = arith.constant 11 : index
    %c11_1125 = arith.constant 11 : index
    %c0_1126 = arith.constant 0 : index
    %c0_1127 = arith.constant 0 : index
    %c0_1128 = arith.constant 0 : index
    %638 = vector.load %arg1[%c11_1124, %c11_1125, %c0_1126, %c0_1127, %c0_1128] : memref<16x16x1x1x24xf32, #tpu.memory_space<vmem>>, vector<1x1x1x1x24xf32>
    %639 = vector.shape_cast %638 : vector<1x1x1x1x24xf32> to vector<1x24xf32>
    %640 = arith.maximumf %637, %639 : vector<1x24xf32>
    %c5_1129 = arith.constant 5 : index
    %c5_1130 = arith.constant 5 : index
    %c0_1131 = arith.constant 0 : index
    %c0_1132 = arith.constant 0 : index
    %c0_1133 = arith.constant 0 : index
    %641 = vector.load %arg2[%c5_1129, %c5_1130, %c0_1131, %c0_1132, %c0_1133] : memref<8x8x1x1x24xf32, #tpu.memory_space<vmem>>, vector<1x1x1x1x24xf32>
    %642 = vector.shape_cast %641 : vector<1x1x1x1x24xf32> to vector<1x24xf32>
    %643 = vector.shape_cast %640 : vector<1x24xf32> to vector<1x1x1x1x24xf32>
    tpu.vector_store %arg2[%c5_1129, %c5_1130, %c0_1131, %c0_1132, %c0_1133], %643 {strides = array<i32>} : memref<8x8x1x1x24xf32, #tpu.memory_space<vmem>>, vector<1x1x1x1x24xf32>,
    %c10_1134 = arith.constant 10 : index
    %c12_1135 = arith.constant 12 : index
    %c0_1136 = arith.constant 0 : index
    %c0_1137 = arith.constant 0 : index
    %c0_1138 = arith.constant 0 : index
    %644 = vector.load %arg1[%c10_1134, %c12_1135, %c0_1136, %c0_1137, %c0_1138] : memref<16x16x1x1x24xf32, #tpu.memory_space<vmem>>, vector<1x1x1x1x24xf32>
    %645 = vector.shape_cast %644 : vector<1x1x1x1x24xf32> to vector<1x24xf32>
    %c10_1139 = arith.constant 10 : index
    %c13_1140 = arith.constant 13 : index
    %c0_1141 = arith.constant 0 : index
    %c0_1142 = arith.constant 0 : index
    %c0_1143 = arith.constant 0 : index
    %646 = vector.load %arg1[%c10_1139, %c13_1140, %c0_1141, %c0_1142, %c0_1143] : memref<16x16x1x1x24xf32, #tpu.memory_space<vmem>>, vector<1x1x1x1x24xf32>
    %647 = vector.shape_cast %646 : vector<1x1x1x1x24xf32> to vector<1x24xf32>
    %648 = arith.maximumf %645, %647 : vector<1x24xf32>
    %c11_1144 = arith.constant 11 : index
    %c12_1145 = arith.constant 12 : index
    %c0_1146 = arith.constant 0 : index
    %c0_1147 = arith.constant 0 : index
    %c0_1148 = arith.constant 0 : index
    %649 = vector.load %arg1[%c11_1144, %c12_1145, %c0_1146, %c0_1147, %c0_1148] : memref<16x16x1x1x24xf32, #tpu.memory_space<vmem>>, vector<1x1x1x1x24xf32>
    %650 = vector.shape_cast %649 : vector<1x1x1x1x24xf32> to vector<1x24xf32>
    %651 = arith.maximumf %648, %650 : vector<1x24xf32>
    %c11_1149 = arith.constant 11 : index
    %c13_1150 = arith.constant 13 : index
    %c0_1151 = arith.constant 0 : index
    %c0_1152 = arith.constant 0 : index
    %c0_1153 = arith.constant 0 : index
    %652 = vector.load %arg1[%c11_1149, %c13_1150, %c0_1151, %c0_1152, %c0_1153] : memref<16x16x1x1x24xf32, #tpu.memory_space<vmem>>, vector<1x1x1x1x24xf32>
    %653 = vector.shape_cast %652 : vector<1x1x1x1x24xf32> to vector<1x24xf32>
    %654 = arith.maximumf %651, %653 : vector<1x24xf32>
    %c5_1154 = arith.constant 5 : index
    %c6_1155 = arith.constant 6 : index
    %c0_1156 = arith.constant 0 : index
    %c0_1157 = arith.constant 0 : index
    %c0_1158 = arith.constant 0 : index
    %655 = vector.load %arg2[%c5_1154, %c6_1155, %c0_1156, %c0_1157, %c0_1158] : memref<8x8x1x1x24xf32, #tpu.memory_space<vmem>>, vector<1x1x1x1x24xf32>
    %656 = vector.shape_cast %655 : vector<1x1x1x1x24xf32> to vector<1x24xf32>
    %657 = vector.shape_cast %654 : vector<1x24xf32> to vector<1x1x1x1x24xf32>
    tpu.vector_store %arg2[%c5_1154, %c6_1155, %c0_1156, %c0_1157, %c0_1158], %657 {strides = array<i32>} : memref<8x8x1x1x24xf32, #tpu.memory_space<vmem>>, vector<1x1x1x1x24xf32>,
    %c10_1159 = arith.constant 10 : index
    %c14_1160 = arith.constant 14 : index
    %c0_1161 = arith.constant 0 : index
    %c0_1162 = arith.constant 0 : index
    %c0_1163 = arith.constant 0 : index
    %658 = vector.load %arg1[%c10_1159, %c14_1160, %c0_1161, %c0_1162, %c0_1163] : memref<16x16x1x1x24xf32, #tpu.memory_space<vmem>>, vector<1x1x1x1x24xf32>
    %659 = vector.shape_cast %658 : vector<1x1x1x1x24xf32> to vector<1x24xf32>
    %c10_1164 = arith.constant 10 : index
    %c15_1165 = arith.constant 15 : index
    %c0_1166 = arith.constant 0 : index
    %c0_1167 = arith.constant 0 : index
    %c0_1168 = arith.constant 0 : index
    %660 = vector.load %arg1[%c10_1164, %c15_1165, %c0_1166, %c0_1167, %c0_1168] : memref<16x16x1x1x24xf32, #tpu.memory_space<vmem>>, vector<1x1x1x1x24xf32>
    %661 = vector.shape_cast %660 : vector<1x1x1x1x24xf32> to vector<1x24xf32>
    %662 = arith.maximumf %659, %661 : vector<1x24xf32>
    %c11_1169 = arith.constant 11 : index
    %c14_1170 = arith.constant 14 : index
    %c0_1171 = arith.constant 0 : index
    %c0_1172 = arith.constant 0 : index
    %c0_1173 = arith.constant 0 : index
    %663 = vector.load %arg1[%c11_1169, %c14_1170, %c0_1171, %c0_1172, %c0_1173] : memref<16x16x1x1x24xf32, #tpu.memory_space<vmem>>, vector<1x1x1x1x24xf32>
    %664 = vector.shape_cast %663 : vector<1x1x1x1x24xf32> to vector<1x24xf32>
    %665 = arith.maximumf %662, %664 : vector<1x24xf32>
    %c11_1174 = arith.constant 11 : index
    %c15_1175 = arith.constant 15 : index
    %c0_1176 = arith.constant 0 : index
    %c0_1177 = arith.constant 0 : index
    %c0_1178 = arith.constant 0 : index
    %666 = vector.load %arg1[%c11_1174, %c15_1175, %c0_1176, %c0_1177, %c0_1178] : memref<16x16x1x1x24xf32, #tpu.memory_space<vmem>>, vector<1x1x1x1x24xf32>
    %667 = vector.shape_cast %666 : vector<1x1x1x1x24xf32> to vector<1x24xf32>
    %668 = arith.maximumf %665, %667 : vector<1x24xf32>
    %c5_1179 = arith.constant 5 : index
    %c7_1180 = arith.constant 7 : index
    %c0_1181 = arith.constant 0 : index
    %c0_1182 = arith.constant 0 : index
    %c0_1183 = arith.constant 0 : index
    %669 = vector.load %arg2[%c5_1179, %c7_1180, %c0_1181, %c0_1182, %c0_1183] : memref<8x8x1x1x24xf32, #tpu.memory_space<vmem>>, vector<1x1x1x1x24xf32>
    %670 = vector.shape_cast %669 : vector<1x1x1x1x24xf32> to vector<1x24xf32>
    %671 = vector.shape_cast %668 : vector<1x24xf32> to vector<1x1x1x1x24xf32>
    tpu.vector_store %arg2[%c5_1179, %c7_1180, %c0_1181, %c0_1182, %c0_1183], %671 {strides = array<i32>} : memref<8x8x1x1x24xf32, #tpu.memory_space<vmem>>, vector<1x1x1x1x24xf32>,
    %c12_1184 = arith.constant 12 : index
    %c0_1185 = arith.constant 0 : index
    %c0_1186 = arith.constant 0 : index
    %c0_1187 = arith.constant 0 : index
    %c0_1188 = arith.constant 0 : index
    %672 = vector.load %arg1[%c12_1184, %c0_1185, %c0_1186, %c0_1187, %c0_1188] : memref<16x16x1x1x24xf32, #tpu.memory_space<vmem>>, vector<1x1x1x1x24xf32>
    %673 = vector.shape_cast %672 : vector<1x1x1x1x24xf32> to vector<1x24xf32>
    %c12_1189 = arith.constant 12 : index
    %c1_1190 = arith.constant 1 : index
    %c0_1191 = arith.constant 0 : index
    %c0_1192 = arith.constant 0 : index
    %c0_1193 = arith.constant 0 : index
    %674 = vector.load %arg1[%c12_1189, %c1_1190, %c0_1191, %c0_1192, %c0_1193] : memref<16x16x1x1x24xf32, #tpu.memory_space<vmem>>, vector<1x1x1x1x24xf32>
    %675 = vector.shape_cast %674 : vector<1x1x1x1x24xf32> to vector<1x24xf32>
    %676 = arith.maximumf %673, %675 : vector<1x24xf32>
    %c13_1194 = arith.constant 13 : index
    %c0_1195 = arith.constant 0 : index
    %c0_1196 = arith.constant 0 : index
    %c0_1197 = arith.constant 0 : index
    %c0_1198 = arith.constant 0 : index
    %677 = vector.load %arg1[%c13_1194, %c0_1195, %c0_1196, %c0_1197, %c0_1198] : memref<16x16x1x1x24xf32, #tpu.memory_space<vmem>>, vector<1x1x1x1x24xf32>
    %678 = vector.shape_cast %677 : vector<1x1x1x1x24xf32> to vector<1x24xf32>
    %679 = arith.maximumf %676, %678 : vector<1x24xf32>
    %c13_1199 = arith.constant 13 : index
    %c1_1200 = arith.constant 1 : index
    %c0_1201 = arith.constant 0 : index
    %c0_1202 = arith.constant 0 : index
    %c0_1203 = arith.constant 0 : index
    %680 = vector.load %arg1[%c13_1199, %c1_1200, %c0_1201, %c0_1202, %c0_1203] : memref<16x16x1x1x24xf32, #tpu.memory_space<vmem>>, vector<1x1x1x1x24xf32>
    %681 = vector.shape_cast %680 : vector<1x1x1x1x24xf32> to vector<1x24xf32>
    %682 = arith.maximumf %679, %681 : vector<1x24xf32>
    %c6_1204 = arith.constant 6 : index
    %c0_1205 = arith.constant 0 : index
    %c0_1206 = arith.constant 0 : index
    %c0_1207 = arith.constant 0 : index
    %c0_1208 = arith.constant 0 : index
    %683 = vector.load %arg2[%c6_1204, %c0_1205, %c0_1206, %c0_1207, %c0_1208] : memref<8x8x1x1x24xf32, #tpu.memory_space<vmem>>, vector<1x1x1x1x24xf32>
    %684 = vector.shape_cast %683 : vector<1x1x1x1x24xf32> to vector<1x24xf32>
    %685 = vector.shape_cast %682 : vector<1x24xf32> to vector<1x1x1x1x24xf32>
    tpu.vector_store %arg2[%c6_1204, %c0_1205, %c0_1206, %c0_1207, %c0_1208], %685 {strides = array<i32>} : memref<8x8x1x1x24xf32, #tpu.memory_space<vmem>>, vector<1x1x1x1x24xf32>,
    %c12_1209 = arith.constant 12 : index
    %c2_1210 = arith.constant 2 : index
    %c0_1211 = arith.constant 0 : index
    %c0_1212 = arith.constant 0 : index
    %c0_1213 = arith.constant 0 : index
    %686 = vector.load %arg1[%c12_1209, %c2_1210, %c0_1211, %c0_1212, %c0_1213] : memref<16x16x1x1x24xf32, #tpu.memory_space<vmem>>, vector<1x1x1x1x24xf32>
    %687 = vector.shape_cast %686 : vector<1x1x1x1x24xf32> to vector<1x24xf32>
    %c12_1214 = arith.constant 12 : index
    %c3_1215 = arith.constant 3 : index
    %c0_1216 = arith.constant 0 : index
    %c0_1217 = arith.constant 0 : index
    %c0_1218 = arith.constant 0 : index
    %688 = vector.load %arg1[%c12_1214, %c3_1215, %c0_1216, %c0_1217, %c0_1218] : memref<16x16x1x1x24xf32, #tpu.memory_space<vmem>>, vector<1x1x1x1x24xf32>
    %689 = vector.shape_cast %688 : vector<1x1x1x1x24xf32> to vector<1x24xf32>
    %690 = arith.maximumf %687, %689 : vector<1x24xf32>
    %c13_1219 = arith.constant 13 : index
    %c2_1220 = arith.constant 2 : index
    %c0_1221 = arith.constant 0 : index
    %c0_1222 = arith.constant 0 : index
    %c0_1223 = arith.constant 0 : index
    %691 = vector.load %arg1[%c13_1219, %c2_1220, %c0_1221, %c0_1222, %c0_1223] : memref<16x16x1x1x24xf32, #tpu.memory_space<vmem>>, vector<1x1x1x1x24xf32>
    %692 = vector.shape_cast %691 : vector<1x1x1x1x24xf32> to vector<1x24xf32>
    %693 = arith.maximumf %690, %692 : vector<1x24xf32>
    %c13_1224 = arith.constant 13 : index
    %c3_1225 = arith.constant 3 : index
    %c0_1226 = arith.constant 0 : index
    %c0_1227 = arith.constant 0 : index
    %c0_1228 = arith.constant 0 : index
    %694 = vector.load %arg1[%c13_1224, %c3_1225, %c0_1226, %c0_1227, %c0_1228] : memref<16x16x1x1x24xf32, #tpu.memory_space<vmem>>, vector<1x1x1x1x24xf32>
    %695 = vector.shape_cast %694 : vector<1x1x1x1x24xf32> to vector<1x24xf32>
    %696 = arith.maximumf %693, %695 : vector<1x24xf32>
    %c6_1229 = arith.constant 6 : index
    %c1_1230 = arith.constant 1 : index
    %c0_1231 = arith.constant 0 : index
    %c0_1232 = arith.constant 0 : index
    %c0_1233 = arith.constant 0 : index
    %697 = vector.load %arg2[%c6_1229, %c1_1230, %c0_1231, %c0_1232, %c0_1233] : memref<8x8x1x1x24xf32, #tpu.memory_space<vmem>>, vector<1x1x1x1x24xf32>
    %698 = vector.shape_cast %697 : vector<1x1x1x1x24xf32> to vector<1x24xf32>
    %699 = vector.shape_cast %696 : vector<1x24xf32> to vector<1x1x1x1x24xf32>
    tpu.vector_store %arg2[%c6_1229, %c1_1230, %c0_1231, %c0_1232, %c0_1233], %699 {strides = array<i32>} : memref<8x8x1x1x24xf32, #tpu.memory_space<vmem>>, vector<1x1x1x1x24xf32>,
    %c12_1234 = arith.constant 12 : index
    %c4_1235 = arith.constant 4 : index
    %c0_1236 = arith.constant 0 : index
    %c0_1237 = arith.constant 0 : index
    %c0_1238 = arith.constant 0 : index
    %700 = vector.load %arg1[%c12_1234, %c4_1235, %c0_1236, %c0_1237, %c0_1238] : memref<16x16x1x1x24xf32, #tpu.memory_space<vmem>>, vector<1x1x1x1x24xf32>
    %701 = vector.shape_cast %700 : vector<1x1x1x1x24xf32> to vector<1x24xf32>
    %c12_1239 = arith.constant 12 : index
    %c5_1240 = arith.constant 5 : index
    %c0_1241 = arith.constant 0 : index
    %c0_1242 = arith.constant 0 : index
    %c0_1243 = arith.constant 0 : index
    %702 = vector.load %arg1[%c12_1239, %c5_1240, %c0_1241, %c0_1242, %c0_1243] : memref<16x16x1x1x24xf32, #tpu.memory_space<vmem>>, vector<1x1x1x1x24xf32>
    %703 = vector.shape_cast %702 : vector<1x1x1x1x24xf32> to vector<1x24xf32>
    %704 = arith.maximumf %701, %703 : vector<1x24xf32>
    %c13_1244 = arith.constant 13 : index
    %c4_1245 = arith.constant 4 : index
    %c0_1246 = arith.constant 0 : index
    %c0_1247 = arith.constant 0 : index
    %c0_1248 = arith.constant 0 : index
    %705 = vector.load %arg1[%c13_1244, %c4_1245, %c0_1246, %c0_1247, %c0_1248] : memref<16x16x1x1x24xf32, #tpu.memory_space<vmem>>, vector<1x1x1x1x24xf32>
    %706 = vector.shape_cast %705 : vector<1x1x1x1x24xf32> to vector<1x24xf32>
    %707 = arith.maximumf %704, %706 : vector<1x24xf32>
    %c13_1249 = arith.constant 13 : index
    %c5_1250 = arith.constant 5 : index
    %c0_1251 = arith.constant 0 : index
    %c0_1252 = arith.constant 0 : index
    %c0_1253 = arith.constant 0 : index
    %708 = vector.load %arg1[%c13_1249, %c5_1250, %c0_1251, %c0_1252, %c0_1253] : memref<16x16x1x1x24xf32, #tpu.memory_space<vmem>>, vector<1x1x1x1x24xf32>
    %709 = vector.shape_cast %708 : vector<1x1x1x1x24xf32> to vector<1x24xf32>
    %710 = arith.maximumf %707, %709 : vector<1x24xf32>
    %c6_1254 = arith.constant 6 : index
    %c2_1255 = arith.constant 2 : index
    %c0_1256 = arith.constant 0 : index
    %c0_1257 = arith.constant 0 : index
    %c0_1258 = arith.constant 0 : index
    %711 = vector.load %arg2[%c6_1254, %c2_1255, %c0_1256, %c0_1257, %c0_1258] : memref<8x8x1x1x24xf32, #tpu.memory_space<vmem>>, vector<1x1x1x1x24xf32>
    %712 = vector.shape_cast %711 : vector<1x1x1x1x24xf32> to vector<1x24xf32>
    %713 = vector.shape_cast %710 : vector<1x24xf32> to vector<1x1x1x1x24xf32>
    tpu.vector_store %arg2[%c6_1254, %c2_1255, %c0_1256, %c0_1257, %c0_1258], %713 {strides = array<i32>} : memref<8x8x1x1x24xf32, #tpu.memory_space<vmem>>, vector<1x1x1x1x24xf32>,
    %c12_1259 = arith.constant 12 : index
    %c6_1260 = arith.constant 6 : index
    %c0_1261 = arith.constant 0 : index
    %c0_1262 = arith.constant 0 : index
    %c0_1263 = arith.constant 0 : index
    %714 = vector.load %arg1[%c12_1259, %c6_1260, %c0_1261, %c0_1262, %c0_1263] : memref<16x16x1x1x24xf32, #tpu.memory_space<vmem>>, vector<1x1x1x1x24xf32>
    %715 = vector.shape_cast %714 : vector<1x1x1x1x24xf32> to vector<1x24xf32>
    %c12_1264 = arith.constant 12 : index
    %c7_1265 = arith.constant 7 : index
    %c0_1266 = arith.constant 0 : index
    %c0_1267 = arith.constant 0 : index
    %c0_1268 = arith.constant 0 : index
    %716 = vector.load %arg1[%c12_1264, %c7_1265, %c0_1266, %c0_1267, %c0_1268] : memref<16x16x1x1x24xf32, #tpu.memory_space<vmem>>, vector<1x1x1x1x24xf32>
    %717 = vector.shape_cast %716 : vector<1x1x1x1x24xf32> to vector<1x24xf32>
    %718 = arith.maximumf %715, %717 : vector<1x24xf32>
    %c13_1269 = arith.constant 13 : index
    %c6_1270 = arith.constant 6 : index
    %c0_1271 = arith.constant 0 : index
    %c0_1272 = arith.constant 0 : index
    %c0_1273 = arith.constant 0 : index
    %719 = vector.load %arg1[%c13_1269, %c6_1270, %c0_1271, %c0_1272, %c0_1273] : memref<16x16x1x1x24xf32, #tpu.memory_space<vmem>>, vector<1x1x1x1x24xf32>
    %720 = vector.shape_cast %719 : vector<1x1x1x1x24xf32> to vector<1x24xf32>
    %721 = arith.maximumf %718, %720 : vector<1x24xf32>
    %c13_1274 = arith.constant 13 : index
    %c7_1275 = arith.constant 7 : index
    %c0_1276 = arith.constant 0 : index
    %c0_1277 = arith.constant 0 : index
    %c0_1278 = arith.constant 0 : index
    %722 = vector.load %arg1[%c13_1274, %c7_1275, %c0_1276, %c0_1277, %c0_1278] : memref<16x16x1x1x24xf32, #tpu.memory_space<vmem>>, vector<1x1x1x1x24xf32>
    %723 = vector.shape_cast %722 : vector<1x1x1x1x24xf32> to vector<1x24xf32>
    %724 = arith.maximumf %721, %723 : vector<1x24xf32>
    %c6_1279 = arith.constant 6 : index
    %c3_1280 = arith.constant 3 : index
    %c0_1281 = arith.constant 0 : index
    %c0_1282 = arith.constant 0 : index
    %c0_1283 = arith.constant 0 : index
    %725 = vector.load %arg2[%c6_1279, %c3_1280, %c0_1281, %c0_1282, %c0_1283] : memref<8x8x1x1x24xf32, #tpu.memory_space<vmem>>, vector<1x1x1x1x24xf32>
    %726 = vector.shape_cast %725 : vector<1x1x1x1x24xf32> to vector<1x24xf32>
    %727 = vector.shape_cast %724 : vector<1x24xf32> to vector<1x1x1x1x24xf32>
    tpu.vector_store %arg2[%c6_1279, %c3_1280, %c0_1281, %c0_1282, %c0_1283], %727 {strides = array<i32>} : memref<8x8x1x1x24xf32, #tpu.memory_space<vmem>>, vector<1x1x1x1x24xf32>,
    %c12_1284 = arith.constant 12 : index
    %c8_1285 = arith.constant 8 : index
    %c0_1286 = arith.constant 0 : index
    %c0_1287 = arith.constant 0 : index
    %c0_1288 = arith.constant 0 : index
    %728 = vector.load %arg1[%c12_1284, %c8_1285, %c0_1286, %c0_1287, %c0_1288] : memref<16x16x1x1x24xf32, #tpu.memory_space<vmem>>, vector<1x1x1x1x24xf32>
    %729 = vector.shape_cast %728 : vector<1x1x1x1x24xf32> to vector<1x24xf32>
    %c12_1289 = arith.constant 12 : index
    %c9_1290 = arith.constant 9 : index
    %c0_1291 = arith.constant 0 : index
    %c0_1292 = arith.constant 0 : index
    %c0_1293 = arith.constant 0 : index
    %730 = vector.load %arg1[%c12_1289, %c9_1290, %c0_1291, %c0_1292, %c0_1293] : memref<16x16x1x1x24xf32, #tpu.memory_space<vmem>>, vector<1x1x1x1x24xf32>
    %731 = vector.shape_cast %730 : vector<1x1x1x1x24xf32> to vector<1x24xf32>
    %732 = arith.maximumf %729, %731 : vector<1x24xf32>
    %c13_1294 = arith.constant 13 : index
    %c8_1295 = arith.constant 8 : index
    %c0_1296 = arith.constant 0 : index
    %c0_1297 = arith.constant 0 : index
    %c0_1298 = arith.constant 0 : index
    %733 = vector.load %arg1[%c13_1294, %c8_1295, %c0_1296, %c0_1297, %c0_1298] : memref<16x16x1x1x24xf32, #tpu.memory_space<vmem>>, vector<1x1x1x1x24xf32>
    %734 = vector.shape_cast %733 : vector<1x1x1x1x24xf32> to vector<1x24xf32>
    %735 = arith.maximumf %732, %734 : vector<1x24xf32>
    %c13_1299 = arith.constant 13 : index
    %c9_1300 = arith.constant 9 : index
    %c0_1301 = arith.constant 0 : index
    %c0_1302 = arith.constant 0 : index
    %c0_1303 = arith.constant 0 : index
    %736 = vector.load %arg1[%c13_1299, %c9_1300, %c0_1301, %c0_1302, %c0_1303] : memref<16x16x1x1x24xf32, #tpu.memory_space<vmem>>, vector<1x1x1x1x24xf32>
    %737 = vector.shape_cast %736 : vector<1x1x1x1x24xf32> to vector<1x24xf32>
    %738 = arith.maximumf %735, %737 : vector<1x24xf32>
    %c6_1304 = arith.constant 6 : index
    %c4_1305 = arith.constant 4 : index
    %c0_1306 = arith.constant 0 : index
    %c0_1307 = arith.constant 0 : index
    %c0_1308 = arith.constant 0 : index
    %739 = vector.load %arg2[%c6_1304, %c4_1305, %c0_1306, %c0_1307, %c0_1308] : memref<8x8x1x1x24xf32, #tpu.memory_space<vmem>>, vector<1x1x1x1x24xf32>
    %740 = vector.shape_cast %739 : vector<1x1x1x1x24xf32> to vector<1x24xf32>
    %741 = vector.shape_cast %738 : vector<1x24xf32> to vector<1x1x1x1x24xf32>
    tpu.vector_store %arg2[%c6_1304, %c4_1305, %c0_1306, %c0_1307, %c0_1308], %741 {strides = array<i32>} : memref<8x8x1x1x24xf32, #tpu.memory_space<vmem>>, vector<1x1x1x1x24xf32>,
    %c12_1309 = arith.constant 12 : index
    %c10_1310 = arith.constant 10 : index
    %c0_1311 = arith.constant 0 : index
    %c0_1312 = arith.constant 0 : index
    %c0_1313 = arith.constant 0 : index
    %742 = vector.load %arg1[%c12_1309, %c10_1310, %c0_1311, %c0_1312, %c0_1313] : memref<16x16x1x1x24xf32, #tpu.memory_space<vmem>>, vector<1x1x1x1x24xf32>
    %743 = vector.shape_cast %742 : vector<1x1x1x1x24xf32> to vector<1x24xf32>
    %c12_1314 = arith.constant 12 : index
    %c11_1315 = arith.constant 11 : index
    %c0_1316 = arith.constant 0 : index
    %c0_1317 = arith.constant 0 : index
    %c0_1318 = arith.constant 0 : index
    %744 = vector.load %arg1[%c12_1314, %c11_1315, %c0_1316, %c0_1317, %c0_1318] : memref<16x16x1x1x24xf32, #tpu.memory_space<vmem>>, vector<1x1x1x1x24xf32>
    %745 = vector.shape_cast %744 : vector<1x1x1x1x24xf32> to vector<1x24xf32>
    %746 = arith.maximumf %743, %745 : vector<1x24xf32>
    %c13_1319 = arith.constant 13 : index
    %c10_1320 = arith.constant 10 : index
    %c0_1321 = arith.constant 0 : index
    %c0_1322 = arith.constant 0 : index
    %c0_1323 = arith.constant 0 : index
    %747 = vector.load %arg1[%c13_1319, %c10_1320, %c0_1321, %c0_1322, %c0_1323] : memref<16x16x1x1x24xf32, #tpu.memory_space<vmem>>, vector<1x1x1x1x24xf32>
    %748 = vector.shape_cast %747 : vector<1x1x1x1x24xf32> to vector<1x24xf32>
    %749 = arith.maximumf %746, %748 : vector<1x24xf32>
    %c13_1324 = arith.constant 13 : index
    %c11_1325 = arith.constant 11 : index
    %c0_1326 = arith.constant 0 : index
    %c0_1327 = arith.constant 0 : index
    %c0_1328 = arith.constant 0 : index
    %750 = vector.load %arg1[%c13_1324, %c11_1325, %c0_1326, %c0_1327, %c0_1328] : memref<16x16x1x1x24xf32, #tpu.memory_space<vmem>>, vector<1x1x1x1x24xf32>
    %751 = vector.shape_cast %750 : vector<1x1x1x1x24xf32> to vector<1x24xf32>
    %752 = arith.maximumf %749, %751 : vector<1x24xf32>
    %c6_1329 = arith.constant 6 : index
    %c5_1330 = arith.constant 5 : index
    %c0_1331 = arith.constant 0 : index
    %c0_1332 = arith.constant 0 : index
    %c0_1333 = arith.constant 0 : index
    %753 = vector.load %arg2[%c6_1329, %c5_1330, %c0_1331, %c0_1332, %c0_1333] : memref<8x8x1x1x24xf32, #tpu.memory_space<vmem>>, vector<1x1x1x1x24xf32>
    %754 = vector.shape_cast %753 : vector<1x1x1x1x24xf32> to vector<1x24xf32>
    %755 = vector.shape_cast %752 : vector<1x24xf32> to vector<1x1x1x1x24xf32>
    tpu.vector_store %arg2[%c6_1329, %c5_1330, %c0_1331, %c0_1332, %c0_1333], %755 {strides = array<i32>} : memref<8x8x1x1x24xf32, #tpu.memory_space<vmem>>, vector<1x1x1x1x24xf32>,
    %c12_1334 = arith.constant 12 : index
    %c12_1335 = arith.constant 12 : index
    %c0_1336 = arith.constant 0 : index
    %c0_1337 = arith.constant 0 : index
    %c0_1338 = arith.constant 0 : index
    %756 = vector.load %arg1[%c12_1334, %c12_1335, %c0_1336, %c0_1337, %c0_1338] : memref<16x16x1x1x24xf32, #tpu.memory_space<vmem>>, vector<1x1x1x1x24xf32>
    %757 = vector.shape_cast %756 : vector<1x1x1x1x24xf32> to vector<1x24xf32>
    %c12_1339 = arith.constant 12 : index
    %c13_1340 = arith.constant 13 : index
    %c0_1341 = arith.constant 0 : index
    %c0_1342 = arith.constant 0 : index
    %c0_1343 = arith.constant 0 : index
    %758 = vector.load %arg1[%c12_1339, %c13_1340, %c0_1341, %c0_1342, %c0_1343] : memref<16x16x1x1x24xf32, #tpu.memory_space<vmem>>, vector<1x1x1x1x24xf32>
    %759 = vector.shape_cast %758 : vector<1x1x1x1x24xf32> to vector<1x24xf32>
    %760 = arith.maximumf %757, %759 : vector<1x24xf32>
    %c13_1344 = arith.constant 13 : index
    %c12_1345 = arith.constant 12 : index
    %c0_1346 = arith.constant 0 : index
    %c0_1347 = arith.constant 0 : index
    %c0_1348 = arith.constant 0 : index
    %761 = vector.load %arg1[%c13_1344, %c12_1345, %c0_1346, %c0_1347, %c0_1348] : memref<16x16x1x1x24xf32, #tpu.memory_space<vmem>>, vector<1x1x1x1x24xf32>
    %762 = vector.shape_cast %761 : vector<1x1x1x1x24xf32> to vector<1x24xf32>
    %763 = arith.maximumf %760, %762 : vector<1x24xf32>
    %c13_1349 = arith.constant 13 : index
    %c13_1350 = arith.constant 13 : index
    %c0_1351 = arith.constant 0 : index
    %c0_1352 = arith.constant 0 : index
    %c0_1353 = arith.constant 0 : index
    %764 = vector.load %arg1[%c13_1349, %c13_1350, %c0_1351, %c0_1352, %c0_1353] : memref<16x16x1x1x24xf32, #tpu.memory_space<vmem>>, vector<1x1x1x1x24xf32>
    %765 = vector.shape_cast %764 : vector<1x1x1x1x24xf32> to vector<1x24xf32>
    %766 = arith.maximumf %763, %765 : vector<1x24xf32>
    %c6_1354 = arith.constant 6 : index
    %c6_1355 = arith.constant 6 : index
    %c0_1356 = arith.constant 0 : index
    %c0_1357 = arith.constant 0 : index
    %c0_1358 = arith.constant 0 : index
    %767 = vector.load %arg2[%c6_1354, %c6_1355, %c0_1356, %c0_1357, %c0_1358] : memref<8x8x1x1x24xf32, #tpu.memory_space<vmem>>, vector<1x1x1x1x24xf32>
    %768 = vector.shape_cast %767 : vector<1x1x1x1x24xf32> to vector<1x24xf32>
    %769 = vector.shape_cast %766 : vector<1x24xf32> to vector<1x1x1x1x24xf32>
    tpu.vector_store %arg2[%c6_1354, %c6_1355, %c0_1356, %c0_1357, %c0_1358], %769 {strides = array<i32>} : memref<8x8x1x1x24xf32, #tpu.memory_space<vmem>>, vector<1x1x1x1x24xf32>,
    %c12_1359 = arith.constant 12 : index
    %c14_1360 = arith.constant 14 : index
    %c0_1361 = arith.constant 0 : index
    %c0_1362 = arith.constant 0 : index
    %c0_1363 = arith.constant 0 : index
    %770 = vector.load %arg1[%c12_1359, %c14_1360, %c0_1361, %c0_1362, %c0_1363] : memref<16x16x1x1x24xf32, #tpu.memory_space<vmem>>, vector<1x1x1x1x24xf32>
    %771 = vector.shape_cast %770 : vector<1x1x1x1x24xf32> to vector<1x24xf32>
    %c12_1364 = arith.constant 12 : index
    %c15_1365 = arith.constant 15 : index
    %c0_1366 = arith.constant 0 : index
    %c0_1367 = arith.constant 0 : index
    %c0_1368 = arith.constant 0 : index
    %772 = vector.load %arg1[%c12_1364, %c15_1365, %c0_1366, %c0_1367, %c0_1368] : memref<16x16x1x1x24xf32, #tpu.memory_space<vmem>>, vector<1x1x1x1x24xf32>
    %773 = vector.shape_cast %772 : vector<1x1x1x1x24xf32> to vector<1x24xf32>
    %774 = arith.maximumf %771, %773 : vector<1x24xf32>
    %c13_1369 = arith.constant 13 : index
    %c14_1370 = arith.constant 14 : index
    %c0_1371 = arith.constant 0 : index
    %c0_1372 = arith.constant 0 : index
    %c0_1373 = arith.constant 0 : index
    %775 = vector.load %arg1[%c13_1369, %c14_1370, %c0_1371, %c0_1372, %c0_1373] : memref<16x16x1x1x24xf32, #tpu.memory_space<vmem>>, vector<1x1x1x1x24xf32>
    %776 = vector.shape_cast %775 : vector<1x1x1x1x24xf32> to vector<1x24xf32>
    %777 = arith.maximumf %774, %776 : vector<1x24xf32>
    %c13_1374 = arith.constant 13 : index
    %c15_1375 = arith.constant 15 : index
    %c0_1376 = arith.constant 0 : index
    %c0_1377 = arith.constant 0 : index
    %c0_1378 = arith.constant 0 : index
    %778 = vector.load %arg1[%c13_1374, %c15_1375, %c0_1376, %c0_1377, %c0_1378] : memref<16x16x1x1x24xf32, #tpu.memory_space<vmem>>, vector<1x1x1x1x24xf32>
    %779 = vector.shape_cast %778 : vector<1x1x1x1x24xf32> to vector<1x24xf32>
    %780 = arith.maximumf %777, %779 : vector<1x24xf32>
    %c6_1379 = arith.constant 6 : index
    %c7_1380 = arith.constant 7 : index
    %c0_1381 = arith.constant 0 : index
    %c0_1382 = arith.constant 0 : index
    %c0_1383 = arith.constant 0 : index
    %781 = vector.load %arg2[%c6_1379, %c7_1380, %c0_1381, %c0_1382, %c0_1383] : memref<8x8x1x1x24xf32, #tpu.memory_space<vmem>>, vector<1x1x1x1x24xf32>
    %782 = vector.shape_cast %781 : vector<1x1x1x1x24xf32> to vector<1x24xf32>
    %783 = vector.shape_cast %780 : vector<1x24xf32> to vector<1x1x1x1x24xf32>
    tpu.vector_store %arg2[%c6_1379, %c7_1380, %c0_1381, %c0_1382, %c0_1383], %783 {strides = array<i32>} : memref<8x8x1x1x24xf32, #tpu.memory_space<vmem>>, vector<1x1x1x1x24xf32>,
    %c14_1384 = arith.constant 14 : index
    %c0_1385 = arith.constant 0 : index
    %c0_1386 = arith.constant 0 : index
    %c0_1387 = arith.constant 0 : index
    %c0_1388 = arith.constant 0 : index
    %784 = vector.load %arg1[%c14_1384, %c0_1385, %c0_1386, %c0_1387, %c0_1388] : memref<16x16x1x1x24xf32, #tpu.memory_space<vmem>>, vector<1x1x1x1x24xf32>
    %785 = vector.shape_cast %784 : vector<1x1x1x1x24xf32> to vector<1x24xf32>
    %c14_1389 = arith.constant 14 : index
    %c1_1390 = arith.constant 1 : index
    %c0_1391 = arith.constant 0 : index
    %c0_1392 = arith.constant 0 : index
    %c0_1393 = arith.constant 0 : index
    %786 = vector.load %arg1[%c14_1389, %c1_1390, %c0_1391, %c0_1392, %c0_1393] : memref<16x16x1x1x24xf32, #tpu.memory_space<vmem>>, vector<1x1x1x1x24xf32>
    %787 = vector.shape_cast %786 : vector<1x1x1x1x24xf32> to vector<1x24xf32>
    %788 = arith.maximumf %785, %787 : vector<1x24xf32>
    %c15_1394 = arith.constant 15 : index
    %c0_1395 = arith.constant 0 : index
    %c0_1396 = arith.constant 0 : index
    %c0_1397 = arith.constant 0 : index
    %c0_1398 = arith.constant 0 : index
    %789 = vector.load %arg1[%c15_1394, %c0_1395, %c0_1396, %c0_1397, %c0_1398] : memref<16x16x1x1x24xf32, #tpu.memory_space<vmem>>, vector<1x1x1x1x24xf32>
    %790 = vector.shape_cast %789 : vector<1x1x1x1x24xf32> to vector<1x24xf32>
    %791 = arith.maximumf %788, %790 : vector<1x24xf32>
    %c15_1399 = arith.constant 15 : index
    %c1_1400 = arith.constant 1 : index
    %c0_1401 = arith.constant 0 : index
    %c0_1402 = arith.constant 0 : index
    %c0_1403 = arith.constant 0 : index
    %792 = vector.load %arg1[%c15_1399, %c1_1400, %c0_1401, %c0_1402, %c0_1403] : memref<16x16x1x1x24xf32, #tpu.memory_space<vmem>>, vector<1x1x1x1x24xf32>
    %793 = vector.shape_cast %792 : vector<1x1x1x1x24xf32> to vector<1x24xf32>
    %794 = arith.maximumf %791, %793 : vector<1x24xf32>
    %c7_1404 = arith.constant 7 : index
    %c0_1405 = arith.constant 0 : index
    %c0_1406 = arith.constant 0 : index
    %c0_1407 = arith.constant 0 : index
    %c0_1408 = arith.constant 0 : index
    %795 = vector.load %arg2[%c7_1404, %c0_1405, %c0_1406, %c0_1407, %c0_1408] : memref<8x8x1x1x24xf32, #tpu.memory_space<vmem>>, vector<1x1x1x1x24xf32>
    %796 = vector.shape_cast %795 : vector<1x1x1x1x24xf32> to vector<1x24xf32>
    %797 = vector.shape_cast %794 : vector<1x24xf32> to vector<1x1x1x1x24xf32>
    tpu.vector_store %arg2[%c7_1404, %c0_1405, %c0_1406, %c0_1407, %c0_1408], %797 {strides = array<i32>} : memref<8x8x1x1x24xf32, #tpu.memory_space<vmem>>, vector<1x1x1x1x24xf32>,
    %c14_1409 = arith.constant 14 : index
    %c2_1410 = arith.constant 2 : index
    %c0_1411 = arith.constant 0 : index
    %c0_1412 = arith.constant 0 : index
    %c0_1413 = arith.constant 0 : index
    %798 = vector.load %arg1[%c14_1409, %c2_1410, %c0_1411, %c0_1412, %c0_1413] : memref<16x16x1x1x24xf32, #tpu.memory_space<vmem>>, vector<1x1x1x1x24xf32>
    %799 = vector.shape_cast %798 : vector<1x1x1x1x24xf32> to vector<1x24xf32>
    %c14_1414 = arith.constant 14 : index
    %c3_1415 = arith.constant 3 : index
    %c0_1416 = arith.constant 0 : index
    %c0_1417 = arith.constant 0 : index
    %c0_1418 = arith.constant 0 : index
    %800 = vector.load %arg1[%c14_1414, %c3_1415, %c0_1416, %c0_1417, %c0_1418] : memref<16x16x1x1x24xf32, #tpu.memory_space<vmem>>, vector<1x1x1x1x24xf32>
    %801 = vector.shape_cast %800 : vector<1x1x1x1x24xf32> to vector<1x24xf32>
    %802 = arith.maximumf %799, %801 : vector<1x24xf32>
    %c15_1419 = arith.constant 15 : index
    %c2_1420 = arith.constant 2 : index
    %c0_1421 = arith.constant 0 : index
    %c0_1422 = arith.constant 0 : index
    %c0_1423 = arith.constant 0 : index
    %803 = vector.load %arg1[%c15_1419, %c2_1420, %c0_1421, %c0_1422, %c0_1423] : memref<16x16x1x1x24xf32, #tpu.memory_space<vmem>>, vector<1x1x1x1x24xf32>
    %804 = vector.shape_cast %803 : vector<1x1x1x1x24xf32> to vector<1x24xf32>
    %805 = arith.maximumf %802, %804 : vector<1x24xf32>
    %c15_1424 = arith.constant 15 : index
    %c3_1425 = arith.constant 3 : index
    %c0_1426 = arith.constant 0 : index
    %c0_1427 = arith.constant 0 : index
    %c0_1428 = arith.constant 0 : index
    %806 = vector.load %arg1[%c15_1424, %c3_1425, %c0_1426, %c0_1427, %c0_1428] : memref<16x16x1x1x24xf32, #tpu.memory_space<vmem>>, vector<1x1x1x1x24xf32>
    %807 = vector.shape_cast %806 : vector<1x1x1x1x24xf32> to vector<1x24xf32>
    %808 = arith.maximumf %805, %807 : vector<1x24xf32>
    %c7_1429 = arith.constant 7 : index
    %c1_1430 = arith.constant 1 : index
    %c0_1431 = arith.constant 0 : index
    %c0_1432 = arith.constant 0 : index
    %c0_1433 = arith.constant 0 : index
    %809 = vector.load %arg2[%c7_1429, %c1_1430, %c0_1431, %c0_1432, %c0_1433] : memref<8x8x1x1x24xf32, #tpu.memory_space<vmem>>, vector<1x1x1x1x24xf32>
    %810 = vector.shape_cast %809 : vector<1x1x1x1x24xf32> to vector<1x24xf32>
    %811 = vector.shape_cast %808 : vector<1x24xf32> to vector<1x1x1x1x24xf32>
    tpu.vector_store %arg2[%c7_1429, %c1_1430, %c0_1431, %c0_1432, %c0_1433], %811 {strides = array<i32>} : memref<8x8x1x1x24xf32, #tpu.memory_space<vmem>>, vector<1x1x1x1x24xf32>,
    %c14_1434 = arith.constant 14 : index
    %c4_1435 = arith.constant 4 : index
    %c0_1436 = arith.constant 0 : index
    %c0_1437 = arith.constant 0 : index
    %c0_1438 = arith.constant 0 : index
    %812 = vector.load %arg1[%c14_1434, %c4_1435, %c0_1436, %c0_1437, %c0_1438] : memref<16x16x1x1x24xf32, #tpu.memory_space<vmem>>, vector<1x1x1x1x24xf32>
    %813 = vector.shape_cast %812 : vector<1x1x1x1x24xf32> to vector<1x24xf32>
    %c14_1439 = arith.constant 14 : index
    %c5_1440 = arith.constant 5 : index
    %c0_1441 = arith.constant 0 : index
    %c0_1442 = arith.constant 0 : index
    %c0_1443 = arith.constant 0 : index
    %814 = vector.load %arg1[%c14_1439, %c5_1440, %c0_1441, %c0_1442, %c0_1443] : memref<16x16x1x1x24xf32, #tpu.memory_space<vmem>>, vector<1x1x1x1x24xf32>
    %815 = vector.shape_cast %814 : vector<1x1x1x1x24xf32> to vector<1x24xf32>
    %816 = arith.maximumf %813, %815 : vector<1x24xf32>
    %c15_1444 = arith.constant 15 : index
    %c4_1445 = arith.constant 4 : index
    %c0_1446 = arith.constant 0 : index
    %c0_1447 = arith.constant 0 : index
    %c0_1448 = arith.constant 0 : index
    %817 = vector.load %arg1[%c15_1444, %c4_1445, %c0_1446, %c0_1447, %c0_1448] : memref<16x16x1x1x24xf32, #tpu.memory_space<vmem>>, vector<1x1x1x1x24xf32>
    %818 = vector.shape_cast %817 : vector<1x1x1x1x24xf32> to vector<1x24xf32>
    %819 = arith.maximumf %816, %818 : vector<1x24xf32>
    %c15_1449 = arith.constant 15 : index
    %c5_1450 = arith.constant 5 : index
    %c0_1451 = arith.constant 0 : index
    %c0_1452 = arith.constant 0 : index
    %c0_1453 = arith.constant 0 : index
    %820 = vector.load %arg1[%c15_1449, %c5_1450, %c0_1451, %c0_1452, %c0_1453] : memref<16x16x1x1x24xf32, #tpu.memory_space<vmem>>, vector<1x1x1x1x24xf32>
    %821 = vector.shape_cast %820 : vector<1x1x1x1x24xf32> to vector<1x24xf32>
    %822 = arith.maximumf %819, %821 : vector<1x24xf32>
    %c7_1454 = arith.constant 7 : index
    %c2_1455 = arith.constant 2 : index
    %c0_1456 = arith.constant 0 : index
    %c0_1457 = arith.constant 0 : index
    %c0_1458 = arith.constant 0 : index
    %823 = vector.load %arg2[%c7_1454, %c2_1455, %c0_1456, %c0_1457, %c0_1458] : memref<8x8x1x1x24xf32, #tpu.memory_space<vmem>>, vector<1x1x1x1x24xf32>
    %824 = vector.shape_cast %823 : vector<1x1x1x1x24xf32> to vector<1x24xf32>
    %825 = vector.shape_cast %822 : vector<1x24xf32> to vector<1x1x1x1x24xf32>
    tpu.vector_store %arg2[%c7_1454, %c2_1455, %c0_1456, %c0_1457, %c0_1458], %825 {strides = array<i32>} : memref<8x8x1x1x24xf32, #tpu.memory_space<vmem>>, vector<1x1x1x1x24xf32>,
    %c14_1459 = arith.constant 14 : index
    %c6_1460 = arith.constant 6 : index
    %c0_1461 = arith.constant 0 : index
    %c0_1462 = arith.constant 0 : index
    %c0_1463 = arith.constant 0 : index
    %826 = vector.load %arg1[%c14_1459, %c6_1460, %c0_1461, %c0_1462, %c0_1463] : memref<16x16x1x1x24xf32, #tpu.memory_space<vmem>>, vector<1x1x1x1x24xf32>
    %827 = vector.shape_cast %826 : vector<1x1x1x1x24xf32> to vector<1x24xf32>
    %c14_1464 = arith.constant 14 : index
    %c7_1465 = arith.constant 7 : index
    %c0_1466 = arith.constant 0 : index
    %c0_1467 = arith.constant 0 : index
    %c0_1468 = arith.constant 0 : index
    %828 = vector.load %arg1[%c14_1464, %c7_1465, %c0_1466, %c0_1467, %c0_1468] : memref<16x16x1x1x24xf32, #tpu.memory_space<vmem>>, vector<1x1x1x1x24xf32>
    %829 = vector.shape_cast %828 : vector<1x1x1x1x24xf32> to vector<1x24xf32>
    %830 = arith.maximumf %827, %829 : vector<1x24xf32>
    %c15_1469 = arith.constant 15 : index
    %c6_1470 = arith.constant 6 : index
    %c0_1471 = arith.constant 0 : index
    %c0_1472 = arith.constant 0 : index
    %c0_1473 = arith.constant 0 : index
    %831 = vector.load %arg1[%c15_1469, %c6_1470, %c0_1471, %c0_1472, %c0_1473] : memref<16x16x1x1x24xf32, #tpu.memory_space<vmem>>, vector<1x1x1x1x24xf32>
    %832 = vector.shape_cast %831 : vector<1x1x1x1x24xf32> to vector<1x24xf32>
    %833 = arith.maximumf %830, %832 : vector<1x24xf32>
    %c15_1474 = arith.constant 15 : index
    %c7_1475 = arith.constant 7 : index
    %c0_1476 = arith.constant 0 : index
    %c0_1477 = arith.constant 0 : index
    %c0_1478 = arith.constant 0 : index
    %834 = vector.load %arg1[%c15_1474, %c7_1475, %c0_1476, %c0_1477, %c0_1478] : memref<16x16x1x1x24xf32, #tpu.memory_space<vmem>>, vector<1x1x1x1x24xf32>
    %835 = vector.shape_cast %834 : vector<1x1x1x1x24xf32> to vector<1x24xf32>
    %836 = arith.maximumf %833, %835 : vector<1x24xf32>
    %c7_1479 = arith.constant 7 : index
    %c3_1480 = arith.constant 3 : index
    %c0_1481 = arith.constant 0 : index
    %c0_1482 = arith.constant 0 : index
    %c0_1483 = arith.constant 0 : index
    %837 = vector.load %arg2[%c7_1479, %c3_1480, %c0_1481, %c0_1482, %c0_1483] : memref<8x8x1x1x24xf32, #tpu.memory_space<vmem>>, vector<1x1x1x1x24xf32>
    %838 = vector.shape_cast %837 : vector<1x1x1x1x24xf32> to vector<1x24xf32>
    %839 = vector.shape_cast %836 : vector<1x24xf32> to vector<1x1x1x1x24xf32>
    tpu.vector_store %arg2[%c7_1479, %c3_1480, %c0_1481, %c0_1482, %c0_1483], %839 {strides = array<i32>} : memref<8x8x1x1x24xf32, #tpu.memory_space<vmem>>, vector<1x1x1x1x24xf32>,
    %c14_1484 = arith.constant 14 : index
    %c8_1485 = arith.constant 8 : index
    %c0_1486 = arith.constant 0 : index
    %c0_1487 = arith.constant 0 : index
    %c0_1488 = arith.constant 0 : index
    %840 = vector.load %arg1[%c14_1484, %c8_1485, %c0_1486, %c0_1487, %c0_1488] : memref<16x16x1x1x24xf32, #tpu.memory_space<vmem>>, vector<1x1x1x1x24xf32>
    %841 = vector.shape_cast %840 : vector<1x1x1x1x24xf32> to vector<1x24xf32>
    %c14_1489 = arith.constant 14 : index
    %c9_1490 = arith.constant 9 : index
    %c0_1491 = arith.constant 0 : index
    %c0_1492 = arith.constant 0 : index
    %c0_1493 = arith.constant 0 : index
    %842 = vector.load %arg1[%c14_1489, %c9_1490, %c0_1491, %c0_1492, %c0_1493] : memref<16x16x1x1x24xf32, #tpu.memory_space<vmem>>, vector<1x1x1x1x24xf32>
    %843 = vector.shape_cast %842 : vector<1x1x1x1x24xf32> to vector<1x24xf32>
    %844 = arith.maximumf %841, %843 : vector<1x24xf32>
    %c15_1494 = arith.constant 15 : index
    %c8_1495 = arith.constant 8 : index
    %c0_1496 = arith.constant 0 : index
    %c0_1497 = arith.constant 0 : index
    %c0_1498 = arith.constant 0 : index
    %845 = vector.load %arg1[%c15_1494, %c8_1495, %c0_1496, %c0_1497, %c0_1498] : memref<16x16x1x1x24xf32, #tpu.memory_space<vmem>>, vector<1x1x1x1x24xf32>
    %846 = vector.shape_cast %845 : vector<1x1x1x1x24xf32> to vector<1x24xf32>
    %847 = arith.maximumf %844, %846 : vector<1x24xf32>
    %c15_1499 = arith.constant 15 : index
    %c9_1500 = arith.constant 9 : index
    %c0_1501 = arith.constant 0 : index
    %c0_1502 = arith.constant 0 : index
    %c0_1503 = arith.constant 0 : index
    %848 = vector.load %arg1[%c15_1499, %c9_1500, %c0_1501, %c0_1502, %c0_1503] : memref<16x16x1x1x24xf32, #tpu.memory_space<vmem>>, vector<1x1x1x1x24xf32>
    %849 = vector.shape_cast %848 : vector<1x1x1x1x24xf32> to vector<1x24xf32>
    %850 = arith.maximumf %847, %849 : vector<1x24xf32>
    %c7_1504 = arith.constant 7 : index
    %c4_1505 = arith.constant 4 : index
    %c0_1506 = arith.constant 0 : index
    %c0_1507 = arith.constant 0 : index
    %c0_1508 = arith.constant 0 : index
    %851 = vector.load %arg2[%c7_1504, %c4_1505, %c0_1506, %c0_1507, %c0_1508] : memref<8x8x1x1x24xf32, #tpu.memory_space<vmem>>, vector<1x1x1x1x24xf32>
    %852 = vector.shape_cast %851 : vector<1x1x1x1x24xf32> to vector<1x24xf32>
    %853 = vector.shape_cast %850 : vector<1x24xf32> to vector<1x1x1x1x24xf32>
    tpu.vector_store %arg2[%c7_1504, %c4_1505, %c0_1506, %c0_1507, %c0_1508], %853 {strides = array<i32>} : memref<8x8x1x1x24xf32, #tpu.memory_space<vmem>>, vector<1x1x1x1x24xf32>,
    %c14_1509 = arith.constant 14 : index
    %c10_1510 = arith.constant 10 : index
    %c0_1511 = arith.constant 0 : index
    %c0_1512 = arith.constant 0 : index
    %c0_1513 = arith.constant 0 : index
    %854 = vector.load %arg1[%c14_1509, %c10_1510, %c0_1511, %c0_1512, %c0_1513] : memref<16x16x1x1x24xf32, #tpu.memory_space<vmem>>, vector<1x1x1x1x24xf32>
    %855 = vector.shape_cast %854 : vector<1x1x1x1x24xf32> to vector<1x24xf32>
    %c14_1514 = arith.constant 14 : index
    %c11_1515 = arith.constant 11 : index
    %c0_1516 = arith.constant 0 : index
    %c0_1517 = arith.constant 0 : index
    %c0_1518 = arith.constant 0 : index
    %856 = vector.load %arg1[%c14_1514, %c11_1515, %c0_1516, %c0_1517, %c0_1518] : memref<16x16x1x1x24xf32, #tpu.memory_space<vmem>>, vector<1x1x1x1x24xf32>
    %857 = vector.shape_cast %856 : vector<1x1x1x1x24xf32> to vector<1x24xf32>
    %858 = arith.maximumf %855, %857 : vector<1x24xf32>
    %c15_1519 = arith.constant 15 : index
    %c10_1520 = arith.constant 10 : index
    %c0_1521 = arith.constant 0 : index
    %c0_1522 = arith.constant 0 : index
    %c0_1523 = arith.constant 0 : index
    %859 = vector.load %arg1[%c15_1519, %c10_1520, %c0_1521, %c0_1522, %c0_1523] : memref<16x16x1x1x24xf32, #tpu.memory_space<vmem>>, vector<1x1x1x1x24xf32>
    %860 = vector.shape_cast %859 : vector<1x1x1x1x24xf32> to vector<1x24xf32>
    %861 = arith.maximumf %858, %860 : vector<1x24xf32>
    %c15_1524 = arith.constant 15 : index
    %c11_1525 = arith.constant 11 : index
    %c0_1526 = arith.constant 0 : index
    %c0_1527 = arith.constant 0 : index
    %c0_1528 = arith.constant 0 : index
    %862 = vector.load %arg1[%c15_1524, %c11_1525, %c0_1526, %c0_1527, %c0_1528] : memref<16x16x1x1x24xf32, #tpu.memory_space<vmem>>, vector<1x1x1x1x24xf32>
    %863 = vector.shape_cast %862 : vector<1x1x1x1x24xf32> to vector<1x24xf32>
    %864 = arith.maximumf %861, %863 : vector<1x24xf32>
    %c7_1529 = arith.constant 7 : index
    %c5_1530 = arith.constant 5 : index
    %c0_1531 = arith.constant 0 : index
    %c0_1532 = arith.constant 0 : index
    %c0_1533 = arith.constant 0 : index
    %865 = vector.load %arg2[%c7_1529, %c5_1530, %c0_1531, %c0_1532, %c0_1533] : memref<8x8x1x1x24xf32, #tpu.memory_space<vmem>>, vector<1x1x1x1x24xf32>
    %866 = vector.shape_cast %865 : vector<1x1x1x1x24xf32> to vector<1x24xf32>
    %867 = vector.shape_cast %864 : vector<1x24xf32> to vector<1x1x1x1x24xf32>
    tpu.vector_store %arg2[%c7_1529, %c5_1530, %c0_1531, %c0_1532, %c0_1533], %867 {strides = array<i32>} : memref<8x8x1x1x24xf32, #tpu.memory_space<vmem>>, vector<1x1x1x1x24xf32>,
    %c14_1534 = arith.constant 14 : index
    %c12_1535 = arith.constant 12 : index
    %c0_1536 = arith.constant 0 : index
    %c0_1537 = arith.constant 0 : index
    %c0_1538 = arith.constant 0 : index
    %868 = vector.load %arg1[%c14_1534, %c12_1535, %c0_1536, %c0_1537, %c0_1538] : memref<16x16x1x1x24xf32, #tpu.memory_space<vmem>>, vector<1x1x1x1x24xf32>
    %869 = vector.shape_cast %868 : vector<1x1x1x1x24xf32> to vector<1x24xf32>
    %c14_1539 = arith.constant 14 : index
    %c13_1540 = arith.constant 13 : index
    %c0_1541 = arith.constant 0 : index
    %c0_1542 = arith.constant 0 : index
    %c0_1543 = arith.constant 0 : index
    %870 = vector.load %arg1[%c14_1539, %c13_1540, %c0_1541, %c0_1542, %c0_1543] : memref<16x16x1x1x24xf32, #tpu.memory_space<vmem>>, vector<1x1x1x1x24xf32>
    %871 = vector.shape_cast %870 : vector<1x1x1x1x24xf32> to vector<1x24xf32>
    %872 = arith.maximumf %869, %871 : vector<1x24xf32>
    %c15_1544 = arith.constant 15 : index
    %c12_1545 = arith.constant 12 : index
    %c0_1546 = arith.constant 0 : index
    %c0_1547 = arith.constant 0 : index
    %c0_1548 = arith.constant 0 : index
    %873 = vector.load %arg1[%c15_1544, %c12_1545, %c0_1546, %c0_1547, %c0_1548] : memref<16x16x1x1x24xf32, #tpu.memory_space<vmem>>, vector<1x1x1x1x24xf32>
    %874 = vector.shape_cast %873 : vector<1x1x1x1x24xf32> to vector<1x24xf32>
    %875 = arith.maximumf %872, %874 : vector<1x24xf32>
    %c15_1549 = arith.constant 15 : index
    %c13_1550 = arith.constant 13 : index
    %c0_1551 = arith.constant 0 : index
    %c0_1552 = arith.constant 0 : index
    %c0_1553 = arith.constant 0 : index
    %876 = vector.load %arg1[%c15_1549, %c13_1550, %c0_1551, %c0_1552, %c0_1553] : memref<16x16x1x1x24xf32, #tpu.memory_space<vmem>>, vector<1x1x1x1x24xf32>
    %877 = vector.shape_cast %876 : vector<1x1x1x1x24xf32> to vector<1x24xf32>
    %878 = arith.maximumf %875, %877 : vector<1x24xf32>
    %c7_1554 = arith.constant 7 : index
    %c6_1555 = arith.constant 6 : index
    %c0_1556 = arith.constant 0 : index
    %c0_1557 = arith.constant 0 : index
    %c0_1558 = arith.constant 0 : index
    %879 = vector.load %arg2[%c7_1554, %c6_1555, %c0_1556, %c0_1557, %c0_1558] : memref<8x8x1x1x24xf32, #tpu.memory_space<vmem>>, vector<1x1x1x1x24xf32>
    %880 = vector.shape_cast %879 : vector<1x1x1x1x24xf32> to vector<1x24xf32>
    %881 = vector.shape_cast %878 : vector<1x24xf32> to vector<1x1x1x1x24xf32>
    tpu.vector_store %arg2[%c7_1554, %c6_1555, %c0_1556, %c0_1557, %c0_1558], %881 {strides = array<i32>} : memref<8x8x1x1x24xf32, #tpu.memory_space<vmem>>, vector<1x1x1x1x24xf32>,
    %c14_1559 = arith.constant 14 : index
    %c14_1560 = arith.constant 14 : index
    %c0_1561 = arith.constant 0 : index
    %c0_1562 = arith.constant 0 : index
    %c0_1563 = arith.constant 0 : index
    %882 = vector.load %arg1[%c14_1559, %c14_1560, %c0_1561, %c0_1562, %c0_1563] : memref<16x16x1x1x24xf32, #tpu.memory_space<vmem>>, vector<1x1x1x1x24xf32>
    %883 = vector.shape_cast %882 : vector<1x1x1x1x24xf32> to vector<1x24xf32>
    %c14_1564 = arith.constant 14 : index
    %c15_1565 = arith.constant 15 : index
    %c0_1566 = arith.constant 0 : index
    %c0_1567 = arith.constant 0 : index
    %c0_1568 = arith.constant 0 : index
    %884 = vector.load %arg1[%c14_1564, %c15_1565, %c0_1566, %c0_1567, %c0_1568] : memref<16x16x1x1x24xf32, #tpu.memory_space<vmem>>, vector<1x1x1x1x24xf32>
    %885 = vector.shape_cast %884 : vector<1x1x1x1x24xf32> to vector<1x24xf32>
    %886 = arith.maximumf %883, %885 : vector<1x24xf32>
    %c15_1569 = arith.constant 15 : index
    %c14_1570 = arith.constant 14 : index
    %c0_1571 = arith.constant 0 : index
    %c0_1572 = arith.constant 0 : index
    %c0_1573 = arith.constant 0 : index
    %887 = vector.load %arg1[%c15_1569, %c14_1570, %c0_1571, %c0_1572, %c0_1573] : memref<16x16x1x1x24xf32, #tpu.memory_space<vmem>>, vector<1x1x1x1x24xf32>
    %888 = vector.shape_cast %887 : vector<1x1x1x1x24xf32> to vector<1x24xf32>
    %889 = arith.maximumf %886, %888 : vector<1x24xf32>
    %c15_1574 = arith.constant 15 : index
    %c15_1575 = arith.constant 15 : index
    %c0_1576 = arith.constant 0 : index
    %c0_1577 = arith.constant 0 : index
    %c0_1578 = arith.constant 0 : index
    %890 = vector.load %arg1[%c15_1574, %c15_1575, %c0_1576, %c0_1577, %c0_1578] : memref<16x16x1x1x24xf32, #tpu.memory_space<vmem>>, vector<1x1x1x1x24xf32>
    %891 = vector.shape_cast %890 : vector<1x1x1x1x24xf32> to vector<1x24xf32>
    %892 = arith.maximumf %889, %891 : vector<1x24xf32>
    %c7_1579 = arith.constant 7 : index
    %c7_1580 = arith.constant 7 : index
    %c0_1581 = arith.constant 0 : index
    %c0_1582 = arith.constant 0 : index
    %c0_1583 = arith.constant 0 : index
    %893 = vector.load %arg2[%c7_1579, %c7_1580, %c0_1581, %c0_1582, %c0_1583] : memref<8x8x1x1x24xf32, #tpu.memory_space<vmem>>, vector<1x1x1x1x24xf32>
    %894 = vector.shape_cast %893 : vector<1x1x1x1x24xf32> to vector<1x24xf32>
    %895 = vector.shape_cast %892 : vector<1x24xf32> to vector<1x1x1x1x24xf32>
    tpu.vector_store %arg2[%c7_1579, %c7_1580, %c0_1581, %c0_1582, %c0_1583], %895 {strides = array<i32>} : memref<8x8x1x1x24xf32, #tpu.memory_space<vmem>>, vector<1x1x1x1x24xf32>,
    return
  }
  func.func @transform_0(%arg0: i32) -> (i32, i32, i32, i32, i32) {
    %c0_i32 = arith.constant 0 : i32
    %c0_i32_0 = arith.constant 0 : i32
    %c0_i32_1 = arith.constant 0 : i32
    %c0_i32_2 = arith.constant 0 : i32
    %c0_i32_3 = arith.constant 0 : i32
    return %c0_i32, %c0_i32_0, %arg0, %c0_i32_1, %c0_i32_2 : i32, i32, i32, i32, i32
  }
  func.func @transform_1(%arg0: i32) -> (i32, i32, i32, i32, i32) {
    %c0_i32 = arith.constant 0 : i32
    %c0_i32_0 = arith.constant 0 : i32
    %c0_i32_1 = arith.constant 0 : i32
    %c0_i32_2 = arith.constant 0 : i32
    %c0_i32_3 = arith.constant 0 : i32
    return %c0_i32, %c0_i32_0, %arg0, %c0_i32_1, %c0_i32_2 : i32, i32, i32, i32, i32
  }
}

</mosaic_0001>

<llo_original>
// kernel: tpu_custom_call.1
$region0: #{tpu_custom_call.1}
  #allocation0 [shape = 'u32[]', space=smem, size = 0x4, offset = 0x4, fixed_abs, tag = 'smem constant byte address 0x4 - core index']
  #allocation1 [shape = 'u32[144,128]{1,0:T(1,128)}', space=vmem, size = 0x12000, scoped, tag = 'internal scratch']
  %s0 = inlined_call_operand.hbm [shape: f32[16,16,1,1,24], index: 0, kind: input, shape index: {}]
  %s1 = inlined_call_operand.hbm [shape: f32[8,8,1,1,24], index: 1, kind: output, shape index: {}]
  %s2 = sld [smem:[#allocation0]]
  $region18: #{tpu_custom_call.1} parent=0
    _
  %s4 = ssub.s32 1, %s2
  %s5 = scalar_select 0, %s4, %s2
  $region1: #{tpu_custom_call.1} parent=0
    #allocation2 [shape = 'u8[131072]{0}', space=vmem, size = 0x20000, scoped, tag = 'input window, operand 0, single buffered']
    #allocation3 [shape = 's32[1]{0}', space=sflag, size = 0x4, scoped, tag = 'scoped memory for tpu_custom_call.1']
    #allocation4 [shape = 's32[1]{0}', space=sflag, size = 0x4, scoped, tag = 'scoped memory for tpu_custom_call.1']
    #allocation5 [shape = 'u8[32768]{0}', space=vmem, size = 0x8000, scoped, tag = 'output window, operand 0, single buffered']
    %6 = vsyncpa [#allocation3], 0
    %7 = vsyncpa [#allocation4], 0
    // Predicated region
    $region2: #{tpu_custom_call.1} parent=1 // pred_check
      _
    $region3: #{tpu_custom_call.1} parent=1 // pred_check_branch
      %9 = sbr.rel (0) target = $region5
    $region4: #{tpu_custom_call.1} parent=1 // pred_region
      %s11 = ssub.s32 4096, 4096
      %12 = vsyncadd [#allocation3], %s11
      %s13 = sshll.u32 [#allocation2], 4
      %s14 = int_to_ptr.vmem [resolvable:$true] %s13
      %19 = dma.hbm_to_vmem [thread:$0]  %s0, 4096, %s14, [#allocation3], 16, 16, 1
    $region5: #{tpu_custom_call.1} parent=1 // pred_fallthru
      _
    // Predicated region
    $region6: #{tpu_custom_call.1} parent=1 // pred_check
      _
    $region7: #{tpu_custom_call.1} parent=1 // pred_check_branch
      %21 = sbr.rel (0) target = $region9
    $region8: #{tpu_custom_call.1} parent=1 // pred_region
      %22 = dma.done [#allocation3], 4096
    $region9: #{tpu_custom_call.1} parent=1 // pred_fallthru
      _
    %v23 = vld [vmem:[#allocation2] sm:$0x1]
    %s24 = scalar_lea.vmem [#allocation2], 1
    %v25 = vld [vmem:[%s24] sm:$0x1]
    %v26 = vmax.f32 %v23, %v25
    %s27 = scalar_lea.vmem [#allocation2], 16
    %v28 = vld [vmem:[%s27] sm:$0x1]
    %v29 = vmax.f32 %v26, %v28
    %s30 = scalar_lea.vmem [#allocation2], 17
    %v31 = vld [vmem:[%s30] sm:$0x1]
    %v32 = vmax.f32 %v29, %v31
    %vm33 = vcmask 188416
    %34 = vst.msk [vmem:[#allocation5] sm:$0x1] %vm33, %v32
    %s35 = scalar_lea.vmem [#allocation2], 2
    %v36 = vld [vmem:[%s35] sm:$0x1]
    %s37 = scalar_lea.vmem [#allocation2], 3
    %v38 = vld [vmem:[%s37] sm:$0x1]
    %v39 = vmax.f32 %v36, %v38
    %s40 = scalar_lea.vmem [#allocation2], 18
    %v41 = vld [vmem:[%s40] sm:$0x1]
    %v42 = vmax.f32 %v39, %v41
    %s43 = scalar_lea.vmem [#allocation2], 19
    %v44 = vld [vmem:[%s43] sm:$0x1]
    %v45 = vmax.f32 %v42, %v44
    %s46 = scalar_lea.vmem [#allocation5], 1
    %47 = vst.msk [vmem:[%s46] sm:$0x1] %vm33, %v45
    %s48 = scalar_lea.vmem [#allocation2], 4
    %v49 = vld [vmem:[%s48] sm:$0x1]
    %s50 = scalar_lea.vmem [#allocation2], 5
    %v51 = vld [vmem:[%s50] sm:$0x1]
    %v52 = vmax.f32 %v49, %v51
    %s53 = scalar_lea.vmem [#allocation2], 20
    %v54 = vld [vmem:[%s53] sm:$0x1]
    %v55 = vmax.f32 %v52, %v54
    %s56 = scalar_lea.vmem [#allocation2], 21
    %v57 = vld [vmem:[%s56] sm:$0x1]
    %v58 = vmax.f32 %v55, %v57
    %s59 = scalar_lea.vmem [#allocation5], 2
    %60 = vst.msk [vmem:[%s59] sm:$0x1] %vm33, %v58
    %s61 = scalar_lea.vmem [#allocation2], 6
    %v62 = vld [vmem:[%s61] sm:$0x1]
    %s63 = scalar_lea.vmem [#allocation2], 7
    %v64 = vld [vmem:[%s63] sm:$0x1]
    %v65 = vmax.f32 %v62, %v64
    %s66 = scalar_lea.vmem [#allocation2], 22
    %v67 = vld [vmem:[%s66] sm:$0x1]
    %v68 = vmax.f32 %v65, %v67
    %s69 = scalar_lea.vmem [#allocation2], 23
    %v70 = vld [vmem:[%s69] sm:$0x1]
    %v71 = vmax.f32 %v68, %v70
    %s72 = scalar_lea.vmem [#allocation5], 3
    %73 = vst.msk [vmem:[%s72] sm:$0x1] %vm33, %v71
    %s74 = scalar_lea.vmem [#allocation2], 8
    %v75 = vld [vmem:[%s74] sm:$0x1]
    %s76 = scalar_lea.vmem [#allocation2], 9
    %v77 = vld [vmem:[%s76] sm:$0x1]
    %v78 = vmax.f32 %v75, %v77
    %s79 = scalar_lea.vmem [#allocation2], 24
    %v80 = vld [vmem:[%s79] sm:$0x1]
    %v81 = vmax.f32 %v78, %v80
    %s82 = scalar_lea.vmem [#allocation2], 25
    %v83 = vld [vmem:[%s82] sm:$0x1]
    %v84 = vmax.f32 %v81, %v83
    %s85 = scalar_lea.vmem [#allocation5], 4
    %86 = vst.msk [vmem:[%s85] sm:$0x1] %vm33, %v84
    %s87 = scalar_lea.vmem [#allocation2], 10
    %v88 = vld [vmem:[%s87] sm:$0x1]
    %s89 = scalar_lea.vmem [#allocation2], 11
    %v90 = vld [vmem:[%s89] sm:$0x1]
    %v91 = vmax.f32 %v88, %v90
    %s92 = scalar_lea.vmem [#allocation2], 26
    %v93 = vld [vmem:[%s92] sm:$0x1]
    %v94 = vmax.f32 %v91, %v93
    %s95 = scalar_lea.vmem [#allocation2], 27
    %v96 = vld [vmem:[%s95] sm:$0x1]
    %v97 = vmax.f32 %v94, %v96
    %s98 = scalar_lea.vmem [#allocation5], 5
    %99 = vst.msk [vmem:[%s98] sm:$0x1] %vm33, %v97
    %s100 = scalar_lea.vmem [#allocation2], 12
    %v101 = vld [vmem:[%s100] sm:$0x1]
    %s102 = scalar_lea.vmem [#allocation2], 13
    %v103 = vld [vmem:[%s102] sm:$0x1]
    %v104 = vmax.f32 %v101, %v103
    %s105 = scalar_lea.vmem [#allocation2], 28
    %v106 = vld [vmem:[%s105] sm:$0x1]
    %v107 = vmax.f32 %v104, %v106
    %s108 = scalar_lea.vmem [#allocation2], 29
    %v109 = vld [vmem:[%s108] sm:$0x1]
    %v110 = vmax.f32 %v107, %v109
    %s111 = scalar_lea.vmem [#allocation5], 6
    %112 = vst.msk [vmem:[%s111] sm:$0x1] %vm33, %v110
    %s113 = scalar_lea.vmem [#allocation2], 14
    %v114 = vld [vmem:[%s113] sm:$0x1]
    %s115 = scalar_lea.vmem [#allocation2], 15
    %v116 = vld [vmem:[%s115] sm:$0x1]
    %v117 = vmax.f32 %v114, %v116
    %s118 = scalar_lea.vmem [#allocation2], 30
    %v119 = vld [vmem:[%s118] sm:$0x1]
    %v120 = vmax.f32 %v117, %v119
    %s121 = scalar_lea.vmem [#allocation2], 31
    %v122 = vld [vmem:[%s121] sm:$0x1]
    %v123 = vmax.f32 %v120, %v122
    %s124 = scalar_lea.vmem [#allocation5], 7
    %125 = vst.msk [vmem:[%s124] sm:$0x1] %vm33, %v123
    %s126 = scalar_lea.vmem [#allocation2], 32
    %v127 = vld [vmem:[%s126] sm:$0x1]
    %s128 = scalar_lea.vmem [#allocation2], 33
    %v129 = vld [vmem:[%s128] sm:$0x1]
    %v130 = vmax.f32 %v127, %v129
    %s131 = scalar_lea.vmem [#allocation2], 48
    %v132 = vld [vmem:[%s131] sm:$0x1]
    %v133 = vmax.f32 %v130, %v132
    %s134 = scalar_lea.vmem [#allocation2], 49
    %v135 = vld [vmem:[%s134] sm:$0x1]
    %v136 = vmax.f32 %v133, %v135
    %s137 = scalar_lea.vmem [#allocation5], 8
    %138 = vst.msk [vmem:[%s137] sm:$0x1] %vm33, %v136
    %s139 = scalar_lea.vmem [#allocation2], 34
    %v140 = vld [vmem:[%s139] sm:$0x1]
    %s141 = scalar_lea.vmem [#allocation2], 35
    %v142 = vld [vmem:[%s141] sm:$0x1]
    %v143 = vmax.f32 %v140, %v142
    %s144 = scalar_lea.vmem [#allocation2], 50
    %v145 = vld [vmem:[%s144] sm:$0x1]
    %v146 = vmax.f32 %v143, %v145
    %s147 = scalar_lea.vmem [#allocation2], 51
    %v148 = vld [vmem:[%s147] sm:$0x1]
    %v149 = vmax.f32 %v146, %v148
    %s150 = scalar_lea.vmem [#allocation5], 9
    %151 = vst.msk [vmem:[%s150] sm:$0x1] %vm33, %v149
    %s152 = scalar_lea.vmem [#allocation2], 36
    %v153 = vld [vmem:[%s152] sm:$0x1]
    %s154 = scalar_lea.vmem [#allocation2], 37
    %v155 = vld [vmem:[%s154] sm:$0x1]
    %v156 = vmax.f32 %v153, %v155
    %s157 = scalar_lea.vmem [#allocation2], 52
    %v158 = vld [vmem:[%s157] sm:$0x1]
    %v159 = vmax.f32 %v156, %v158
    %s160 = scalar_lea.vmem [#allocation2], 53
    %v161 = vld [vmem:[%s160] sm:$0x1]
    %v162 = vmax.f32 %v159, %v161
    %s163 = scalar_lea.vmem [#allocation5], 10
    %164 = vst.msk [vmem:[%s163] sm:$0x1] %vm33, %v162
    %s165 = scalar_lea.vmem [#allocation2], 38
    %v166 = vld [vmem:[%s165] sm:$0x1]
    %s167 = scalar_lea.vmem [#allocation2], 39
    %v168 = vld [vmem:[%s167] sm:$0x1]
    %v169 = vmax.f32 %v166, %v168
    %s170 = scalar_lea.vmem [#allocation2], 54
    %v171 = vld [vmem:[%s170] sm:$0x1]
    %v172 = vmax.f32 %v169, %v171
    %s173 = scalar_lea.vmem [#allocation2], 55
    %v174 = vld [vmem:[%s173] sm:$0x1]
    %v175 = vmax.f32 %v172, %v174
    %s176 = scalar_lea.vmem [#allocation5], 11
    %177 = vst.msk [vmem:[%s176] sm:$0x1] %vm33, %v175
    %s178 = scalar_lea.vmem [#allocation2], 40
    %v179 = vld [vmem:[%s178] sm:$0x1]
    %s180 = scalar_lea.vmem [#allocation2], 41
    %v181 = vld [vmem:[%s180] sm:$0x1]
    %v182 = vmax.f32 %v179, %v181
    %s183 = scalar_lea.vmem [#allocation2], 56
    %v184 = vld [vmem:[%s183] sm:$0x1]
    %v185 = vmax.f32 %v182, %v184
    %s186 = scalar_lea.vmem [#allocation2], 57
    %v187 = vld [vmem:[%s186] sm:$0x1]
    %v188 = vmax.f32 %v185, %v187
    %s189 = scalar_lea.vmem [#allocation5], 12
    %190 = vst.msk [vmem:[%s189] sm:$0x1] %vm33, %v188
    %s191 = scalar_lea.vmem [#allocation2], 42
    %v192 = vld [vmem:[%s191] sm:$0x1]
    %s193 = scalar_lea.vmem [#allocation2], 43
    %v194 = vld [vmem:[%s193] sm:$0x1]
    %v195 = vmax.f32 %v192, %v194
    %s196 = scalar_lea.vmem [#allocation2], 58
    %v197 = vld [vmem:[%s196] sm:$0x1]
    %v198 = vmax.f32 %v195, %v197
    %s199 = scalar_lea.vmem [#allocation2], 59
    %v200 = vld [vmem:[%s199] sm:$0x1]
    %v201 = vmax.f32 %v198, %v200
    %s202 = scalar_lea.vmem [#allocation5], 13
    %203 = vst.msk [vmem:[%s202] sm:$0x1] %vm33, %v201
    %s204 = scalar_lea.vmem [#allocation2], 44
    %v205 = vld [vmem:[%s204] sm:$0x1]
    %s206 = scalar_lea.vmem [#allocation2], 45
    %v207 = vld [vmem:[%s206] sm:$0x1]
    %v208 = vmax.f32 %v205, %v207
    %s209 = scalar_lea.vmem [#allocation2], 60
    %v210 = vld [vmem:[%s209] sm:$0x1]
    %v211 = vmax.f32 %v208, %v210
    %s212 = scalar_lea.vmem [#allocation2], 61
    %v213 = vld [vmem:[%s212] sm:$0x1]
    %v214 = vmax.f32 %v211, %v213
    %s215 = scalar_lea.vmem [#allocation5], 14
    %216 = vst.msk [vmem:[%s215] sm:$0x1] %vm33, %v214
    %s217 = scalar_lea.vmem [#allocation2], 46
    %v218 = vld [vmem:[%s217] sm:$0x1]
    %s219 = scalar_lea.vmem [#allocation2], 47
    %v220 = vld [vmem:[%s219] sm:$0x1]
    %v221 = vmax.f32 %v218, %v220
    %s222 = scalar_lea.vmem [#allocation2], 62
    %v223 = vld [vmem:[%s222] sm:$0x1]
    %v224 = vmax.f32 %v221, %v223
    %s225 = scalar_lea.vmem [#allocation2], 63
    %v226 = vld [vmem:[%s225] sm:$0x1]
    %v227 = vmax.f32 %v224, %v226
    %s228 = scalar_lea.vmem [#allocation5], 15
    %229 = vst.msk [vmem:[%s228] sm:$0x1] %vm33, %v227
    %s230 = scalar_lea.vmem [#allocation2], 64
    %v231 = vld [vmem:[%s230] sm:$0x1]
    %s232 = scalar_lea.vmem [#allocation2], 65
    %v233 = vld [vmem:[%s232] sm:$0x1]
    %v234 = vmax.f32 %v231, %v233
    %s235 = scalar_lea.vmem [#allocation2], 80
    %v236 = vld [vmem:[%s235] sm:$0x1]
    %v237 = vmax.f32 %v234, %v236
    %s238 = scalar_lea.vmem [#allocation2], 81
    %v239 = vld [vmem:[%s238] sm:$0x1]
    %v240 = vmax.f32 %v237, %v239
    %s241 = scalar_lea.vmem [#allocation5], 16
    %242 = vst.msk [vmem:[%s241] sm:$0x1] %vm33, %v240
    %s243 = scalar_lea.vmem [#allocation2], 66
    %v244 = vld [vmem:[%s243] sm:$0x1]
    %s245 = scalar_lea.vmem [#allocation2], 67
    %v246 = vld [vmem:[%s245] sm:$0x1]
    %v247 = vmax.f32 %v244, %v246
    %s248 = scalar_lea.vmem [#allocation2], 82
    %v249 = vld [vmem:[%s248] sm:$0x1]
    %v250 = vmax.f32 %v247, %v249
    %s251 = scalar_lea.vmem [#allocation2], 83
    %v252 = vld [vmem:[%s251] sm:$0x1]
    %v253 = vmax.f32 %v250, %v252
    %s254 = scalar_lea.vmem [#allocation5], 17
    %255 = vst.msk [vmem:[%s254] sm:$0x1] %vm33, %v253
    %s256 = scalar_lea.vmem [#allocation2], 68
    %v257 = vld [vmem:[%s256] sm:$0x1]
    %s258 = scalar_lea.vmem [#allocation2], 69
    %v259 = vld [vmem:[%s258] sm:$0x1]
    %v260 = vmax.f32 %v257, %v259
    %s261 = scalar_lea.vmem [#allocation2], 84
    %v262 = vld [vmem:[%s261] sm:$0x1]
    %v263 = vmax.f32 %v260, %v262
    %s264 = scalar_lea.vmem [#allocation2], 85
    %v265 = vld [vmem:[%s264] sm:$0x1]
    %v266 = vmax.f32 %v263, %v265
    %s267 = scalar_lea.vmem [#allocation5], 18
    %268 = vst.msk [vmem:[%s267] sm:$0x1] %vm33, %v266
    %s269 = scalar_lea.vmem [#allocation2], 70
    %v270 = vld [vmem:[%s269] sm:$0x1]
    %s271 = scalar_lea.vmem [#allocation2], 71
    %v272 = vld [vmem:[%s271] sm:$0x1]
    %v273 = vmax.f32 %v270, %v272
    %s274 = scalar_lea.vmem [#allocation2], 86
    %v275 = vld [vmem:[%s274] sm:$0x1]
    %v276 = vmax.f32 %v273, %v275
    %s277 = scalar_lea.vmem [#allocation2], 87
    %v278 = vld [vmem:[%s277] sm:$0x1]
    %v279 = vmax.f32 %v276, %v278
    %s280 = scalar_lea.vmem [#allocation5], 19
    %281 = vst.msk [vmem:[%s280] sm:$0x1] %vm33, %v279
    %s282 = scalar_lea.vmem [#allocation2], 72
    %v283 = vld [vmem:[%s282] sm:$0x1]
    %s284 = scalar_lea.vmem [#allocation2], 73
    %v285 = vld [vmem:[%s284] sm:$0x1]
    %v286 = vmax.f32 %v283, %v285
    %s287 = scalar_lea.vmem [#allocation2], 88
    %v288 = vld [vmem:[%s287] sm:$0x1]
    %v289 = vmax.f32 %v286, %v288
    %s290 = scalar_lea.vmem [#allocation2], 89
    %v291 = vld [vmem:[%s290] sm:$0x1]
    %v292 = vmax.f32 %v289, %v291
    %s293 = scalar_lea.vmem [#allocation5], 20
    %294 = vst.msk [vmem:[%s293] sm:$0x1] %vm33, %v292
    %s295 = scalar_lea.vmem [#allocation2], 74
    %v296 = vld [vmem:[%s295] sm:$0x1]
    %s297 = scalar_lea.vmem [#allocation2], 75
    %v298 = vld [vmem:[%s297] sm:$0x1]
    %v299 = vmax.f32 %v296, %v298
    %s300 = scalar_lea.vmem [#allocation2], 90
    %v301 = vld [vmem:[%s300] sm:$0x1]
    %v302 = vmax.f32 %v299, %v301
    %s303 = scalar_lea.vmem [#allocation2], 91
    %v304 = vld [vmem:[%s303] sm:$0x1]
    %v305 = vmax.f32 %v302, %v304
    %s306 = scalar_lea.vmem [#allocation5], 21
    %307 = vst.msk [vmem:[%s306] sm:$0x1] %vm33, %v305
    %s308 = scalar_lea.vmem [#allocation2], 76
    %v309 = vld [vmem:[%s308] sm:$0x1]
    %s310 = scalar_lea.vmem [#allocation2], 77
    %v311 = vld [vmem:[%s310] sm:$0x1]
    %v312 = vmax.f32 %v309, %v311
    %s313 = scalar_lea.vmem [#allocation2], 92
    %v314 = vld [vmem:[%s313] sm:$0x1]
    %v315 = vmax.f32 %v312, %v314
    %s316 = scalar_lea.vmem [#allocation2], 93
    %v317 = vld [vmem:[%s316] sm:$0x1]
    %v318 = vmax.f32 %v315, %v317
    %s319 = scalar_lea.vmem [#allocation5], 22
    %320 = vst.msk [vmem:[%s319] sm:$0x1] %vm33, %v318
    %s321 = scalar_lea.vmem [#allocation2], 78
    %v322 = vld [vmem:[%s321] sm:$0x1]
    %s323 = scalar_lea.vmem [#allocation2], 79
    %v324 = vld [vmem:[%s323] sm:$0x1]
    %v325 = vmax.f32 %v322, %v324
    %s326 = scalar_lea.vmem [#allocation2], 94
    %v327 = vld [vmem:[%s326] sm:$0x1]
    %v328 = vmax.f32 %v325, %v327
    %s329 = scalar_lea.vmem [#allocation2], 95
    %v330 = vld [vmem:[%s329] sm:$0x1]
    %v331 = vmax.f32 %v328, %v330
    %s332 = scalar_lea.vmem [#allocation5], 23
    %333 = vst.msk [vmem:[%s332] sm:$0x1] %vm33, %v331
    %s334 = scalar_lea.vmem [#allocation2], 96
    %v335 = vld [vmem:[%s334] sm:$0x1]
    %s336 = scalar_lea.vmem [#allocation2], 97
    %v337 = vld [vmem:[%s336] sm:$0x1]
    %v338 = vmax.f32 %v335, %v337
    %s339 = scalar_lea.vmem [#allocation2], 112
    %v340 = vld [vmem:[%s339] sm:$0x1]
    %v341 = vmax.f32 %v338, %v340
    %s342 = scalar_lea.vmem [#allocation2], 113
    %v343 = vld [vmem:[%s342] sm:$0x1]
    %v344 = vmax.f32 %v341, %v343
    %s345 = scalar_lea.vmem [#allocation5], 24
    %346 = vst.msk [vmem:[%s345] sm:$0x1] %vm33, %v344
    %s347 = scalar_lea.vmem [#allocation2], 98
    %v348 = vld [vmem:[%s347] sm:$0x1]
    %s349 = scalar_lea.vmem [#allocation2], 99
    %v350 = vld [vmem:[%s349] sm:$0x1]
    %v351 = vmax.f32 %v348, %v350
    %s352 = scalar_lea.vmem [#allocation2], 114
    %v353 = vld [vmem:[%s352] sm:$0x1]
    %v354 = vmax.f32 %v351, %v353
    %s355 = scalar_lea.vmem [#allocation2], 115
    %v356 = vld [vmem:[%s355] sm:$0x1]
    %v357 = vmax.f32 %v354, %v356
    %s358 = scalar_lea.vmem [#allocation5], 25
    %359 = vst.msk [vmem:[%s358] sm:$0x1] %vm33, %v357
    %s360 = scalar_lea.vmem [#allocation2], 100
    %v361 = vld [vmem:[%s360] sm:$0x1]
    %s362 = scalar_lea.vmem [#allocation2], 101
    %v363 = vld [vmem:[%s362] sm:$0x1]
    %v364 = vmax.f32 %v361, %v363
    %s365 = scalar_lea.vmem [#allocation2], 116
    %v366 = vld [vmem:[%s365] sm:$0x1]
    %v367 = vmax.f32 %v364, %v366
    %s368 = scalar_lea.vmem [#allocation2], 117
    %v369 = vld [vmem:[%s368] sm:$0x1]
    %v370 = vmax.f32 %v367, %v369
    %s371 = scalar_lea.vmem [#allocation5], 26
    %372 = vst.msk [vmem:[%s371] sm:$0x1] %vm33, %v370
    %s373 = scalar_lea.vmem [#allocation2], 102
    %v374 = vld [vmem:[%s373] sm:$0x1]
    %s375 = scalar_lea.vmem [#allocation2], 103
    %v376 = vld [vmem:[%s375] sm:$0x1]
    %v377 = vmax.f32 %v374, %v376
    %s378 = scalar_lea.vmem [#allocation2], 118
    %v379 = vld [vmem:[%s378] sm:$0x1]
    %v380 = vmax.f32 %v377, %v379
    %s381 = scalar_lea.vmem [#allocation2], 119
    %v382 = vld [vmem:[%s381] sm:$0x1]
    %v383 = vmax.f32 %v380, %v382
    %s384 = scalar_lea.vmem [#allocation5], 27
    %385 = vst.msk [vmem:[%s384] sm:$0x1] %vm33, %v383
    %s386 = scalar_lea.vmem [#allocation2], 104
    %v387 = vld [vmem:[%s386] sm:$0x1]
    %s388 = scalar_lea.vmem [#allocation2], 105
    %v389 = vld [vmem:[%s388] sm:$0x1]
    %v390 = vmax.f32 %v387, %v389
    %s391 = scalar_lea.vmem [#allocation2], 120
    %v392 = vld [vmem:[%s391] sm:$0x1]
    %v393 = vmax.f32 %v390, %v392
    %s394 = scalar_lea.vmem [#allocation2], 121
    %v395 = vld [vmem:[%s394] sm:$0x1]
    %v396 = vmax.f32 %v393, %v395
    %s397 = scalar_lea.vmem [#allocation5], 28
    %398 = vst.msk [vmem:[%s397] sm:$0x1] %vm33, %v396
    %s399 = scalar_lea.vmem [#allocation2], 106
    %v400 = vld [vmem:[%s399] sm:$0x1]
    %s401 = scalar_lea.vmem [#allocation2], 107
    %v402 = vld [vmem:[%s401] sm:$0x1]
    %v403 = vmax.f32 %v400, %v402
    %s404 = scalar_lea.vmem [#allocation2], 122
    %v405 = vld [vmem:[%s404] sm:$0x1]
    %v406 = vmax.f32 %v403, %v405
    %s407 = scalar_lea.vmem [#allocation2], 123
    %v408 = vld [vmem:[%s407] sm:$0x1]
    %v409 = vmax.f32 %v406, %v408
    %s410 = scalar_lea.vmem [#allocation5], 29
    %411 = vst.msk [vmem:[%s410] sm:$0x1] %vm33, %v409
    %s412 = scalar_lea.vmem [#allocation2], 108
    %v413 = vld [vmem:[%s412] sm:$0x1]
    %s414 = scalar_lea.vmem [#allocation2], 109
    %v415 = vld [vmem:[%s414] sm:$0x1]
    %v416 = vmax.f32 %v413, %v415
    %s417 = scalar_lea.vmem [#allocation2], 124
    %v418 = vld [vmem:[%s417] sm:$0x1]
    %v419 = vmax.f32 %v416, %v418
    %s420 = scalar_lea.vmem [#allocation2], 125
    %v421 = vld [vmem:[%s420] sm:$0x1]
    %v422 = vmax.f32 %v419, %v421
    %s423 = scalar_lea.vmem [#allocation5], 30
    %424 = vst.msk [vmem:[%s423] sm:$0x1] %vm33, %v422
    %s425 = scalar_lea.vmem [#allocation2], 110
    %v426 = vld [vmem:[%s425] sm:$0x1]
    %s427 = scalar_lea.vmem [#allocation2], 111
    %v428 = vld [vmem:[%s427] sm:$0x1]
    %v429 = vmax.f32 %v426, %v428
    %s430 = scalar_lea.vmem [#allocation2], 126
    %v431 = vld [vmem:[%s430] sm:$0x1]
    %v432 = vmax.f32 %v429, %v431
    %s433 = scalar_lea.vmem [#allocation2], 127
    %v434 = vld [vmem:[%s433] sm:$0x1]
    %v435 = vmax.f32 %v432, %v434
    %s436 = scalar_lea.vmem [#allocation5], 31
    %437 = vst.msk [vmem:[%s436] sm:$0x1] %vm33, %v435
    %s438 = scalar_lea.vmem [#allocation2], 128
    %v439 = vld [vmem:[%s438] sm:$0x1]
    %s440 = scalar_lea.vmem [#allocation2], 129
    %v441 = vld [vmem:[%s440] sm:$0x1]
    %v442 = vmax.f32 %v439, %v441
    %s443 = scalar_lea.vmem [#allocation2], 144
    %v444 = vld [vmem:[%s443] sm:$0x1]
    %v445 = vmax.f32 %v442, %v444
    %s446 = scalar_lea.vmem [#allocation2], 145
    %v447 = vld [vmem:[%s446] sm:$0x1]
    %v448 = vmax.f32 %v445, %v447
    %s449 = scalar_lea.vmem [#allocation5], 32
    %450 = vst.msk [vmem:[%s449] sm:$0x1] %vm33, %v448
    %s451 = scalar_lea.vmem [#allocation2], 130
    %v452 = vld [vmem:[%s451] sm:$0x1]
    %s453 = scalar_lea.vmem [#allocation2], 131
    %v454 = vld [vmem:[%s453] sm:$0x1]
    %v455 = vmax.f32 %v452, %v454
    %s456 = scalar_lea.vmem [#allocation2], 146
    %v457 = vld [vmem:[%s456] sm:$0x1]
    %v458 = vmax.f32 %v455, %v457
    %s459 = scalar_lea.vmem [#allocation2], 147
    %v460 = vld [vmem:[%s459] sm:$0x1]
    %v461 = vmax.f32 %v458, %v460
    %s462 = scalar_lea.vmem [#allocation5], 33
    %463 = vst.msk [vmem:[%s462] sm:$0x1] %vm33, %v461
    %s464 = scalar_lea.vmem [#allocation2], 132
    %v465 = vld [vmem:[%s464] sm:$0x1]
    %s466 = scalar_lea.vmem [#allocation2], 133
    %v467 = vld [vmem:[%s466] sm:$0x1]
    %v468 = vmax.f32 %v465, %v467
    %s469 = scalar_lea.vmem [#allocation2], 148
    %v470 = vld [vmem:[%s469] sm:$0x1]
    %v471 = vmax.f32 %v468, %v470
    %s472 = scalar_lea.vmem [#allocation2], 149
    %v473 = vld [vmem:[%s472] sm:$0x1]
    %v474 = vmax.f32 %v471, %v473
    %s475 = scalar_lea.vmem [#allocation5], 34
    %476 = vst.msk [vmem:[%s475] sm:$0x1] %vm33, %v474
    %s477 = scalar_lea.vmem [#allocation2], 134
    %v478 = vld [vmem:[%s477] sm:$0x1]
    %s479 = scalar_lea.vmem [#allocation2], 135
    %v480 = vld [vmem:[%s479] sm:$0x1]
    %v481 = vmax.f32 %v478, %v480
    %s482 = scalar_lea.vmem [#allocation2], 150
    %v483 = vld [vmem:[%s482] sm:$0x1]
    %v484 = vmax.f32 %v481, %v483
    %s485 = scalar_lea.vmem [#allocation2], 151
    %v486 = vld [vmem:[%s485] sm:$0x1]
    %v487 = vmax.f32 %v484, %v486
    %s488 = scalar_lea.vmem [#allocation5], 35
    %489 = vst.msk [vmem:[%s488] sm:$0x1] %vm33, %v487
    %s490 = scalar_lea.vmem [#allocation2], 136
    %v491 = vld [vmem:[%s490] sm:$0x1]
    %s492 = scalar_lea.vmem [#allocation2], 137
    %v493 = vld [vmem:[%s492] sm:$0x1]
    %v494 = vmax.f32 %v491, %v493
    %s495 = scalar_lea.vmem [#allocation2], 152
    %v496 = vld [vmem:[%s495] sm:$0x1]
    %v497 = vmax.f32 %v494, %v496
    %s498 = scalar_lea.vmem [#allocation2], 153
    %v499 = vld [vmem:[%s498] sm:$0x1]
    %v500 = vmax.f32 %v497, %v499
    %s501 = scalar_lea.vmem [#allocation5], 36
    %502 = vst.msk [vmem:[%s501] sm:$0x1] %vm33, %v500
    %s503 = scalar_lea.vmem [#allocation2], 138
    %v504 = vld [vmem:[%s503] sm:$0x1]
    %s505 = scalar_lea.vmem [#allocation2], 139
    %v506 = vld [vmem:[%s505] sm:$0x1]
    %v507 = vmax.f32 %v504, %v506
    %s508 = scalar_lea.vmem [#allocation2], 154
    %v509 = vld [vmem:[%s508] sm:$0x1]
    %v510 = vmax.f32 %v507, %v509
    %s511 = scalar_lea.vmem [#allocation2], 155
    %v512 = vld [vmem:[%s511] sm:$0x1]
    %v513 = vmax.f32 %v510, %v512
    %s514 = scalar_lea.vmem [#allocation5], 37
    %515 = vst.msk [vmem:[%s514] sm:$0x1] %vm33, %v513
    %s516 = scalar_lea.vmem [#allocation2], 140
    %v517 = vld [vmem:[%s516] sm:$0x1]
    %s518 = scalar_lea.vmem [#allocation2], 141
    %v519 = vld [vmem:[%s518] sm:$0x1]
    %v520 = vmax.f32 %v517, %v519
    %s521 = scalar_lea.vmem [#allocation2], 156
    %v522 = vld [vmem:[%s521] sm:$0x1]
    %v523 = vmax.f32 %v520, %v522
    %s524 = scalar_lea.vmem [#allocation2], 157
    %v525 = vld [vmem:[%s524] sm:$0x1]
    %v526 = vmax.f32 %v523, %v525
    %s527 = scalar_lea.vmem [#allocation5], 38
    %528 = vst.msk [vmem:[%s527] sm:$0x1] %vm33, %v526
    %s529 = scalar_lea.vmem [#allocation2], 142
    %v530 = vld [vmem:[%s529] sm:$0x1]
    %s531 = scalar_lea.vmem [#allocation2], 143
    %v532 = vld [vmem:[%s531] sm:$0x1]
    %v533 = vmax.f32 %v530, %v532
    %s534 = scalar_lea.vmem [#allocation2], 158
    %v535 = vld [vmem:[%s534] sm:$0x1]
    %v536 = vmax.f32 %v533, %v535
    %s537 = scalar_lea.vmem [#allocation2], 159
    %v538 = vld [vmem:[%s537] sm:$0x1]
    %v539 = vmax.f32 %v536, %v538
    %s540 = scalar_lea.vmem [#allocation5], 39
    %541 = vst.msk [vmem:[%s540] sm:$0x1] %vm33, %v539
    %s542 = scalar_lea.vmem [#allocation2], 160
    %v543 = vld [vmem:[%s542] sm:$0x1]
    %s544 = scalar_lea.vmem [#allocation2], 161
    %v545 = vld [vmem:[%s544] sm:$0x1]
    %v546 = vmax.f32 %v543, %v545
    %s547 = scalar_lea.vmem [#allocation2], 176
    %v548 = vld [vmem:[%s547] sm:$0x1]
    %v549 = vmax.f32 %v546, %v548
    %s550 = scalar_lea.vmem [#allocation2], 177
    %v551 = vld [vmem:[%s550] sm:$0x1]
    %v552 = vmax.f32 %v549, %v551
    %s553 = scalar_lea.vmem [#allocation5], 40
    %554 = vst.msk [vmem:[%s553] sm:$0x1] %vm33, %v552
    %s555 = scalar_lea.vmem [#allocation2], 162
    %v556 = vld [vmem:[%s555] sm:$0x1]
    %s557 = scalar_lea.vmem [#allocation2], 163
    %v558 = vld [vmem:[%s557] sm:$0x1]
    %v559 = vmax.f32 %v556, %v558
    %s560 = scalar_lea.vmem [#allocation2], 178
    %v561 = vld [vmem:[%s560] sm:$0x1]
    %v562 = vmax.f32 %v559, %v561
    %s563 = scalar_lea.vmem [#allocation2], 179
    %v564 = vld [vmem:[%s563] sm:$0x1]
    %v565 = vmax.f32 %v562, %v564
    %s566 = scalar_lea.vmem [#allocation5], 41
    %567 = vst.msk [vmem:[%s566] sm:$0x1] %vm33, %v565
    %s568 = scalar_lea.vmem [#allocation2], 164
    %v569 = vld [vmem:[%s568] sm:$0x1]
    %s570 = scalar_lea.vmem [#allocation2], 165
    %v571 = vld [vmem:[%s570] sm:$0x1]
    %v572 = vmax.f32 %v569, %v571
    %s573 = scalar_lea.vmem [#allocation2], 180
    %v574 = vld [vmem:[%s573] sm:$0x1]
    %v575 = vmax.f32 %v572, %v574
    %s576 = scalar_lea.vmem [#allocation2], 181
    %v577 = vld [vmem:[%s576] sm:$0x1]
    %v578 = vmax.f32 %v575, %v577
    %s579 = scalar_lea.vmem [#allocation5], 42
    %580 = vst.msk [vmem:[%s579] sm:$0x1] %vm33, %v578
    %s581 = scalar_lea.vmem [#allocation2], 166
    %v582 = vld [vmem:[%s581] sm:$0x1]
    %s583 = scalar_lea.vmem [#allocation2], 167
    %v584 = vld [vmem:[%s583] sm:$0x1]
    %v585 = vmax.f32 %v582, %v584
    %s586 = scalar_lea.vmem [#allocation2], 182
    %v587 = vld [vmem:[%s586] sm:$0x1]
    %v588 = vmax.f32 %v585, %v587
    %s589 = scalar_lea.vmem [#allocation2], 183
    %v590 = vld [vmem:[%s589] sm:$0x1]
    %v591 = vmax.f32 %v588, %v590
    %s592 = scalar_lea.vmem [#allocation5], 43
    %593 = vst.msk [vmem:[%s592] sm:$0x1] %vm33, %v591
    %s594 = scalar_lea.vmem [#allocation2], 168
    %v595 = vld [vmem:[%s594] sm:$0x1]
    %s596 = scalar_lea.vmem [#allocation2], 169
    %v597 = vld [vmem:[%s596] sm:$0x1]
    %v598 = vmax.f32 %v595, %v597
    %s599 = scalar_lea.vmem [#allocation2], 184
    %v600 = vld [vmem:[%s599] sm:$0x1]
    %v601 = vmax.f32 %v598, %v600
    %s602 = scalar_lea.vmem [#allocation2], 185
    %v603 = vld [vmem:[%s602] sm:$0x1]
    %v604 = vmax.f32 %v601, %v603
    %s605 = scalar_lea.vmem [#allocation5], 44
    %606 = vst.msk [vmem:[%s605] sm:$0x1] %vm33, %v604
    %s607 = scalar_lea.vmem [#allocation2], 170
    %v608 = vld [vmem:[%s607] sm:$0x1]
    %s609 = scalar_lea.vmem [#allocation2], 171
    %v610 = vld [vmem:[%s609] sm:$0x1]
    %v611 = vmax.f32 %v608, %v610
    %s612 = scalar_lea.vmem [#allocation2], 186
    %v613 = vld [vmem:[%s612] sm:$0x1]
    %v614 = vmax.f32 %v611, %v613
    %s615 = scalar_lea.vmem [#allocation2], 187
    %v616 = vld [vmem:[%s615] sm:$0x1]
    %v617 = vmax.f32 %v614, %v616
    %s618 = scalar_lea.vmem [#allocation5], 45
    %619 = vst.msk [vmem:[%s618] sm:$0x1] %vm33, %v617
    %s620 = scalar_lea.vmem [#allocation2], 172
    %v621 = vld [vmem:[%s620] sm:$0x1]
    %s622 = scalar_lea.vmem [#allocation2], 173
    %v623 = vld [vmem:[%s622] sm:$0x1]
    %v624 = vmax.f32 %v621, %v623
    %s625 = scalar_lea.vmem [#allocation2], 188
    %v626 = vld [vmem:[%s625] sm:$0x1]
    %v627 = vmax.f32 %v624, %v626
    %s628 = scalar_lea.vmem [#allocation2], 189
    %v629 = vld [vmem:[%s628] sm:$0x1]
    %v630 = vmax.f32 %v627, %v629
    %s631 = scalar_lea.vmem [#allocation5], 46
    %632 = vst.msk [vmem:[%s631] sm:$0x1] %vm33, %v630
    %s633 = scalar_lea.vmem [#allocation2], 174
    %v634 = vld [vmem:[%s633] sm:$0x1]
    %s635 = scalar_lea.vmem [#allocation2], 175
    %v636 = vld [vmem:[%s635] sm:$0x1]
    %v637 = vmax.f32 %v634, %v636
    %s638 = scalar_lea.vmem [#allocation2], 190
    %v639 = vld [vmem:[%s638] sm:$0x1]
    %v640 = vmax.f32 %v637, %v639
    %s641 = scalar_lea.vmem [#allocation2], 191
    %v642 = vld [vmem:[%s641] sm:$0x1]
    %v643 = vmax.f32 %v640, %v642
    %s644 = scalar_lea.vmem [#allocation5], 47
    %645 = vst.msk [vmem:[%s644] sm:$0x1] %vm33, %v643
    %s646 = scalar_lea.vmem [#allocation2], 192
    %v647 = vld [vmem:[%s646] sm:$0x1]
    %s648 = scalar_lea.vmem [#allocation2], 193
    %v649 = vld [vmem:[%s648] sm:$0x1]
    %v650 = vmax.f32 %v647, %v649
    %s651 = scalar_lea.vmem [#allocation2], 208
    %v652 = vld [vmem:[%s651] sm:$0x1]
    %v653 = vmax.f32 %v650, %v652
    %s654 = scalar_lea.vmem [#allocation2], 209
    %v655 = vld [vmem:[%s654] sm:$0x1]
    %v656 = vmax.f32 %v653, %v655
    %s657 = scalar_lea.vmem [#allocation5], 48
    %658 = vst.msk [vmem:[%s657] sm:$0x1] %vm33, %v656
    %s659 = scalar_lea.vmem [#allocation2], 194
    %v660 = vld [vmem:[%s659] sm:$0x1]
    %s661 = scalar_lea.vmem [#allocation2], 195
    %v662 = vld [vmem:[%s661] sm:$0x1]
    %v663 = vmax.f32 %v660, %v662
    %s664 = scalar_lea.vmem [#allocation2], 210
    %v665 = vld [vmem:[%s664] sm:$0x1]
    %v666 = vmax.f32 %v663, %v665
    %s667 = scalar_lea.vmem [#allocation2], 211
    %v668 = vld [vmem:[%s667] sm:$0x1]
    %v669 = vmax.f32 %v666, %v668
    %s670 = scalar_lea.vmem [#allocation5], 49
    %671 = vst.msk [vmem:[%s670] sm:$0x1] %vm33, %v669
    %s672 = scalar_lea.vmem [#allocation2], 196
    %v673 = vld [vmem:[%s672] sm:$0x1]
    %s674 = scalar_lea.vmem [#allocation2], 197
    %v675 = vld [vmem:[%s674] sm:$0x1]
    %v676 = vmax.f32 %v673, %v675
    %s677 = scalar_lea.vmem [#allocation2], 212
    %v678 = vld [vmem:[%s677] sm:$0x1]
    %v679 = vmax.f32 %v676, %v678
    %s680 = scalar_lea.vmem [#allocation2], 213
    %v681 = vld [vmem:[%s680] sm:$0x1]
    %v682 = vmax.f32 %v679, %v681
    %s683 = scalar_lea.vmem [#allocation5], 50
    %684 = vst.msk [vmem:[%s683] sm:$0x1] %vm33, %v682
    %s685 = scalar_lea.vmem [#allocation2], 198
    %v686 = vld [vmem:[%s685] sm:$0x1]
    %s687 = scalar_lea.vmem [#allocation2], 199
    %v688 = vld [vmem:[%s687] sm:$0x1]
    %v689 = vmax.f32 %v686, %v688
    %s690 = scalar_lea.vmem [#allocation2], 214
    %v691 = vld [vmem:[%s690] sm:$0x1]
    %v692 = vmax.f32 %v689, %v691
    %s693 = scalar_lea.vmem [#allocation2], 215
    %v694 = vld [vmem:[%s693] sm:$0x1]
    %v695 = vmax.f32 %v692, %v694
    %s696 = scalar_lea.vmem [#allocation5], 51
    %697 = vst.msk [vmem:[%s696] sm:$0x1] %vm33, %v695
    %s698 = scalar_lea.vmem [#allocation2], 200
    %v699 = vld [vmem:[%s698] sm:$0x1]
    %s700 = scalar_lea.vmem [#allocation2], 201
    %v701 = vld [vmem:[%s700] sm:$0x1]
    %v702 = vmax.f32 %v699, %v701
    %s703 = scalar_lea.vmem [#allocation2], 216
    %v704 = vld [vmem:[%s703] sm:$0x1]
    %v705 = vmax.f32 %v702, %v704
    %s706 = scalar_lea.vmem [#allocation2], 217
    %v707 = vld [vmem:[%s706] sm:$0x1]
    %v708 = vmax.f32 %v705, %v707
    %s709 = scalar_lea.vmem [#allocation5], 52
    %710 = vst.msk [vmem:[%s709] sm:$0x1] %vm33, %v708
    %s711 = scalar_lea.vmem [#allocation2], 202
    %v712 = vld [vmem:[%s711] sm:$0x1]
    %s713 = scalar_lea.vmem [#allocation2], 203
    %v714 = vld [vmem:[%s713] sm:$0x1]
    %v715 = vmax.f32 %v712, %v714
    %s716 = scalar_lea.vmem [#allocation2], 218
    %v717 = vld [vmem:[%s716] sm:$0x1]
    %v718 = vmax.f32 %v715, %v717
    %s719 = scalar_lea.vmem [#allocation2], 219
    %v720 = vld [vmem:[%s719] sm:$0x1]
    %v721 = vmax.f32 %v718, %v720
    %s722 = scalar_lea.vmem [#allocation5], 53
    %723 = vst.msk [vmem:[%s722] sm:$0x1] %vm33, %v721
    %s724 = scalar_lea.vmem [#allocation2], 204
    %v725 = vld [vmem:[%s724] sm:$0x1]
    %s726 = scalar_lea.vmem [#allocation2], 205
    %v727 = vld [vmem:[%s726] sm:$0x1]
    %v728 = vmax.f32 %v725, %v727
    %s729 = scalar_lea.vmem [#allocation2], 220
    %v730 = vld [vmem:[%s729] sm:$0x1]
    %v731 = vmax.f32 %v728, %v730
    %s732 = scalar_lea.vmem [#allocation2], 221
    %v733 = vld [vmem:[%s732] sm:$0x1]
    %v734 = vmax.f32 %v731, %v733
    %s735 = scalar_lea.vmem [#allocation5], 54
    %736 = vst.msk [vmem:[%s735] sm:$0x1] %vm33, %v734
    %s737 = scalar_lea.vmem [#allocation2], 206
    %v738 = vld [vmem:[%s737] sm:$0x1]
    %s739 = scalar_lea.vmem [#allocation2], 207
    %v740 = vld [vmem:[%s739] sm:$0x1]
    %v741 = vmax.f32 %v738, %v740
    %s742 = scalar_lea.vmem [#allocation2], 222
    %v743 = vld [vmem:[%s742] sm:$0x1]
    %v744 = vmax.f32 %v741, %v743
    %s745 = scalar_lea.vmem [#allocation2], 223
    %v746 = vld [vmem:[%s745] sm:$0x1]
    %v747 = vmax.f32 %v744, %v746
    %s748 = scalar_lea.vmem [#allocation5], 55
    %749 = vst.msk [vmem:[%s748] sm:$0x1] %vm33, %v747
    %s750 = scalar_lea.vmem [#allocation2], 224
    %v751 = vld [vmem:[%s750] sm:$0x1]
    %s752 = scalar_lea.vmem [#allocation2], 225
    %v753 = vld [vmem:[%s752] sm:$0x1]
    %v754 = vmax.f32 %v751, %v753
    %s755 = scalar_lea.vmem [#allocation2], 240
    %v756 = vld [vmem:[%s755] sm:$0x1]
    %v757 = vmax.f32 %v754, %v756
    %s758 = scalar_lea.vmem [#allocation2], 241
    %v759 = vld [vmem:[%s758] sm:$0x1]
    %v760 = vmax.f32 %v757, %v759
    %s761 = scalar_lea.vmem [#allocation5], 56
    %762 = vst.msk [vmem:[%s761] sm:$0x1] %vm33, %v760
    %s763 = scalar_lea.vmem [#allocation2], 226
    %v764 = vld [vmem:[%s763] sm:$0x1]
    %s765 = scalar_lea.vmem [#allocation2], 227
    %v766 = vld [vmem:[%s765] sm:$0x1]
    %v767 = vmax.f32 %v764, %v766
    %s768 = scalar_lea.vmem [#allocation2], 242
    %v769 = vld [vmem:[%s768] sm:$0x1]
    %v770 = vmax.f32 %v767, %v769
    %s771 = scalar_lea.vmem [#allocation2], 243
    %v772 = vld [vmem:[%s771] sm:$0x1]
    %v773 = vmax.f32 %v770, %v772
    %s774 = scalar_lea.vmem [#allocation5], 57
    %775 = vst.msk [vmem:[%s774] sm:$0x1] %vm33, %v773
    %s776 = scalar_lea.vmem [#allocation2], 228
    %v777 = vld [vmem:[%s776] sm:$0x1]
    %s778 = scalar_lea.vmem [#allocation2], 229
    %v779 = vld [vmem:[%s778] sm:$0x1]
    %v780 = vmax.f32 %v777, %v779
    %s781 = scalar_lea.vmem [#allocation2], 244
    %v782 = vld [vmem:[%s781] sm:$0x1]
    %v783 = vmax.f32 %v780, %v782
    %s784 = scalar_lea.vmem [#allocation2], 245
    %v785 = vld [vmem:[%s784] sm:$0x1]
    %v786 = vmax.f32 %v783, %v785
    %s787 = scalar_lea.vmem [#allocation5], 58
    %788 = vst.msk [vmem:[%s787] sm:$0x1] %vm33, %v786
    %s789 = scalar_lea.vmem [#allocation2], 230
    %v790 = vld [vmem:[%s789] sm:$0x1]
    %s791 = scalar_lea.vmem [#allocation2], 231
    %v792 = vld [vmem:[%s791] sm:$0x1]
    %v793 = vmax.f32 %v790, %v792
    %s794 = scalar_lea.vmem [#allocation2], 246
    %v795 = vld [vmem:[%s794] sm:$0x1]
    %v796 = vmax.f32 %v793, %v795
    %s797 = scalar_lea.vmem [#allocation2], 247
    %v798 = vld [vmem:[%s797] sm:$0x1]
    %v799 = vmax.f32 %v796, %v798
    %s800 = scalar_lea.vmem [#allocation5], 59
    %801 = vst.msk [vmem:[%s800] sm:$0x1] %vm33, %v799
    %s802 = scalar_lea.vmem [#allocation2], 232
    %v803 = vld [vmem:[%s802] sm:$0x1]
    %s804 = scalar_lea.vmem [#allocation2], 233
    %v805 = vld [vmem:[%s804] sm:$0x1]
    %v806 = vmax.f32 %v803, %v805
    %s807 = scalar_lea.vmem [#allocation2], 248
    %v808 = vld [vmem:[%s807] sm:$0x1]
    %v809 = vmax.f32 %v806, %v808
    %s810 = scalar_lea.vmem [#allocation2], 249
    %v811 = vld [vmem:[%s810] sm:$0x1]
    %v812 = vmax.f32 %v809, %v811
    %s813 = scalar_lea.vmem [#allocation5], 60
    %814 = vst.msk [vmem:[%s813] sm:$0x1] %vm33, %v812
    %s815 = scalar_lea.vmem [#allocation2], 234
    %v816 = vld [vmem:[%s815] sm:$0x1]
    %s817 = scalar_lea.vmem [#allocation2], 235
    %v818 = vld [vmem:[%s817] sm:$0x1]
    %v819 = vmax.f32 %v816, %v818
    %s820 = scalar_lea.vmem [#allocation2], 250
    %v821 = vld [vmem:[%s820] sm:$0x1]
    %v822 = vmax.f32 %v819, %v821
    %s823 = scalar_lea.vmem [#allocation2], 251
    %v824 = vld [vmem:[%s823] sm:$0x1]
    %v825 = vmax.f32 %v822, %v824
    %s826 = scalar_lea.vmem [#allocation5], 61
    %827 = vst.msk [vmem:[%s826] sm:$0x1] %vm33, %v825
    %s828 = scalar_lea.vmem [#allocation2], 236
    %v829 = vld [vmem:[%s828] sm:$0x1]
    %s830 = scalar_lea.vmem [#allocation2], 237
    %v831 = vld [vmem:[%s830] sm:$0x1]
    %v832 = vmax.f32 %v829, %v831
    %s833 = scalar_lea.vmem [#allocation2], 252
    %v834 = vld [vmem:[%s833] sm:$0x1]
    %v835 = vmax.f32 %v832, %v834
    %s836 = scalar_lea.vmem [#allocation2], 253
    %v837 = vld [vmem:[%s836] sm:$0x1]
    %v838 = vmax.f32 %v835, %v837
    %s839 = scalar_lea.vmem [#allocation5], 62
    %840 = vst.msk [vmem:[%s839] sm:$0x1] %vm33, %v838
    %s841 = scalar_lea.vmem [#allocation2], 238
    %v842 = vld [vmem:[%s841] sm:$0x1]
    %s843 = scalar_lea.vmem [#allocation2], 239
    %v844 = vld [vmem:[%s843] sm:$0x1]
    %v845 = vmax.f32 %v842, %v844
    %s846 = scalar_lea.vmem [#allocation2], 254
    %v847 = vld [vmem:[%s846] sm:$0x1]
    %v848 = vmax.f32 %v845, %v847
    %s849 = scalar_lea.vmem [#allocation2], 255
    %v850 = vld [vmem:[%s849] sm:$0x1]
    %v851 = vmax.f32 %v848, %v850
    %s852 = scalar_lea.vmem [#allocation5], 63
    %853 = vst.msk [vmem:[%s852] sm:$0x1] %vm33, %v851
    // Predicated region
    $region10: #{tpu_custom_call.1} parent=1 // pred_check
      _
    $region11: #{tpu_custom_call.1} parent=1 // pred_check_branch
      %855 = sbr.rel (0) target = $region13
    $region12: #{tpu_custom_call.1} parent=1 // pred_region
      %s857 = ssub.s32 1024, 1024
      %858 = vsyncadd [#allocation4], %s857
      %s859 = sshll.u32 [#allocation5], 4
      %s860 = int_to_ptr.vmem [resolvable:$true] %s859
      %865 = dma.vmem_to_hbm [thread:$0]  %s860, 1024, %s1, [#allocation4], 16, 16, 1
    $region13: #{tpu_custom_call.1} parent=1 // pred_fallthru
      _
    // Predicated region
    $region14: #{tpu_custom_call.1} parent=1 // pred_check
      _
    $region15: #{tpu_custom_call.1} parent=1 // pred_check_branch
      %867 = sbr.rel (0) target = $region17
    $region16: #{tpu_custom_call.1} parent=1 // pred_region
      %868 = dma.done [#allocation4], 1024
    $region17: #{tpu_custom_call.1} parent=1 // pred_fallthru
      _
    %869 = vsyncpa [#allocation3], 1
    %870 = vsyncpa [#allocation4], 1

</llo_original>
